<compile_context>
chip_gen: v7x
topology: tpu7x:2x2x1
jax: 0.10.0
libtpu: 0.0.40
codegen_flags: <defaults>
</compile_context>

<pallas_src>
import functools
import math

import jax
import jax.numpy as jnp
import numpy as np
from jax.experimental import pallas as pl
from jax.experimental.pallas import tpu as pltpu

PAD = 0

# Flip to jnp.bfloat16 on v6e/v7x for ~2x MXU throughput and half the weight
# DMA (accumulation stays f32 via preferred_element_type); loosen the final
# tolerance if you do.  Elementwise/softmax/LayerNorm stay f32 regardless
# (v5e has no bf16 VPU/EUP).
MATMUL_DTYPE = jnp.float32

_VMEM_LIMIT = 32 * 1024 * 1024   # explicit scoped-VMEM budget (v7x: 64 MiB phys)


# ----------------------------- Pallas kernels --------------------------------

def _proj_kernel(x_ref, w_ref, b_ref, o_ref):
    """o = x @ w + b, row-tiled."""
    x = x_ref[...].astype(MATMUL_DTYPE)
    w = w_ref[...].astype(MATMUL_DTYPE)
    o_ref[...] = (jnp.dot(x, w, preferred_element_type=jnp.float32)
                  + b_ref[...])


def _mha_kernel(qsrc_ref, kvsrc_ref, kpad_ref, res_ref, npm_ref,
                wfc_ref, bfc_ref, g_ref, be_ref, o_ref, ctx_ref,
                *, n_head, d_k, d_v, q_off, k_off, v_off):
    """Fused multi-head attention + output projection + residual + LN + mask.

    qsrc/kvsrc hold the (already projected) q and k|v features along the last
    dim; q is pre-scaled by 1/temperature.  One grid step == one (batch,
    q-tile).  The key-pad mask is built in-kernel from a (1, Lk) vector.
    """
    kpad = kpad_ref[0]                               # (1, Lk); 1.0 where key is PAD

    for h in range(n_head):                          # static unroll, heads are few
        # Static Ref slices: only the needed (., d_k)/(., d_v) tiles are loaded.
        qh = qsrc_ref[0, :, q_off + h * d_k: q_off + (h + 1) * d_k]   # (tq, d_k)
        kh = kvsrc_ref[0, :, k_off + h * d_k: k_off + (h + 1) * d_k]  # (Lk, d_k)
        vh = kvsrc_ref[0, :, v_off + h * d_v: v_off + (h + 1) * d_v]  # (Lk, d_v)

        # Contract on the last dims of both operands -> no explicit kh.T (XLU).
        s = jax.lax.dot_general(
            qh.astype(MATMUL_DTYPE), kh.astype(MATMUL_DTYPE),
            dimension_numbers=(((1,), (1,)), ((), ())),
            preferred_element_type=jnp.float32)      # (tq, Lk)
        s = jnp.where(kpad > 0.0, -1e30, s)          # finite: no NaN on pad rows

        m = jnp.max(s, axis=-1, keepdims=True)
        e = jnp.exp(s - m)
        den = jnp.sum(e, axis=-1, keepdims=True)
        inv = pl.reciprocal(den, approx=True)        # EUP slot (otherwise idle)
        inv = inv * (2.0 - den * inv)                # one Newton step -> ~exact
        p = e * inv

        # Stage this head's context at its lane offset in the VMEM scratch.
        ctx_ref[:, h * d_v:(h + 1) * d_v] = jnp.dot(
            p.astype(MATMUL_DTYPE), vh.astype(MATMUL_DTYPE),
            preferred_element_type=jnp.float32)

    # One full-width output GEMM (K = n_head*d_v): no per-head concat,
    # no head transposes, no (tq, D)-wide VPU adds per head.
    y = jnp.dot(ctx_ref[...].astype(MATMUL_DTYPE),
                wfc_ref[...].astype(MATMUL_DTYPE),
                preferred_element_type=jnp.float32)

    y = y + bfc_ref[...] + res_ref[0]
    mu = jnp.mean(y, axis=-1, keepdims=True)
    var = jnp.mean((y - mu) ** 2, axis=-1, keepdims=True)
    yn = (y - mu) * jax.lax.rsqrt(var + 1e-5)
    o_ref[0] = (yn * g_ref[...] + be_ref[...]) * npm_ref[0]


def _ffn_kernel(x_ref, npm_ref, w1_ref, b1_ref, w2_ref, b2_ref,
                g_ref, be_ref, o_ref):
    """Fused position-wise FFN + residual + LayerNorm + non-pad mask."""
    x = x_ref[...]                                          # (tm, D) f32
    h = jnp.dot(x.astype(MATMUL_DTYPE), w1_ref[...].astype(MATMUL_DTYPE),
                preferred_element_type=jnp.float32) + b1_ref[...]
    h = jnp.maximum(h, 0.0)
    y = jnp.dot(h.astype(MATMUL_DTYPE), w2_ref[...].astype(MATMUL_DTYPE),
                preferred_element_type=jnp.float32) + b2_ref[...]
    y = y + x                                               # residual
    mu = jnp.mean(y, axis=-1, keepdims=True)
    var = jnp.mean((y - mu) ** 2, axis=-1, keepdims=True)
    yn = (y - mu) * jax.lax.rsqrt(var + 1e-5)
    o_ref[...] = (yn * g_ref[...] + be_ref[...]) * npm_ref[...]


# ------------------------------ kernel wrappers -------------------------------

def linear(x, w, b, *, block_m=512):
    """x: (M, Din) @ w: (Din, Dout) + b, row-tiled over M."""
    M, Din = x.shape
    Dout = w.shape[1]
    tm = M if M <= block_m else block_m
    return pl.pallas_call(
        _proj_kernel,
        out_shape=jax.ShapeDtypeStruct((M, Dout), jnp.float32),
        grid=(pl.cdiv(M, tm),),
        in_specs=[pl.BlockSpec((tm, Din), lambda i: (i, 0)),
                  pl.BlockSpec((Din, Dout), lambda i: (0, 0)),
                  pl.BlockSpec((1, Dout), lambda i: (0, 0))],
        out_specs=pl.BlockSpec((tm, Dout), lambda i: (i, 0)),
        compiler_params=pltpu.CompilerParams(
            dimension_semantics=("parallel",),
            vmem_limit_bytes=_VMEM_LIMIT),
    )(x, w, b.reshape(1, Dout))


def mha_block(qsrc, kvsrc, kpad, residual, npm, wfc, bfc, gamma, beta,
              *, n_head, d_k, d_v, q_off, k_off, v_off, block_q=128):
    """Fused attention sub-layer.

    qsrc:(B,Lq,Wq) kvsrc:(B,Lk,Wkv) kpad:(B,1,Lk) float (1.0 where key==PAD).
    Grid is (batch, q-tile); only O(B*Lk) of mask data ever leaves HBM.
    """
    B, Lq, Wq = qsrc.shape
    _, Lk, Wkv = kvsrc.shape
    D = residual.shape[-1]
    Hdv = n_head * d_v
    tq = Lq if Lq <= block_q else block_q

    kern = functools.partial(_mha_kernel, n_head=n_head, d_k=d_k, d_v=d_v,
                             q_off=q_off, k_off=k_off, v_off=v_off)
    return pl.pallas_call(
        kern,
        out_shape=jax.ShapeDtypeStruct((B, Lq, D), jnp.float32),
        grid=(B, pl.cdiv(Lq, tq)),
        in_specs=[pl.BlockSpec((1, tq, Wq), lambda b, q: (b, q, 0)),
                  pl.BlockSpec((1, Lk, Wkv), lambda b, q: (b, 0, 0)),
                  pl.BlockSpec((1, 1, Lk), lambda b, q: (b, 0, 0)),
                  pl.BlockSpec((1, tq, D), lambda b, q: (b, q, 0)),
                  pl.BlockSpec((1, tq, 1), lambda b, q: (b, q, 0)),
                  pl.BlockSpec((Hdv, D), lambda b, q: (0, 0)),
                  pl.BlockSpec((1, D), lambda b, q: (0, 0)),
                  pl.BlockSpec((1, D), lambda b, q: (0, 0)),
                  pl.BlockSpec((1, D), lambda b, q: (0, 0))],
        out_specs=pl.BlockSpec((1, tq, D), lambda b, q: (b, q, 0)),
        scratch_shapes=[pltpu.VMEM((tq, Hdv), jnp.float32)],
        compiler_params=pltpu.CompilerParams(
            dimension_semantics=("parallel", "parallel"),
            vmem_limit_bytes=_VMEM_LIMIT),
    )(qsrc, kvsrc, kpad, residual, npm, wfc, bfc.reshape(1, D),
      gamma.reshape(1, D), beta.reshape(1, D))


def ffn_block(x, npm_flat, w1, b1, w2, b2, gamma, beta, *, block_m=512):
    B, L, D = x.shape
    M = B * L
    d_inner = w1.shape[1]
    tm = M if M <= block_m else block_m
    out = pl.pallas_call(
        _ffn_kernel,
        out_shape=jax.ShapeDtypeStruct((M, D), jnp.float32),
        grid=(pl.cdiv(M, tm),),
        in_specs=[pl.BlockSpec((tm, D), lambda i: (i, 0)),
                  pl.BlockSpec((tm, 1), lambda i: (i, 0)),
                  pl.BlockSpec((D, d_inner), lambda i: (0, 0)),
                  pl.BlockSpec((1, d_inner), lambda i: (0, 0)),
                  pl.BlockSpec((d_inner, D), lambda i: (0, 0)),
                  pl.BlockSpec((1, D), lambda i: (0, 0)),
                  pl.BlockSpec((1, D), lambda i: (0, 0)),
                  pl.BlockSpec((1, D), lambda i: (0, 0))],
        out_specs=pl.BlockSpec((tm, D), lambda i: (i, 0)),
        compiler_params=pltpu.CompilerParams(
            dimension_semantics=("parallel",),
            vmem_limit_bytes=_VMEM_LIMIT),
    )(x.reshape(M, D), npm_flat, w1, b1.reshape(1, d_inner), w2,
      b2.reshape(1, D), gamma.reshape(1, D), beta.reshape(1, D))
    return out.reshape(B, L, D)


# ------------------------------ parameter folding ------------------------------

def prepare_params(params, *, n_head, d_k, d_v):
    """Pre-fold fused projection weights ONCE (no per-forward concats), and
    cast the GEMM weights to MATMUL_DTYPE (biases/LN stay f32)."""
    del n_head, d_v
    temp = float(d_k) ** 0.5
    wdt = MATMUL_DTYPE
    layers = []
    for lp in params["layers"]:
        slf, enc, ffn = lp["slf"], lp["enc"], lp["ffn"]
        layers.append({
            "slf": {
                "w_qkv": jnp.concatenate(
                    [slf["wq"] / temp, slf["wk"], slf["wv"]], axis=1).astype(wdt),
                "b_qkv": jnp.concatenate([slf["bq"] / temp, slf["bk"], slf["bv"]]),
                "wfc": slf["wfc"].astype(wdt), "bfc": slf["bfc"],
                "ln_g": slf["ln_g"], "ln_b": slf["ln_b"],
            },
            "enc": {
                "wq": (enc["wq"] / temp).astype(wdt), "bq": enc["bq"] / temp,
                "w_kv": jnp.concatenate([enc["wk"], enc["wv"]], axis=1).astype(wdt),
                "b_kv": jnp.concatenate([enc["bk"], enc["bv"]]),
                "wfc": enc["wfc"].astype(wdt), "bfc": enc["bfc"],
                "ln_g": enc["ln_g"], "ln_b": enc["ln_b"],
            },
            "ffn": {
                "w1": ffn["w1"].astype(wdt), "b1": ffn["b1"],
                "w2": ffn["w2"].astype(wdt), "b2": ffn["b2"],
                "ln_g": ffn["ln_g"], "ln_b": ffn["ln_b"],
            },
        })
    return {"emb": params["emb"], "pe": params["pe"], "layers": layers,
            "prj_w": params["prj_w"], "prj_b": params["prj_b"]}


# ------------------------------ Decoder forward -------------------------------

def decoder_forward(params, tgt_seq, src_seq, enc_output, n_head, d_k, d_v):
    """`params` must come from prepare_params."""
    B, Lt = tgt_seq.shape
    Ls = src_seq.shape[1]
    D = enc_output.shape[-1]
    H = n_head

    non_pad_mask = (tgt_seq != PAD).astype(jnp.float32)[:, :, None]      # (B,Lt,1)
    # Only the key-pad VECTORS go to the kernels; the (B,Lq,Lk) mask is built
    # in-kernel by a broadcasted compare.
    kpad_tgt = (tgt_seq == PAD).astype(jnp.float32)[:, None, :]          # (B,1,Lt)
    kpad_src = (src_seq == PAD).astype(jnp.float32)[:, None, :]          # (B,1,Ls)

    # TODO(synk): embedding-table gather + positional add done in plain JAX
    #             (a Pallas scalar-prefetch row gather is possible but overkill here).
    x = params["emb"][tgt_seq] + params["pe"][:Lt][None, :, :]

    npm_flat = non_pad_mask.reshape(B * Lt, 1)
    enc_flat = enc_output.reshape(B * Ls, D)

    for lp in params["layers"]:
        # ---- masked self-attention: one fused QKV GEMM (q pre-scaled) ----
        slf = lp["slf"]
        qkv = linear(x.reshape(B * Lt, D), slf["w_qkv"], slf["b_qkv"]).reshape(
            B, Lt, 2 * H * d_k + H * d_v)
        x = mha_block(qkv, qkv, kpad_tgt, x, non_pad_mask,
                      slf["wfc"], slf["bfc"], slf["ln_g"], slf["ln_b"],
                      n_head=H, d_k=d_k, d_v=d_v,
                      q_off=0, k_off=H * d_k, v_off=2 * H * d_k)

        # ---- encoder-decoder attention: Q GEMM + fused KV GEMM ----
        enc = lp["enc"]
        q = linear(x.reshape(B * Lt, D), enc["wq"], enc["bq"]).reshape(
            B, Lt, H * d_k)
        kv = linear(enc_flat, enc["w_kv"], enc["b_kv"]).reshape(
            B, Ls, H * d_k + H * d_v)
        x = mha_block(q, kv, kpad_src, x, non_pad_mask,
                      enc["wfc"], enc["bfc"], enc["ln_g"], enc["ln_b"],
                      n_head=H, d_k=d_k, d_v=d_v,
                      q_off=0, k_off=0, v_off=H * d_k)

        # ---- fused position-wise FFN + residual + LN + non-pad mask ----
        ffn = lp["ffn"]
        x = ffn_block(x, npm_flat, ffn["w1"], ffn["b1"], ffn["w2"], ffn["b2"],
                      ffn["ln_g"], ffn["ln_b"])

    dec_first = x[:, 0]                                           # (B, D)
    # 1-lane-wide output: do it in plain XLA, a Pallas call is pure overhead.
    logits = (dec_first @ params["prj_w"] + params["prj_b"])[:, 0]
    return dec_first, logits


# ------------------------------ parameters ------------------------------------

def positional_table(max_len, d_model):
    pos = np.arange(max_len, dtype=np.float32)[:, None]
    div = np.exp(np.arange(0, d_model, 2, dtype=np.float32)
                 * -(math.log(10000.0) / d_model))
    pe = np.zeros((max_len, d_model), np.float32)
    pe[:, 0::2] = np.sin(pos * div)
    pe[:, 1::2] = np.cos(pos * div)
    return jnp.asarray(pe)


def init_params(key, vocab_size, d_model, d_inner, n_head, d_k, d_v, n_layers,
                max_len=512):
    keys = iter(jax.random.split(key, 256))

    def nrm(shape, std):
        return jax.random.normal(next(keys), shape, jnp.float32) * std

    def mha_params():
        return {
            "wq": nrm((d_model, n_head * d_k), math.sqrt(2.0 / (d_model + d_k))),
            "bq": nrm((n_head * d_k,), 0.02),
            "wk": nrm((d_model, n_head * d_k), math.sqrt(2.0 / (d_model + d_k))),
            "bk": nrm((n_head * d_k,), 0.02),
            "wv": nrm((d_model, n_head * d_v), math.sqrt(2.0 / (d_model + d_v))),
            "bv": nrm((n_head * d_v,), 0.02),
            "wfc": nrm((n_head * d_v, d_model),
                       math.sqrt(2.0 / (n_head * d_v + d_model))),
            "bfc": nrm((d_model,), 0.02),
            "ln_g": jnp.ones((d_model,), jnp.float32),
            "ln_b": jnp.zeros((d_model,), jnp.float32),
        }

    layers = []
    for _ in range(n_layers):
        layers.append({
            "slf": mha_params(),
            "enc": mha_params(),
            "ffn": {
                "w1": nrm((d_model, d_inner), 1.0 / math.sqrt(d_model)),
                "b1": nrm((d_inner,), 0.02),
                "w2": nrm((d_inner, d_model), 1.0 / math.sqrt(d_inner)),
                "b2": nrm((d_model,), 0.02),
                "ln_g": jnp.ones((d_model,), jnp.float32),
                "ln_b": jnp.zeros((d_model,), jnp.float32),
            },
        })

    emb = nrm((vocab_size, d_model), 1.0 / math.sqrt(d_model))
    emb = emb.at[PAD].set(0.0)                 # padding_idx=PAD
    return {
        "emb": emb,
        "pe": positional_table(max_len, d_model),
        "layers": layers,
        "prj_w": nrm((d_model, 1), 1.0 / math.sqrt(d_model)),
        "prj_b": nrm((1,), 0.02),
    }


# ------------------------------ pure-JAX reference -----------------------------

def reference_decoder(params, tgt_seq, src_seq, enc_output, n_head, d_k, d_v):
    B, Lt = tgt_seq.shape
    Ls = src_seq.shape[1]
    D = enc_output.shape[-1]
    H = n_head
    temp = float(d_k) ** 0.5

    def ln(x, g, b):
        mu = jnp.mean(x, axis=-1, keepdims=True)
        var = jnp.mean((x - mu) ** 2, axis=-1, keepdims=True)
        return (x - mu) / jnp.sqrt(var + 1e-5) * g + b

    def mha(q_in, kv_in, mask, p):
        Bq, Lq, _ = q_in.shape
        Lk = kv_in.shape[1]
        residual = q_in
        q = (q_in.reshape(-1, D) @ p["wq"] + p["bq"]).reshape(Bq, Lq, H, d_k)
        k = (kv_in.reshape(-1, D) @ p["wk"] + p["bk"]).reshape(Bq, Lk, H, d_k)
        v = (kv_in.reshape(-1, D) @ p["wv"] + p["bv"]).reshape(Bq, Lk, H, d_v)
        q = jnp.transpose(q, (0, 2, 1, 3))
        k = jnp.transpose(k, (0, 2, 1, 3))
        v = jnp.transpose(v, (0, 2, 1, 3))
        s = jnp.einsum("bhqd,bhkd->bhqk", q, k) / temp
        s = jnp.where(mask[:, None, :, :] > 0, -1e30, s)
        a = jax.nn.softmax(s, axis=-1)
        o = jnp.einsum("bhqk,bhkd->bhqd", a, v)
        o = jnp.transpose(o, (0, 2, 1, 3)).reshape(Bq, Lq, H * d_v)
        o = o @ p["wfc"] + p["bfc"]
        return ln(o + residual, p["ln_g"], p["ln_b"])

    non_pad_mask = (tgt_seq != PAD).astype(jnp.float32)[:, :, None]
    slf_mask = jnp.broadcast_to((tgt_seq == PAD)[:, None, :],
                                (B, Lt, Lt)).astype(jnp.float32)
    enc_mask = jnp.broadcast_to((src_seq == PAD)[:, None, :],
                                (B, Lt, Ls)).astype(jnp.float32)

    x = params["emb"][tgt_seq] + params["pe"][:Lt][None, :, :]
    for lp in params["layers"]:
        x = mha(x, x, slf_mask, lp["slf"]) * non_pad_mask
        x = mha(x, enc_output, enc_mask, lp["enc"]) * non_pad_mask
        f = lp["ffn"]
        h = jnp.maximum(x.reshape(-1, D) @ f["w1"] + f["b1"], 0.0)
        y = (h @ f["w2"] + f["b2"]).reshape(B, Lt, D)
        x = ln(y + x, f["ln_g"], f["ln_b"]) * non_pad_mask

    dec_first = x[:, 0]
    logits = (dec_first @ params["prj_w"] + params["prj_b"])[:, 0]
    return dec_first, logits


# ----------------------------------- main --------------------------------------

if __name__ == "__main__":
    vocab_size = 40
    d_model = 32
    n_head = 2
    d_k = d_v = d_model // n_head
    d_inner = d_model * 4
    n_layers = 2
    B, Lt, Ls = 2, 8, 10

    key = jax.random.PRNGKey(0)
    kp, kt, ks, ke = jax.random.split(key, 4)
    params = init_params(kp, vocab_size, d_model, d_inner, n_head, d_k, d_v,
                         n_layers)
    fast_params = prepare_params(params, n_head=n_head, d_k=d_k, d_v=d_v)

    tgt_seq = jax.random.randint(kt, (B, Lt), 1, vocab_size)
    tgt_seq = tgt_seq.at[1, -2:].set(PAD)          # padded tail in batch 1
    src_seq = jax.random.randint(ks, (B, Ls), 1, vocab_size)
    src_seq = src_seq.at[1, -3:].set(PAD)
    enc_output = jax.random.normal(ke, (B, Ls, d_model), jnp.float32)

    fwd = jax.jit(functools.partial(decoder_forward,
                                    n_head=n_head, d_k=d_k, d_v=d_v))
    dec_first, logits = fwd(fast_params, tgt_seq, src_seq, enc_output)
    dec_first = jax.block_until_ready(dec_first)
    logits = jax.block_until_ready(logits)

    ref_first, ref_logits = reference_decoder(params, tgt_seq, src_seq,
                                              enc_output, n_head, d_k, d_v)

    np.testing.assert_allclose(np.asarray(dec_first), np.asarray(ref_first),
                               rtol=2e-4, atol=2e-4)
    np.testing.assert_allclose(np.asarray(logits), np.asarray(ref_logits),
                               rtol=2e-4, atol=2e-4)

    print("KERNEL_OK")
</pallas_src>

<mosaic_0001>
module attributes {stable_mosaic.version = 11 : i64} {
  func.func @_proj_kernel(%arg0: i32, %arg1: memref<16x32xf32, #tpu.memory_space<vmem>>, %arg2: memref<32x96xf32, #tpu.memory_space<vmem>>, %arg3: memref<1x96xf32, #tpu.memory_space<vmem>>, %arg4: memref<16x96xf32, #tpu.memory_space<vmem>>) attributes {dimension_semantics = [#tpu.dimension_semantics<parallel>], iteration_bounds = array<i64: 1>, scalar_prefetch = 0 : i64, scratch_operands = 0 : i64, tpu.core_type = #tpu.core_type<tc>, window_params = [{transform_indices = @transform_0, window_bounds = array<i64: 16, 32>}, {pipeline_mode = #tpu.pipeline_mode<synchronous>, transform_indices = @transform_1, window_bounds = array<i64: 32, 96>}, {pipeline_mode = #tpu.pipeline_mode<synchronous>, transform_indices = @transform_2, window_bounds = array<i64: 1, 96>}, {transform_indices = @transform_3, window_bounds = array<i64: 16, 96>}]} {
    %c0 = arith.constant 0 : index
    %c0_0 = arith.constant 0 : index
    %0 = vector.load %arg1[%c0, %c0_0] : memref<16x32xf32, #tpu.memory_space<vmem>>, vector<16x32xf32>
    %c0_1 = arith.constant 0 : index
    %c0_2 = arith.constant 0 : index
    %1 = vector.load %arg2[%c0_1, %c0_2] : memref<32x96xf32, #tpu.memory_space<vmem>>, vector<32x96xf32>
    %cst = arith.constant dense<0.000000e+00> : vector<16x96xf32>
    %2 = tpu.matmul %0, %1, %cst {dimension_numbers = #tpu.dot_dimension_numbers<[1], [0], [0], [1], [0, 0, 1, 1], [], []>} : vector<16x32xf32>, vector<32x96xf32>, vector<16x96xf32> -> vector<16x96xf32>
    %c0_3 = arith.constant 0 : index
    %c0_4 = arith.constant 0 : index
    %3 = vector.load %arg3[%c0_3, %c0_4] : memref<1x96xf32, #tpu.memory_space<vmem>>, vector<1x96xf32>
    %4 = vector.broadcast %3 : vector<1x96xf32> to vector<16x96xf32>
    %5 = arith.addf %2, %4 : vector<16x96xf32>
    %c0_5 = arith.constant 0 : index
    %c0_6 = arith.constant 0 : index
    %6 = vector.load %arg4[%c0_5, %c0_6] : memref<16x96xf32, #tpu.memory_space<vmem>>, vector<16x96xf32>
    tpu.vector_store %arg4[%c0_5, %c0_6], %5 {strides = array<i32>} : memref<16x96xf32, #tpu.memory_space<vmem>>, vector<16x96xf32>,
    return
  }
  func.func @transform_0(%arg0: i32) -> (i32, i32) {
    %c0_i32 = arith.constant 0 : i32
    %c0_i32_0 = arith.constant 0 : i32
    return %arg0, %c0_i32 : i32, i32
  }
  func.func @transform_1(%arg0: i32) -> (i32, i32) {
    %c0_i32 = arith.constant 0 : i32
    %c0_i32_0 = arith.constant 0 : i32
    %c0_i32_1 = arith.constant 0 : i32
    return %c0_i32, %c0_i32_0 : i32, i32
  }
  func.func @transform_2(%arg0: i32) -> (i32, i32) {
    %c0_i32 = arith.constant 0 : i32
    %c0_i32_0 = arith.constant 0 : i32
    %c0_i32_1 = arith.constant 0 : i32
    return %c0_i32, %c0_i32_0 : i32, i32
  }
  func.func @transform_3(%arg0: i32) -> (i32, i32) {
    %c0_i32 = arith.constant 0 : i32
    %c0_i32_0 = arith.constant 0 : i32
    return %arg0, %c0_i32 : i32, i32
  }
}

module attributes {stable_mosaic.version = 11 : i64} {
  func.func @_proj_kernel(%arg0: i32, %arg1: memref<16x32xf32, #tpu.memory_space<vmem>>, %arg2: memref<32x32xf32, #tpu.memory_space<vmem>>, %arg3: memref<1x32xf32, #tpu.memory_space<vmem>>, %arg4: memref<16x32xf32, #tpu.memory_space<vmem>>) attributes {dimension_semantics = [#tpu.dimension_semantics<parallel>], iteration_bounds = array<i64: 1>, scalar_prefetch = 0 : i64, scratch_operands = 0 : i64, tpu.core_type = #tpu.core_type<tc>, window_params = [{transform_indices = @transform_0, window_bounds = array<i64: 16, 32>}, {pipeline_mode = #tpu.pipeline_mode<synchronous>, transform_indices = @transform_1, window_bounds = array<i64: 32, 32>}, {pipeline_mode = #tpu.pipeline_mode<synchronous>, transform_indices = @transform_2, window_bounds = array<i64: 1, 32>}, {transform_indices = @transform_3, window_bounds = array<i64: 16, 32>}]} {
    %c0 = arith.constant 0 : index
    %c0_0 = arith.constant 0 : index
    %0 = vector.load %arg1[%c0, %c0_0] : memref<16x32xf32, #tpu.memory_space<vmem>>, vector<16x32xf32>
    %c0_1 = arith.constant 0 : index
    %c0_2 = arith.constant 0 : index
    %1 = vector.load %arg2[%c0_1, %c0_2] : memref<32x32xf32, #tpu.memory_space<vmem>>, vector<32x32xf32>
    %cst = arith.constant dense<0.000000e+00> : vector<16x32xf32>
    %2 = tpu.matmul %0, %1, %cst {dimension_numbers = #tpu.dot_dimension_numbers<[1], [0], [0], [1], [0, 0, 1, 1], [], []>} : vector<16x32xf32>, vector<32x32xf32>, vector<16x32xf32> -> vector<16x32xf32>
    %c0_3 = arith.constant 0 : index
    %c0_4 = arith.constant 0 : index
    %3 = vector.load %arg3[%c0_3, %c0_4] : memref<1x32xf32, #tpu.memory_space<vmem>>, vector<1x32xf32>
    %4 = vector.broadcast %3 : vector<1x32xf32> to vector<16x32xf32>
    %5 = arith.addf %2, %4 : vector<16x32xf32>
    %c0_5 = arith.constant 0 : index
    %c0_6 = arith.constant 0 : index
    %6 = vector.load %arg4[%c0_5, %c0_6] : memref<16x32xf32, #tpu.memory_space<vmem>>, vector<16x32xf32>
    tpu.vector_store %arg4[%c0_5, %c0_6], %5 {strides = array<i32>} : memref<16x32xf32, #tpu.memory_space<vmem>>, vector<16x32xf32>,
    return
  }
  func.func @transform_0(%arg0: i32) -> (i32, i32) {
    %c0_i32 = arith.constant 0 : i32
    %c0_i32_0 = arith.constant 0 : i32
    return %arg0, %c0_i32 : i32, i32
  }
  func.func @transform_1(%arg0: i32) -> (i32, i32) {
    %c0_i32 = arith.constant 0 : i32
    %c0_i32_0 = arith.constant 0 : i32
    %c0_i32_1 = arith.constant 0 : i32
    return %c0_i32, %c0_i32_0 : i32, i32
  }
  func.func @transform_2(%arg0: i32) -> (i32, i32) {
    %c0_i32 = arith.constant 0 : i32
    %c0_i32_0 = arith.constant 0 : i32
    %c0_i32_1 = arith.constant 0 : i32
    return %c0_i32, %c0_i32_0 : i32, i32
  }
  func.func @transform_3(%arg0: i32) -> (i32, i32) {
    %c0_i32 = arith.constant 0 : i32
    %c0_i32_0 = arith.constant 0 : i32
    return %arg0, %c0_i32 : i32, i32
  }
}

module attributes {stable_mosaic.version = 11 : i64} {
  func.func @_proj_kernel(%arg0: i32, %arg1: memref<20x32xf32, #tpu.memory_space<vmem>>, %arg2: memref<32x64xf32, #tpu.memory_space<vmem>>, %arg3: memref<1x64xf32, #tpu.memory_space<vmem>>, %arg4: memref<20x64xf32, #tpu.memory_space<vmem>>) attributes {dimension_semantics = [#tpu.dimension_semantics<parallel>], iteration_bounds = array<i64: 1>, scalar_prefetch = 0 : i64, scratch_operands = 0 : i64, tpu.core_type = #tpu.core_type<tc>, window_params = [{transform_indices = @transform_0, window_bounds = array<i64: 20, 32>}, {pipeline_mode = #tpu.pipeline_mode<synchronous>, transform_indices = @transform_1, window_bounds = array<i64: 32, 64>}, {pipeline_mode = #tpu.pipeline_mode<synchronous>, transform_indices = @transform_2, window_bounds = array<i64: 1, 64>}, {transform_indices = @transform_3, window_bounds = array<i64: 20, 64>}]} {
    %c0 = arith.constant 0 : index
    %c0_0 = arith.constant 0 : index
    %0 = vector.load %arg1[%c0, %c0_0] : memref<20x32xf32, #tpu.memory_space<vmem>>, vector<20x32xf32>
    %c0_1 = arith.constant 0 : index
    %c0_2 = arith.constant 0 : index
    %1 = vector.load %arg2[%c0_1, %c0_2] : memref<32x64xf32, #tpu.memory_space<vmem>>, vector<32x64xf32>
    %cst = arith.constant dense<0.000000e+00> : vector<20x64xf32>
    %2 = tpu.matmul %0, %1, %cst {dimension_numbers = #tpu.dot_dimension_numbers<[1], [0], [0], [1], [0, 0, 1, 1], [], []>} : vector<20x32xf32>, vector<32x64xf32>, vector<20x64xf32> -> vector<20x64xf32>
    %c0_3 = arith.constant 0 : index
    %c0_4 = arith.constant 0 : index
    %3 = vector.load %arg3[%c0_3, %c0_4] : memref<1x64xf32, #tpu.memory_space<vmem>>, vector<1x64xf32>
    %4 = vector.broadcast %3 : vector<1x64xf32> to vector<20x64xf32>
    %5 = arith.addf %2, %4 : vector<20x64xf32>
    %c0_5 = arith.constant 0 : index
    %c0_6 = arith.constant 0 : index
    %6 = vector.load %arg4[%c0_5, %c0_6] : memref<20x64xf32, #tpu.memory_space<vmem>>, vector<20x64xf32>
    tpu.vector_store %arg4[%c0_5, %c0_6], %5 {strides = array<i32>} : memref<20x64xf32, #tpu.memory_space<vmem>>, vector<20x64xf32>,
    return
  }
  func.func @transform_0(%arg0: i32) -> (i32, i32) {
    %c0_i32 = arith.constant 0 : i32
    %c0_i32_0 = arith.constant 0 : i32
    return %arg0, %c0_i32 : i32, i32
  }
  func.func @transform_1(%arg0: i32) -> (i32, i32) {
    %c0_i32 = arith.constant 0 : i32
    %c0_i32_0 = arith.constant 0 : i32
    %c0_i32_1 = arith.constant 0 : i32
    return %c0_i32, %c0_i32_0 : i32, i32
  }
  func.func @transform_2(%arg0: i32) -> (i32, i32) {
    %c0_i32 = arith.constant 0 : i32
    %c0_i32_0 = arith.constant 0 : i32
    %c0_i32_1 = arith.constant 0 : i32
    return %c0_i32, %c0_i32_0 : i32, i32
  }
  func.func @transform_3(%arg0: i32) -> (i32, i32) {
    %c0_i32 = arith.constant 0 : i32
    %c0_i32_0 = arith.constant 0 : i32
    return %arg0, %c0_i32 : i32, i32
  }
}

module attributes {stable_mosaic.version = 11 : i64} {
  func.func @_mha_kernel(%arg0: i32, %arg1: i32, %arg2: memref<1x8x96xf32, #tpu.memory_space<vmem>>, %arg3: memref<1x8x96xf32, #tpu.memory_space<vmem>>, %arg4: memref<1x1x8xf32, #tpu.memory_space<vmem>>, %arg5: memref<1x8x32xf32, #tpu.memory_space<vmem>>, %arg6: memref<1x8x1xf32, #tpu.memory_space<vmem>>, %arg7: memref<32x32xf32, #tpu.memory_space<vmem>>, %arg8: memref<1x32xf32, #tpu.memory_space<vmem>>, %arg9: memref<1x32xf32, #tpu.memory_space<vmem>>, %arg10: memref<1x32xf32, #tpu.memory_space<vmem>>, %arg11: memref<1x8x32xf32, #tpu.memory_space<vmem>>, %arg12: memref<8x32xf32, #tpu.memory_space<vmem>>) attributes {dimension_semantics = [#tpu.dimension_semantics<parallel>, #tpu.dimension_semantics<parallel>], iteration_bounds = array<i64: 2, 1>, scalar_prefetch = 0 : i64, scratch_operands = 1 : i64, tpu.core_type = #tpu.core_type<tc>, window_params = [{transform_indices = @transform_0, window_bounds = array<i64: 1, 8, 96>}, {transform_indices = @transform_1, window_bounds = array<i64: 1, 8, 96>}, {transform_indices = @transform_2, window_bounds = array<i64: 1, 1, 8>}, {transform_indices = @transform_3, window_bounds = array<i64: 1, 8, 32>}, {transform_indices = @transform_4, window_bounds = array<i64: 1, 8, 1>}, {pipeline_mode = #tpu.pipeline_mode<synchronous>, transform_indices = @transform_5, window_bounds = array<i64: 32, 32>}, {pipeline_mode = #tpu.pipeline_mode<synchronous>, transform_indices = @transform_6, window_bounds = array<i64: 1, 32>}, {pipeline_mode = #tpu.pipeline_mode<synchronous>, transform_indices = @transform_7, window_bounds = array<i64: 1, 32>}, {pipeline_mode = #tpu.pipeline_mode<synchronous>, transform_indices = @transform_8, window_bounds = array<i64: 1, 32>}, {transform_indices = @transform_9, window_bounds = array<i64: 1, 8, 32>}]} {
    %c0 = arith.constant 0 : index
    %c0_0 = arith.constant 0 : index
    %c0_1 = arith.constant 0 : index
    %0 = vector.load %arg4[%c0, %c0_0, %c0_1] : memref<1x1x8xf32, #tpu.memory_space<vmem>>, vector<1x1x8xf32>
    %1 = vector.shape_cast %0 : vector<1x1x8xf32> to vector<1x8xf32>
    %c0_2 = arith.constant 0 : index
    %c0_3 = arith.constant 0 : index
    %c0_4 = arith.constant 0 : index
    %2 = vector.load %arg2[%c0_2, %c0_3, %c0_4] : memref<1x8x96xf32, #tpu.memory_space<vmem>>, vector<1x8x16xf32>
    %3 = vector.shape_cast %2 : vector<1x8x16xf32> to vector<8x16xf32>
    %c0_5 = arith.constant 0 : index
    %c0_6 = arith.constant 0 : index
    %c32 = arith.constant 32 : index
    %4 = vector.load %arg3[%c0_5, %c0_6, %c32] : memref<1x8x96xf32, #tpu.memory_space<vmem>>, vector<1x8x16xf32>
    %5 = vector.shape_cast %4 : vector<1x8x16xf32> to vector<8x16xf32>
    %c0_7 = arith.constant 0 : index
    %c0_8 = arith.constant 0 : index
    %c64 = arith.constant 64 : index
    %6 = vector.load %arg3[%c0_7, %c0_8, %c64] : memref<1x8x96xf32, #tpu.memory_space<vmem>>, vector<1x8x16xf32>
    %7 = vector.shape_cast %6 : vector<1x8x16xf32> to vector<8x16xf32>
    %cst = arith.constant dense<0.000000e+00> : vector<8x8xf32>
    %8 = tpu.matmul %3, %5, %cst {dimension_numbers = #tpu.dot_dimension_numbers<[1], [1], [0], [0], [0, 0, 1, 0], [], []>} : vector<8x16xf32>, vector<8x16xf32>, vector<8x8xf32> -> vector<8x8xf32>
    %cst_9 = arith.constant 0.000000e+00 : f32
    %9 = vector.broadcast %cst_9 : f32 to vector<1x8xf32>
    %10 = arith.cmpf ogt, %1, %9 : vector<1x8xf32>
    %cst_10 = arith.constant -1.000000e+30 : f32
    %11 = vector.shape_cast %10 : vector<1x8xi1> to vector<1x8xi1>
    %12 = vector.broadcast %11 : vector<1x8xi1> to vector<8x8xi1>
    %13 = vector.broadcast %cst_10 : f32 to vector<8x8xf32>
    %14 = arith.select %12, %13, %8 : vector<8x8xi1>, vector<8x8xf32>
    %cst_11 = arith.constant dense<0xFF800000> : vector<8xf32>
    %15 = vector.multi_reduction <maximumf>, %14, %cst_11 [1] : vector<8x8xf32> to vector<8xf32>
    %16 = vector.shape_cast %15 : vector<8xf32> to vector<8x1xf32>
    %17 = vector.broadcast %16 : vector<8x1xf32> to vector<8x8xf32>
    %18 = arith.subf %14, %17 : vector<8x8xf32>
    %19 = math.exp %18 : vector<8x8xf32>
    %cst_12 = arith.constant dense<0.000000e+00> : vector<8xf32>
    %20 = vector.multi_reduction <add>, %19, %cst_12 [1] : vector<8x8xf32> to vector<8xf32>
    %21 = vector.shape_cast %20 : vector<8xf32> to vector<8x1xf32>
    %22 = tpu.reciprocal %21 {approx = true} : vector<8x1xf32> -> vector<8x1xf32>
    %23 = arith.mulf %21, %22 : vector<8x1xf32>
    %cst_13 = arith.constant 2.000000e+00 : f32
    %24 = vector.broadcast %cst_13 : f32 to vector<8x1xf32>
    %25 = arith.subf %24, %23 : vector<8x1xf32>
    %26 = arith.mulf %22, %25 : vector<8x1xf32>
    %27 = vector.broadcast %26 : vector<8x1xf32> to vector<8x8xf32>
    %28 = arith.mulf %19, %27 : vector<8x8xf32>
    %cst_14 = arith.constant dense<0.000000e+00> : vector<8x16xf32>
    %29 = tpu.matmul %28, %7, %cst_14 {dimension_numbers = #tpu.dot_dimension_numbers<[1], [0], [0], [1], [0, 0, 1, 1], [], []>} : vector<8x8xf32>, vector<8x16xf32>, vector<8x16xf32> -> vector<8x16xf32>
    %c0_15 = arith.constant 0 : index
    %c0_16 = arith.constant 0 : index
    %30 = vector.load %arg12[%c0_15, %c0_16] : memref<8x32xf32, #tpu.memory_space<vmem>>, vector<8x16xf32>
    tpu.vector_store %arg12[%c0_15, %c0_16], %29 {strides = array<i32>} : memref<8x32xf32, #tpu.memory_space<vmem>>, vector<8x16xf32>,
    %c0_17 = arith.constant 0 : index
    %c0_18 = arith.constant 0 : index
    %c16 = arith.constant 16 : index
    %31 = vector.load %arg2[%c0_17, %c0_18, %c16] : memref<1x8x96xf32, #tpu.memory_space<vmem>>, vector<1x8x16xf32>
    %32 = vector.shape_cast %31 : vector<1x8x16xf32> to vector<8x16xf32>
    %c0_19 = arith.constant 0 : index
    %c0_20 = arith.constant 0 : index
    %c48 = arith.constant 48 : index
    %33 = vector.load %arg3[%c0_19, %c0_20, %c48] : memref<1x8x96xf32, #tpu.memory_space<vmem>>, vector<1x8x16xf32>
    %34 = vector.shape_cast %33 : vector<1x8x16xf32> to vector<8x16xf32>
    %c0_21 = arith.constant 0 : index
    %c0_22 = arith.constant 0 : index
    %c80 = arith.constant 80 : index
    %35 = vector.load %arg3[%c0_21, %c0_22, %c80] : memref<1x8x96xf32, #tpu.memory_space<vmem>>, vector<1x8x16xf32>
    %36 = vector.shape_cast %35 : vector<1x8x16xf32> to vector<8x16xf32>
    %cst_23 = arith.constant dense<0.000000e+00> : vector<8x8xf32>
    %37 = tpu.matmul %32, %34, %cst_23 {dimension_numbers = #tpu.dot_dimension_numbers<[1], [1], [0], [0], [0, 0, 1, 0], [], []>} : vector<8x16xf32>, vector<8x16xf32>, vector<8x8xf32> -> vector<8x8xf32>
    %cst_24 = arith.constant 0.000000e+00 : f32
    %38 = vector.broadcast %cst_24 : f32 to vector<1x8xf32>
    %39 = arith.cmpf ogt, %1, %38 : vector<1x8xf32>
    %cst_25 = arith.constant -1.000000e+30 : f32
    %40 = vector.shape_cast %39 : vector<1x8xi1> to vector<1x8xi1>
    %41 = vector.broadcast %40 : vector<1x8xi1> to vector<8x8xi1>
    %42 = vector.broadcast %cst_25 : f32 to vector<8x8xf32>
    %43 = arith.select %41, %42, %37 : vector<8x8xi1>, vector<8x8xf32>
    %cst_26 = arith.constant dense<0xFF800000> : vector<8xf32>
    %44 = vector.multi_reduction <maximumf>, %43, %cst_26 [1] : vector<8x8xf32> to vector<8xf32>
    %45 = vector.shape_cast %44 : vector<8xf32> to vector<8x1xf32>
    %46 = vector.broadcast %45 : vector<8x1xf32> to vector<8x8xf32>
    %47 = arith.subf %43, %46 : vector<8x8xf32>
    %48 = math.exp %47 : vector<8x8xf32>
    %cst_27 = arith.constant dense<0.000000e+00> : vector<8xf32>
    %49 = vector.multi_reduction <add>, %48, %cst_27 [1] : vector<8x8xf32> to vector<8xf32>
    %50 = vector.shape_cast %49 : vector<8xf32> to vector<8x1xf32>
    %51 = tpu.reciprocal %50 {approx = true} : vector<8x1xf32> -> vector<8x1xf32>
    %52 = arith.mulf %50, %51 : vector<8x1xf32>
    %cst_28 = arith.constant 2.000000e+00 : f32
    %53 = vector.broadcast %cst_28 : f32 to vector<8x1xf32>
    %54 = arith.subf %53, %52 : vector<8x1xf32>
    %55 = arith.mulf %51, %54 : vector<8x1xf32>
    %56 = vector.broadcast %55 : vector<8x1xf32> to vector<8x8xf32>
    %57 = arith.mulf %48, %56 : vector<8x8xf32>
    %cst_29 = arith.constant dense<0.000000e+00> : vector<8x16xf32>
    %58 = tpu.matmul %57, %36, %cst_29 {dimension_numbers = #tpu.dot_dimension_numbers<[1], [0], [0], [1], [0, 0, 1, 1], [], []>} : vector<8x8xf32>, vector<8x16xf32>, vector<8x16xf32> -> vector<8x16xf32>
    %c0_30 = arith.constant 0 : index
    %c16_31 = arith.constant 16 : index
    %59 = vector.load %arg12[%c0_30, %c16_31] : memref<8x32xf32, #tpu.memory_space<vmem>>, vector<8x16xf32>
    tpu.vector_store %arg12[%c0_30, %c16_31], %58 {strides = array<i32>} : memref<8x32xf32, #tpu.memory_space<vmem>>, vector<8x16xf32>,
    %c0_32 = arith.constant 0 : index
    %c0_33 = arith.constant 0 : index
    %60 = vector.load %arg12[%c0_32, %c0_33] : memref<8x32xf32, #tpu.memory_space<vmem>>, vector<8x32xf32>
    %c0_34 = arith.constant 0 : index
    %c0_35 = arith.constant 0 : index
    %61 = vector.load %arg7[%c0_34, %c0_35] : memref<32x32xf32, #tpu.memory_space<vmem>>, vector<32x32xf32>
    %cst_36 = arith.constant dense<0.000000e+00> : vector<8x32xf32>
    %62 = tpu.matmul %60, %61, %cst_36 {dimension_numbers = #tpu.dot_dimension_numbers<[1], [0], [0], [1], [0, 0, 1, 1], [], []>} : vector<8x32xf32>, vector<32x32xf32>, vector<8x32xf32> -> vector<8x32xf32>
    %c0_37 = arith.constant 0 : index
    %c0_38 = arith.constant 0 : index
    %63 = vector.load %arg8[%c0_37, %c0_38] : memref<1x32xf32, #tpu.memory_space<vmem>>, vector<1x32xf32>
    %64 = vector.broadcast %63 : vector<1x32xf32> to vector<8x32xf32>
    %65 = arith.addf %62, %64 : vector<8x32xf32>
    %c0_39 = arith.constant 0 : index
    %c0_40 = arith.constant 0 : index
    %c0_41 = arith.constant 0 : index
    %66 = vector.load %arg5[%c0_39, %c0_40, %c0_41] : memref<1x8x32xf32, #tpu.memory_space<vmem>>, vector<1x8x32xf32>
    %67 = vector.shape_cast %66 : vector<1x8x32xf32> to vector<8x32xf32>
    %68 = arith.addf %65, %67 : vector<8x32xf32>
    %cst_42 = arith.constant dense<0.000000e+00> : vector<8xf32>
    %69 = vector.multi_reduction <add>, %68, %cst_42 [1] : vector<8x32xf32> to vector<8xf32>
    %70 = vector.shape_cast %69 : vector<8xf32> to vector<8x1xf32>
    %cst_43 = arith.constant 3.200000e+01 : f32
    %71 = vector.broadcast %cst_43 : f32 to vector<8x1xf32>
    %72 = arith.divf %70, %71 : vector<8x1xf32>
    %73 = vector.broadcast %72 : vector<8x1xf32> to vector<8x32xf32>
    %74 = arith.subf %68, %73 : vector<8x32xf32>
    %75 = arith.mulf %74, %74 : vector<8x32xf32>
    %cst_44 = arith.constant dense<0.000000e+00> : vector<8xf32>
    %76 = vector.multi_reduction <add>, %75, %cst_44 [1] : vector<8x32xf32> to vector<8xf32>
    %77 = vector.shape_cast %76 : vector<8xf32> to vector<8x1xf32>
    %cst_45 = arith.constant 3.200000e+01 : f32
    %78 = vector.broadcast %cst_45 : f32 to vector<8x1xf32>
    %79 = arith.divf %77, %78 : vector<8x1xf32>
    %80 = vector.broadcast %72 : vector<8x1xf32> to vector<8x32xf32>
    %81 = arith.subf %68, %80 : vector<8x32xf32>
    %cst_46 = arith.constant 9.99999974E-6 : f32
    %82 = vector.broadcast %cst_46 : f32 to vector<8x1xf32>
    %83 = arith.addf %79, %82 : vector<8x1xf32>
    %84 = math.rsqrt %83 : vector<8x1xf32>
    %85 = vector.broadcast %84 : vector<8x1xf32> to vector<8x32xf32>
    %86 = arith.mulf %81, %85 : vector<8x32xf32>
    %c0_47 = arith.constant 0 : index
    %c0_48 = arith.constant 0 : index
    %87 = vector.load %arg9[%c0_47, %c0_48] : memref<1x32xf32, #tpu.memory_space<vmem>>, vector<1x32xf32>
    %88 = vector.broadcast %87 : vector<1x32xf32> to vector<8x32xf32>
    %89 = arith.mulf %86, %88 : vector<8x32xf32>
    %c0_49 = arith.constant 0 : index
    %c0_50 = arith.constant 0 : index
    %90 = vector.load %arg10[%c0_49, %c0_50] : memref<1x32xf32, #tpu.memory_space<vmem>>, vector<1x32xf32>
    %91 = vector.broadcast %90 : vector<1x32xf32> to vector<8x32xf32>
    %92 = arith.addf %89, %91 : vector<8x32xf32>
    %c0_51 = arith.constant 0 : index
    %c0_52 = arith.constant 0 : index
    %c0_53 = arith.constant 0 : index
    %93 = vector.load %arg6[%c0_51, %c0_52, %c0_53] : memref<1x8x1xf32, #tpu.memory_space<vmem>>, vector<1x8x1xf32>
    %94 = vector.shape_cast %93 : vector<1x8x1xf32> to vector<8x1xf32>
    %95 = vector.broadcast %94 : vector<8x1xf32> to vector<8x32xf32>
    %96 = arith.mulf %92, %95 : vector<8x32xf32>
    %c0_54 = arith.constant 0 : index
    %c0_55 = arith.constant 0 : index
    %c0_56 = arith.constant 0 : index
    %97 = vector.load %arg11[%c0_54, %c0_55, %c0_56] : memref<1x8x32xf32, #tpu.memory_space<vmem>>, vector<1x8x32xf32>
    %98 = vector.shape_cast %97 : vector<1x8x32xf32> to vector<8x32xf32>
    %99 = vector.shape_cast %96 : vector<8x32xf32> to vector<1x8x32xf32>
    tpu.vector_store %arg11[%c0_54, %c0_55, %c0_56], %99 {strides = array<i32>} : memref<1x8x32xf32, #tpu.memory_space<vmem>>, vector<1x8x32xf32>,
    return
  }
  func.func @transform_0(%arg0: i32, %arg1: i32) -> (i32, i32, i32) {
    %c0_i32 = arith.constant 0 : i32
    %c0_i32_0 = arith.constant 0 : i32
    return %arg0, %arg1, %c0_i32 : i32, i32, i32
  }
  func.func @transform_1(%arg0: i32, %arg1: i32) -> (i32, i32, i32) {
    %c0_i32 = arith.constant 0 : i32
    %c0_i32_0 = arith.constant 0 : i32
    %c0_i32_1 = arith.constant 0 : i32
    return %arg0, %c0_i32, %c0_i32_0 : i32, i32, i32
  }
  func.func @transform_2(%arg0: i32, %arg1: i32) -> (i32, i32, i32) {
    %c0_i32 = arith.constant 0 : i32
    %c0_i32_0 = arith.constant 0 : i32
    %c0_i32_1 = arith.constant 0 : i32
    return %arg0, %c0_i32, %c0_i32_0 : i32, i32, i32
  }
  func.func @transform_3(%arg0: i32, %arg1: i32) -> (i32, i32, i32) {
    %c0_i32 = arith.constant 0 : i32
    %c0_i32_0 = arith.constant 0 : i32
    return %arg0, %arg1, %c0_i32 : i32, i32, i32
  }
  func.func @transform_4(%arg0: i32, %arg1: i32) -> (i32, i32, i32) {
    %c0_i32 = arith.constant 0 : i32
    %c0_i32_0 = arith.constant 0 : i32
    return %arg0, %arg1, %c0_i32 : i32, i32, i32
  }
  func.func @transform_5(%arg0: i32, %arg1: i32) -> (i32, i32) {
    %c0_i32 = arith.constant 0 : i32
    %c0_i32_0 = arith.constant 0 : i32
    %c0_i32_1 = arith.constant 0 : i32
    return %c0_i32, %c0_i32_0 : i32, i32
  }
  func.func @transform_6(%arg0: i32, %arg1: i32) -> (i32, i32) {
    %c0_i32 = arith.constant 0 : i32
    %c0_i32_0 = arith.constant 0 : i32
    %c0_i32_1 = arith.constant 0 : i32
    return %c0_i32, %c0_i32_0 : i32, i32
  }
  func.func @transform_7(%arg0: i32, %arg1: i32) -> (i32, i32) {
    %c0_i32 = arith.constant 0 : i32
    %c0_i32_0 = arith.constant 0 : i32
    %c0_i32_1 = arith.constant 0 : i32
    return %c0_i32, %c0_i32_0 : i32, i32
  }
  func.func @transform_8(%arg0: i32, %arg1: i32) -> (i32, i32) {
    %c0_i32 = arith.constant 0 : i32
    %c0_i32_0 = arith.constant 0 : i32
    %c0_i32_1 = arith.constant 0 : i32
    return %c0_i32, %c0_i32_0 : i32, i32
  }
  func.func @transform_9(%arg0: i32, %arg1: i32) -> (i32, i32, i32) {
    %c0_i32 = arith.constant 0 : i32
    %c0_i32_0 = arith.constant 0 : i32
    return %arg0, %arg1, %c0_i32 : i32, i32, i32
  }
}

module attributes {stable_mosaic.version = 11 : i64} {
  func.func @_ffn_kernel(%arg0: i32, %arg1: memref<16x32xf32, #tpu.memory_space<vmem>>, %arg2: memref<16x1xf32, #tpu.memory_space<vmem>>, %arg3: memref<32x128xf32, #tpu.memory_space<vmem>>, %arg4: memref<1x128xf32, #tpu.memory_space<vmem>>, %arg5: memref<128x32xf32, #tpu.memory_space<vmem>>, %arg6: memref<1x32xf32, #tpu.memory_space<vmem>>, %arg7: memref<1x32xf32, #tpu.memory_space<vmem>>, %arg8: memref<1x32xf32, #tpu.memory_space<vmem>>, %arg9: memref<16x32xf32, #tpu.memory_space<vmem>>) attributes {dimension_semantics = [#tpu.dimension_semantics<parallel>], iteration_bounds = array<i64: 1>, scalar_prefetch = 0 : i64, scratch_operands = 0 : i64, tpu.core_type = #tpu.core_type<tc>, window_params = [{transform_indices = @transform_0, window_bounds = array<i64: 16, 32>}, {transform_indices = @transform_1, window_bounds = array<i64: 16, 1>}, {pipeline_mode = #tpu.pipeline_mode<synchronous>, transform_indices = @transform_2, window_bounds = array<i64: 32, 128>}, {pipeline_mode = #tpu.pipeline_mode<synchronous>, transform_indices = @transform_3, window_bounds = array<i64: 1, 128>}, {pipeline_mode = #tpu.pipeline_mode<synchronous>, transform_indices = @transform_4, window_bounds = array<i64: 128, 32>}, {pipeline_mode = #tpu.pipeline_mode<synchronous>, transform_indices = @transform_5, window_bounds = array<i64: 1, 32>}, {pipeline_mode = #tpu.pipeline_mode<synchronous>, transform_indices = @transform_6, window_bounds = array<i64: 1, 32>}, {pipeline_mode = #tpu.pipeline_mode<synchronous>, transform_indices = @transform_7, window_bounds = array<i64: 1, 32>}, {transform_indices = @transform_8, window_bounds = array<i64: 16, 32>}]} {
    %c0 = arith.constant 0 : index
    %c0_0 = arith.constant 0 : index
    %0 = vector.load %arg1[%c0, %c0_0] : memref<16x32xf32, #tpu.memory_space<vmem>>, vector<16x32xf32>
    %c0_1 = arith.constant 0 : index
    %c0_2 = arith.constant 0 : index
    %1 = vector.load %arg3[%c0_1, %c0_2] : memref<32x128xf32, #tpu.memory_space<vmem>>, vector<32x128xf32>
    %cst = arith.constant dense<0.000000e+00> : vector<16x128xf32>
    %2 = tpu.matmul %0, %1, %cst {dimension_numbers = #tpu.dot_dimension_numbers<[1], [0], [0], [1], [0, 0, 1, 1], [], []>} : vector<16x32xf32>, vector<32x128xf32>, vector<16x128xf32> -> vector<16x128xf32>
    %c0_3 = arith.constant 0 : index
    %c0_4 = arith.constant 0 : index
    %3 = vector.load %arg4[%c0_3, %c0_4] : memref<1x128xf32, #tpu.memory_space<vmem>>, vector<1x128xf32>
    %4 = vector.broadcast %3 : vector<1x128xf32> to vector<16x128xf32>
    %5 = arith.addf %2, %4 : vector<16x128xf32>
    %cst_5 = arith.constant 0.000000e+00 : f32
    %6 = vector.broadcast %cst_5 : f32 to vector<16x128xf32>
    %7 = arith.maximumf %5, %6 : vector<16x128xf32>
    %c0_6 = arith.constant 0 : index
    %c0_7 = arith.constant 0 : index
    %8 = vector.load %arg5[%c0_6, %c0_7] : memref<128x32xf32, #tpu.memory_space<vmem>>, vector<128x32xf32>
    %cst_8 = arith.constant dense<0.000000e+00> : vector<16x32xf32>
    %9 = tpu.matmul %7, %8, %cst_8 {dimension_numbers = #tpu.dot_dimension_numbers<[1], [0], [0], [1], [0, 0, 1, 1], [], []>} : vector<16x128xf32>, vector<128x32xf32>, vector<16x32xf32> -> vector<16x32xf32>
    %c0_9 = arith.constant 0 : index
    %c0_10 = arith.constant 0 : index
    %10 = vector.load %arg6[%c0_9, %c0_10] : memref<1x32xf32, #tpu.memory_space<vmem>>, vector<1x32xf32>
    %11 = vector.broadcast %10 : vector<1x32xf32> to vector<16x32xf32>
    %12 = arith.addf %9, %11 : vector<16x32xf32>
    %13 = arith.addf %12, %0 : vector<16x32xf32>
    %cst_11 = arith.constant dense<0.000000e+00> : vector<16xf32>
    %14 = vector.multi_reduction <add>, %13, %cst_11 [1] : vector<16x32xf32> to vector<16xf32>
    %15 = vector.shape_cast %14 : vector<16xf32> to vector<16x1xf32>
    %cst_12 = arith.constant 3.200000e+01 : f32
    %16 = vector.broadcast %cst_12 : f32 to vector<16x1xf32>
    %17 = arith.divf %15, %16 : vector<16x1xf32>
    %18 = vector.broadcast %17 : vector<16x1xf32> to vector<16x32xf32>
    %19 = arith.subf %13, %18 : vector<16x32xf32>
    %20 = arith.mulf %19, %19 : vector<16x32xf32>
    %cst_13 = arith.constant dense<0.000000e+00> : vector<16xf32>
    %21 = vector.multi_reduction <add>, %20, %cst_13 [1] : vector<16x32xf32> to vector<16xf32>
    %22 = vector.shape_cast %21 : vector<16xf32> to vector<16x1xf32>
    %cst_14 = arith.constant 3.200000e+01 : f32
    %23 = vector.broadcast %cst_14 : f32 to vector<16x1xf32>
    %24 = arith.divf %22, %23 : vector<16x1xf32>
    %25 = vector.broadcast %17 : vector<16x1xf32> to vector<16x32xf32>
    %26 = arith.subf %13, %25 : vector<16x32xf32>
    %cst_15 = arith.constant 9.99999974E-6 : f32
    %27 = vector.broadcast %cst_15 : f32 to vector<16x1xf32>
    %28 = arith.addf %24, %27 : vector<16x1xf32>
    %29 = math.rsqrt %28 : vector<16x1xf32>
    %30 = vector.broadcast %29 : vector<16x1xf32> to vector<16x32xf32>
    %31 = arith.mulf %26, %30 : vector<16x32xf32>
    %c0_16 = arith.constant 0 : index
    %c0_17 = arith.constant 0 : index
    %32 = vector.load %arg7[%c0_16, %c0_17] : memref<1x32xf32, #tpu.memory_space<vmem>>, vector<1x32xf32>
    %33 = vector.broadcast %32 : vector<1x32xf32> to vector<16x32xf32>
    %34 = arith.mulf %31, %33 : vector<16x32xf32>
    %c0_18 = arith.constant 0 : index
    %c0_19 = arith.constant 0 : index
    %35 = vector.load %arg8[%c0_18, %c0_19] : memref<1x32xf32, #tpu.memory_space<vmem>>, vector<1x32xf32>
    %36 = vector.broadcast %35 : vector<1x32xf32> to vector<16x32xf32>
    %37 = arith.addf %34, %36 : vector<16x32xf32>
    %c0_20 = arith.constant 0 : index
    %c0_21 = arith.constant 0 : index
    %38 = vector.load %arg2[%c0_20, %c0_21] : memref<16x1xf32, #tpu.memory_space<vmem>>, vector<16x1xf32>
    %39 = vector.broadcast %38 : vector<16x1xf32> to vector<16x32xf32>
    %40 = arith.mulf %37, %39 : vector<16x32xf32>
    %c0_22 = arith.constant 0 : index
    %c0_23 = arith.constant 0 : index
    %41 = vector.load %arg9[%c0_22, %c0_23] : memref<16x32xf32, #tpu.memory_space<vmem>>, vector<16x32xf32>
    tpu.vector_store %arg9[%c0_22, %c0_23], %40 {strides = array<i32>} : memref<16x32xf32, #tpu.memory_space<vmem>>, vector<16x32xf32>,
    return
  }
  func.func @transform_0(%arg0: i32) -> (i32, i32) {
    %c0_i32 = arith.constant 0 : i32
    %c0_i32_0 = arith.constant 0 : i32
    return %arg0, %c0_i32 : i32, i32
  }
  func.func @transform_1(%arg0: i32) -> (i32, i32) {
    %c0_i32 = arith.constant 0 : i32
    %c0_i32_0 = arith.constant 0 : i32
    return %arg0, %c0_i32 : i32, i32
  }
  func.func @transform_2(%arg0: i32) -> (i32, i32) {
    %c0_i32 = arith.constant 0 : i32
    %c0_i32_0 = arith.constant 0 : i32
    %c0_i32_1 = arith.constant 0 : i32
    return %c0_i32, %c0_i32_0 : i32, i32
  }
  func.func @transform_3(%arg0: i32) -> (i32, i32) {
    %c0_i32 = arith.constant 0 : i32
    %c0_i32_0 = arith.constant 0 : i32
    %c0_i32_1 = arith.constant 0 : i32
    return %c0_i32, %c0_i32_0 : i32, i32
  }
  func.func @transform_4(%arg0: i32) -> (i32, i32) {
    %c0_i32 = arith.constant 0 : i32
    %c0_i32_0 = arith.constant 0 : i32
    %c0_i32_1 = arith.constant 0 : i32
    return %c0_i32, %c0_i32_0 : i32, i32
  }
  func.func @transform_5(%arg0: i32) -> (i32, i32) {
    %c0_i32 = arith.constant 0 : i32
    %c0_i32_0 = arith.constant 0 : i32
    %c0_i32_1 = arith.constant 0 : i32
    return %c0_i32, %c0_i32_0 : i32, i32
  }
  func.func @transform_6(%arg0: i32) -> (i32, i32) {
    %c0_i32 = arith.constant 0 : i32
    %c0_i32_0 = arith.constant 0 : i32
    %c0_i32_1 = arith.constant 0 : i32
    return %c0_i32, %c0_i32_0 : i32, i32
  }
  func.func @transform_7(%arg0: i32) -> (i32, i32) {
    %c0_i32 = arith.constant 0 : i32
    %c0_i32_0 = arith.constant 0 : i32
    %c0_i32_1 = arith.constant 0 : i32
    return %c0_i32, %c0_i32_0 : i32, i32
  }
  func.func @transform_8(%arg0: i32) -> (i32, i32) {
    %c0_i32 = arith.constant 0 : i32
    %c0_i32_0 = arith.constant 0 : i32
    return %arg0, %c0_i32 : i32, i32
  }
}

module attributes {stable_mosaic.version = 11 : i64} {
  func.func @_mha_kernel(%arg0: i32, %arg1: i32, %arg2: memref<1x8x32xf32, #tpu.memory_space<vmem>>, %arg3: memref<1x10x64xf32, #tpu.memory_space<vmem>>, %arg4: memref<1x1x10xf32, #tpu.memory_space<vmem>>, %arg5: memref<1x8x32xf32, #tpu.memory_space<vmem>>, %arg6: memref<1x8x1xf32, #tpu.memory_space<vmem>>, %arg7: memref<32x32xf32, #tpu.memory_space<vmem>>, %arg8: memref<1x32xf32, #tpu.memory_space<vmem>>, %arg9: memref<1x32xf32, #tpu.memory_space<vmem>>, %arg10: memref<1x32xf32, #tpu.memory_space<vmem>>, %arg11: memref<1x8x32xf32, #tpu.memory_space<vmem>>, %arg12: memref<8x32xf32, #tpu.memory_space<vmem>>) attributes {dimension_semantics = [#tpu.dimension_semantics<parallel>, #tpu.dimension_semantics<parallel>], iteration_bounds = array<i64: 2, 1>, scalar_prefetch = 0 : i64, scratch_operands = 1 : i64, tpu.core_type = #tpu.core_type<tc>, window_params = [{transform_indices = @transform_0, window_bounds = array<i64: 1, 8, 32>}, {transform_indices = @transform_1, window_bounds = array<i64: 1, 10, 64>}, {transform_indices = @transform_2, window_bounds = array<i64: 1, 1, 10>}, {transform_indices = @transform_3, window_bounds = array<i64: 1, 8, 32>}, {transform_indices = @transform_4, window_bounds = array<i64: 1, 8, 1>}, {pipeline_mode = #tpu.pipeline_mode<synchronous>, transform_indices = @transform_5, window_bounds = array<i64: 32, 32>}, {pipeline_mode = #tpu.pipeline_mode<synchronous>, transform_indices = @transform_6, window_bounds = array<i64: 1, 32>}, {pipeline_mode = #tpu.pipeline_mode<synchronous>, transform_indices = @transform_7, window_bounds = array<i64: 1, 32>}, {pipeline_mode = #tpu.pipeline_mode<synchronous>, transform_indices = @transform_8, window_bounds = array<i64: 1, 32>}, {transform_indices = @transform_9, window_bounds = array<i64: 1, 8, 32>}]} {
    %c0 = arith.constant 0 : index
    %c0_0 = arith.constant 0 : index
    %c0_1 = arith.constant 0 : index
    %0 = vector.load %arg4[%c0, %c0_0, %c0_1] : memref<1x1x10xf32, #tpu.memory_space<vmem>>, vector<1x1x10xf32>
    %1 = vector.shape_cast %0 : vector<1x1x10xf32> to vector<1x10xf32>
    %c0_2 = arith.constant 0 : index
    %c0_3 = arith.constant 0 : index
    %c0_4 = arith.constant 0 : index
    %2 = vector.load %arg2[%c0_2, %c0_3, %c0_4] : memref<1x8x32xf32, #tpu.memory_space<vmem>>, vector<1x8x16xf32>
    %3 = vector.shape_cast %2 : vector<1x8x16xf32> to vector<8x16xf32>
    %c0_5 = arith.constant 0 : index
    %c0_6 = arith.constant 0 : index
    %c0_7 = arith.constant 0 : index
    %4 = vector.load %arg3[%c0_5, %c0_6, %c0_7] : memref<1x10x64xf32, #tpu.memory_space<vmem>>, vector<1x10x16xf32>
    %5 = vector.shape_cast %4 : vector<1x10x16xf32> to vector<10x16xf32>
    %c0_8 = arith.constant 0 : index
    %c0_9 = arith.constant 0 : index
    %c32 = arith.constant 32 : index
    %6 = vector.load %arg3[%c0_8, %c0_9, %c32] : memref<1x10x64xf32, #tpu.memory_space<vmem>>, vector<1x10x16xf32>
    %7 = vector.shape_cast %6 : vector<1x10x16xf32> to vector<10x16xf32>
    %cst = arith.constant dense<0.000000e+00> : vector<8x10xf32>
    %8 = tpu.matmul %3, %5, %cst {dimension_numbers = #tpu.dot_dimension_numbers<[1], [1], [0], [0], [0, 0, 1, 0], [], []>} : vector<8x16xf32>, vector<10x16xf32>, vector<8x10xf32> -> vector<8x10xf32>
    %cst_10 = arith.constant 0.000000e+00 : f32
    %9 = vector.broadcast %cst_10 : f32 to vector<1x10xf32>
    %10 = arith.cmpf ogt, %1, %9 : vector<1x10xf32>
    %cst_11 = arith.constant -1.000000e+30 : f32
    %11 = vector.shape_cast %10 : vector<1x10xi1> to vector<1x10xi1>
    %12 = vector.broadcast %11 : vector<1x10xi1> to vector<8x10xi1>
    %13 = vector.broadcast %cst_11 : f32 to vector<8x10xf32>
    %14 = arith.select %12, %13, %8 : vector<8x10xi1>, vector<8x10xf32>
    %cst_12 = arith.constant dense<0xFF800000> : vector<8xf32>
    %15 = vector.multi_reduction <maximumf>, %14, %cst_12 [1] : vector<8x10xf32> to vector<8xf32>
    %16 = vector.shape_cast %15 : vector<8xf32> to vector<8x1xf32>
    %17 = vector.broadcast %16 : vector<8x1xf32> to vector<8x10xf32>
    %18 = arith.subf %14, %17 : vector<8x10xf32>
    %19 = math.exp %18 : vector<8x10xf32>
    %cst_13 = arith.constant dense<0.000000e+00> : vector<8xf32>
    %20 = vector.multi_reduction <add>, %19, %cst_13 [1] : vector<8x10xf32> to vector<8xf32>
    %21 = vector.shape_cast %20 : vector<8xf32> to vector<8x1xf32>
    %22 = tpu.reciprocal %21 {approx = true} : vector<8x1xf32> -> vector<8x1xf32>
    %23 = arith.mulf %21, %22 : vector<8x1xf32>
    %cst_14 = arith.constant 2.000000e+00 : f32
    %24 = vector.broadcast %cst_14 : f32 to vector<8x1xf32>
    %25 = arith.subf %24, %23 : vector<8x1xf32>
    %26 = arith.mulf %22, %25 : vector<8x1xf32>
    %27 = vector.broadcast %26 : vector<8x1xf32> to vector<8x10xf32>
    %28 = arith.mulf %19, %27 : vector<8x10xf32>
    %cst_15 = arith.constant dense<0.000000e+00> : vector<8x16xf32>
    %29 = tpu.matmul %28, %7, %cst_15 {dimension_numbers = #tpu.dot_dimension_numbers<[1], [0], [0], [1], [0, 0, 1, 1], [], []>} : vector<8x10xf32>, vector<10x16xf32>, vector<8x16xf32> -> vector<8x16xf32>
    %c0_16 = arith.constant 0 : index
    %c0_17 = arith.constant 0 : index
    %30 = vector.load %arg12[%c0_16, %c0_17] : memref<8x32xf32, #tpu.memory_space<vmem>>, vector<8x16xf32>
    tpu.vector_store %arg12[%c0_16, %c0_17], %29 {strides = array<i32>} : memref<8x32xf32, #tpu.memory_space<vmem>>, vector<8x16xf32>,
    %c0_18 = arith.constant 0 : index
    %c0_19 = arith.constant 0 : index
    %c16 = arith.constant 16 : index
    %31 = vector.load %arg2[%c0_18, %c0_19, %c16] : memref<1x8x32xf32, #tpu.memory_space<vmem>>, vector<1x8x16xf32>
    %32 = vector.shape_cast %31 : vector<1x8x16xf32> to vector<8x16xf32>
    %c0_20 = arith.constant 0 : index
    %c0_21 = arith.constant 0 : index
    %c16_22 = arith.constant 16 : index
    %33 = vector.load %arg3[%c0_20, %c0_21, %c16_22] : memref<1x10x64xf32, #tpu.memory_space<vmem>>, vector<1x10x16xf32>
    %34 = vector.shape_cast %33 : vector<1x10x16xf32> to vector<10x16xf32>
    %c0_23 = arith.constant 0 : index
    %c0_24 = arith.constant 0 : index
    %c48 = arith.constant 48 : index
    %35 = vector.load %arg3[%c0_23, %c0_24, %c48] : memref<1x10x64xf32, #tpu.memory_space<vmem>>, vector<1x10x16xf32>
    %36 = vector.shape_cast %35 : vector<1x10x16xf32> to vector<10x16xf32>
    %cst_25 = arith.constant dense<0.000000e+00> : vector<8x10xf32>
    %37 = tpu.matmul %32, %34, %cst_25 {dimension_numbers = #tpu.dot_dimension_numbers<[1], [1], [0], [0], [0, 0, 1, 0], [], []>} : vector<8x16xf32>, vector<10x16xf32>, vector<8x10xf32> -> vector<8x10xf32>
    %cst_26 = arith.constant 0.000000e+00 : f32
    %38 = vector.broadcast %cst_26 : f32 to vector<1x10xf32>
    %39 = arith.cmpf ogt, %1, %38 : vector<1x10xf32>
    %cst_27 = arith.constant -1.000000e+30 : f32
    %40 = vector.shape_cast %39 : vector<1x10xi1> to vector<1x10xi1>
    %41 = vector.broadcast %40 : vector<1x10xi1> to vector<8x10xi1>
    %42 = vector.broadcast %cst_27 : f32 to vector<8x10xf32>
    %43 = arith.select %41, %42, %37 : vector<8x10xi1>, vector<8x10xf32>
    %cst_28 = arith.constant dense<0xFF800000> : vector<8xf32>
    %44 = vector.multi_reduction <maximumf>, %43, %cst_28 [1] : vector<8x10xf32> to vector<8xf32>
    %45 = vector.shape_cast %44 : vector<8xf32> to vector<8x1xf32>
    %46 = vector.broadcast %45 : vector<8x1xf32> to vector<8x10xf32>
    %47 = arith.subf %43, %46 : vector<8x10xf32>
    %48 = math.exp %47 : vector<8x10xf32>
    %cst_29 = arith.constant dense<0.000000e+00> : vector<8xf32>
    %49 = vector.multi_reduction <add>, %48, %cst_29 [1] : vector<8x10xf32> to vector<8xf32>
    %50 = vector.shape_cast %49 : vector<8xf32> to vector<8x1xf32>
    %51 = tpu.reciprocal %50 {approx = true} : vector<8x1xf32> -> vector<8x1xf32>
    %52 = arith.mulf %50, %51 : vector<8x1xf32>
    %cst_30 = arith.constant 2.000000e+00 : f32
    %53 = vector.broadcast %cst_30 : f32 to vector<8x1xf32>
    %54 = arith.subf %53, %52 : vector<8x1xf32>
    %55 = arith.mulf %51, %54 : vector<8x1xf32>
    %56 = vector.broadcast %55 : vector<8x1xf32> to vector<8x10xf32>
    %57 = arith.mulf %48, %56 : vector<8x10xf32>
    %cst_31 = arith.constant dense<0.000000e+00> : vector<8x16xf32>
    %58 = tpu.matmul %57, %36, %cst_31 {dimension_numbers = #tpu.dot_dimension_numbers<[1], [0], [0], [1], [0, 0, 1, 1], [], []>} : vector<8x10xf32>, vector<10x16xf32>, vector<8x16xf32> -> vector<8x16xf32>
    %c0_32 = arith.constant 0 : index
    %c16_33 = arith.constant 16 : index
    %59 = vector.load %arg12[%c0_32, %c16_33] : memref<8x32xf32, #tpu.memory_space<vmem>>, vector<8x16xf32>
    tpu.vector_store %arg12[%c0_32, %c16_33], %58 {strides = array<i32>} : memref<8x32xf32, #tpu.memory_space<vmem>>, vector<8x16xf32>,
    %c0_34 = arith.constant 0 : index
    %c0_35 = arith.constant 0 : index
    %60 = vector.load %arg12[%c0_34, %c0_35] : memref<8x32xf32, #tpu.memory_space<vmem>>, vector<8x32xf32>
    %c0_36 = arith.constant 0 : index
    %c0_37 = arith.constant 0 : index
    %61 = vector.load %arg7[%c0_36, %c0_37] : memref<32x32xf32, #tpu.memory_space<vmem>>, vector<32x32xf32>
    %cst_38 = arith.constant dense<0.000000e+00> : vector<8x32xf32>
    %62 = tpu.matmul %60, %61, %cst_38 {dimension_numbers = #tpu.dot_dimension_numbers<[1], [0], [0], [1], [0, 0, 1, 1], [], []>} : vector<8x32xf32>, vector<32x32xf32>, vector<8x32xf32> -> vector<8x32xf32>
    %c0_39 = arith.constant 0 : index
    %c0_40 = arith.constant 0 : index
    %63 = vector.load %arg8[%c0_39, %c0_40] : memref<1x32xf32, #tpu.memory_space<vmem>>, vector<1x32xf32>
    %64 = vector.broadcast %63 : vector<1x32xf32> to vector<8x32xf32>
    %65 = arith.addf %62, %64 : vector<8x32xf32>
    %c0_41 = arith.constant 0 : index
    %c0_42 = arith.constant 0 : index
    %c0_43 = arith.constant 0 : index
    %66 = vector.load %arg5[%c0_41, %c0_42, %c0_43] : memref<1x8x32xf32, #tpu.memory_space<vmem>>, vector<1x8x32xf32>
    %67 = vector.shape_cast %66 : vector<1x8x32xf32> to vector<8x32xf32>
    %68 = arith.addf %65, %67 : vector<8x32xf32>
    %cst_44 = arith.constant dense<0.000000e+00> : vector<8xf32>
    %69 = vector.multi_reduction <add>, %68, %cst_44 [1] : vector<8x32xf32> to vector<8xf32>
    %70 = vector.shape_cast %69 : vector<8xf32> to vector<8x1xf32>
    %cst_45 = arith.constant 3.200000e+01 : f32
    %71 = vector.broadcast %cst_45 : f32 to vector<8x1xf32>
    %72 = arith.divf %70, %71 : vector<8x1xf32>
    %73 = vector.broadcast %72 : vector<8x1xf32> to vector<8x32xf32>
    %74 = arith.subf %68, %73 : vector<8x32xf32>
    %75 = arith.mulf %74, %74 : vector<8x32xf32>
    %cst_46 = arith.constant dense<0.000000e+00> : vector<8xf32>
    %76 = vector.multi_reduction <add>, %75, %cst_46 [1] : vector<8x32xf32> to vector<8xf32>
    %77 = vector.shape_cast %76 : vector<8xf32> to vector<8x1xf32>
    %cst_47 = arith.constant 3.200000e+01 : f32
    %78 = vector.broadcast %cst_47 : f32 to vector<8x1xf32>
    %79 = arith.divf %77, %78 : vector<8x1xf32>
    %80 = vector.broadcast %72 : vector<8x1xf32> to vector<8x32xf32>
    %81 = arith.subf %68, %80 : vector<8x32xf32>
    %cst_48 = arith.constant 9.99999974E-6 : f32
    %82 = vector.broadcast %cst_48 : f32 to vector<8x1xf32>
    %83 = arith.addf %79, %82 : vector<8x1xf32>
    %84 = math.rsqrt %83 : vector<8x1xf32>
    %85 = vector.broadcast %84 : vector<8x1xf32> to vector<8x32xf32>
    %86 = arith.mulf %81, %85 : vector<8x32xf32>
    %c0_49 = arith.constant 0 : index
    %c0_50 = arith.constant 0 : index
    %87 = vector.load %arg9[%c0_49, %c0_50] : memref<1x32xf32, #tpu.memory_space<vmem>>, vector<1x32xf32>
    %88 = vector.broadcast %87 : vector<1x32xf32> to vector<8x32xf32>
    %89 = arith.mulf %86, %88 : vector<8x32xf32>
    %c0_51 = arith.constant 0 : index
    %c0_52 = arith.constant 0 : index
    %90 = vector.load %arg10[%c0_51, %c0_52] : memref<1x32xf32, #tpu.memory_space<vmem>>, vector<1x32xf32>
    %91 = vector.broadcast %90 : vector<1x32xf32> to vector<8x32xf32>
    %92 = arith.addf %89, %91 : vector<8x32xf32>
    %c0_53 = arith.constant 0 : index
    %c0_54 = arith.constant 0 : index
    %c0_55 = arith.constant 0 : index
    %93 = vector.load %arg6[%c0_53, %c0_54, %c0_55] : memref<1x8x1xf32, #tpu.memory_space<vmem>>, vector<1x8x1xf32>
    %94 = vector.shape_cast %93 : vector<1x8x1xf32> to vector<8x1xf32>
    %95 = vector.broadcast %94 : vector<8x1xf32> to vector<8x32xf32>
    %96 = arith.mulf %92, %95 : vector<8x32xf32>
    %c0_56 = arith.constant 0 : index
    %c0_57 = arith.constant 0 : index
    %c0_58 = arith.constant 0 : index
    %97 = vector.load %arg11[%c0_56, %c0_57, %c0_58] : memref<1x8x32xf32, #tpu.memory_space<vmem>>, vector<1x8x32xf32>
    %98 = vector.shape_cast %97 : vector<1x8x32xf32> to vector<8x32xf32>
    %99 = vector.shape_cast %96 : vector<8x32xf32> to vector<1x8x32xf32>
    tpu.vector_store %arg11[%c0_56, %c0_57, %c0_58], %99 {strides = array<i32>} : memref<1x8x32xf32, #tpu.memory_space<vmem>>, vector<1x8x32xf32>,
    return
  }
  func.func @transform_0(%arg0: i32, %arg1: i32) -> (i32, i32, i32) {
    %c0_i32 = arith.constant 0 : i32
    %c0_i32_0 = arith.constant 0 : i32
    return %arg0, %arg1, %c0_i32 : i32, i32, i32
  }
  func.func @transform_1(%arg0: i32, %arg1: i32) -> (i32, i32, i32) {
    %c0_i32 = arith.constant 0 : i32
    %c0_i32_0 = arith.constant 0 : i32
    %c0_i32_1 = arith.constant 0 : i32
    return %arg0, %c0_i32, %c0_i32_0 : i32, i32, i32
  }
  func.func @transform_2(%arg0: i32, %arg1: i32) -> (i32, i32, i32) {
    %c0_i32 = arith.constant 0 : i32
    %c0_i32_0 = arith.constant 0 : i32
    %c0_i32_1 = arith.constant 0 : i32
    return %arg0, %c0_i32, %c0_i32_0 : i32, i32, i32
  }
  func.func @transform_3(%arg0: i32, %arg1: i32) -> (i32, i32, i32) {
    %c0_i32 = arith.constant 0 : i32
    %c0_i32_0 = arith.constant 0 : i32
    return %arg0, %arg1, %c0_i32 : i32, i32, i32
  }
  func.func @transform_4(%arg0: i32, %arg1: i32) -> (i32, i32, i32) {
    %c0_i32 = arith.constant 0 : i32
    %c0_i32_0 = arith.constant 0 : i32
    return %arg0, %arg1, %c0_i32 : i32, i32, i32
  }
  func.func @transform_5(%arg0: i32, %arg1: i32) -> (i32, i32) {
    %c0_i32 = arith.constant 0 : i32
    %c0_i32_0 = arith.constant 0 : i32
    %c0_i32_1 = arith.constant 0 : i32
    return %c0_i32, %c0_i32_0 : i32, i32
  }
  func.func @transform_6(%arg0: i32, %arg1: i32) -> (i32, i32) {
    %c0_i32 = arith.constant 0 : i32
    %c0_i32_0 = arith.constant 0 : i32
    %c0_i32_1 = arith.constant 0 : i32
    return %c0_i32, %c0_i32_0 : i32, i32
  }
  func.func @transform_7(%arg0: i32, %arg1: i32) -> (i32, i32) {
    %c0_i32 = arith.constant 0 : i32
    %c0_i32_0 = arith.constant 0 : i32
    %c0_i32_1 = arith.constant 0 : i32
    return %c0_i32, %c0_i32_0 : i32, i32
  }
  func.func @transform_8(%arg0: i32, %arg1: i32) -> (i32, i32) {
    %c0_i32 = arith.constant 0 : i32
    %c0_i32_0 = arith.constant 0 : i32
    %c0_i32_1 = arith.constant 0 : i32
    return %c0_i32, %c0_i32_0 : i32, i32
  }
  func.func @transform_9(%arg0: i32, %arg1: i32) -> (i32, i32, i32) {
    %c0_i32 = arith.constant 0 : i32
    %c0_i32_0 = arith.constant 0 : i32
    return %arg0, %arg1, %c0_i32 : i32, i32, i32
  }
}

</mosaic_0001>

<llo_original>
// kernel: decoder_forward.15
$region0: #{decoder_forward.15}
  #allocation0 [shape = 'u32[]', space=smem, size = 0x4, offset = 0x4, fixed_abs, tag = 'smem constant byte address 0x4 - core index']
  #allocation1 [shape = 'u32[144,128]{1,0:T(1,128)}', space=vmem, size = 0x12000, scoped, tag = 'internal scratch']
  %s0 = inlined_call_operand.vmem [shape: f32[20,32], index: 0, kind: input, shape index: {}]
  %s1 = inlined_call_operand.vmem [shape: f32[32,64], index: 1, kind: input, shape index: {}]
  %s2 = inlined_call_operand.vmem [shape: f32[1,64], index: 2, kind: input, shape index: {}]
  %s3 = inlined_call_operand.vmem [shape: f32[20,64], index: 3, kind: output, shape index: {}]
  %s4 = sld [smem:[#allocation0]]
  $region22: #{decoder_forward.15} parent=0
    _
  %s6 = ssub.s32 1, %s4
  %s7 = scalar_select 0, %s6, %s4
  // Predicated region
  $region2: #{decoder_forward.15} parent=0 // pred_check
    _
  $region3: #{decoder_forward.15} parent=0 // pred_check_branch
    %9 = sbr.rel (0) target = $region5
  $region4: #{decoder_forward.15} parent=0 // pred_region
    _
  $region5: #{decoder_forward.15} parent=0 // pred_fallthru
    _
  // Predicated region
  $region6: #{decoder_forward.15} parent=0 // pred_check
    _
  $region7: #{decoder_forward.15} parent=0 // pred_check_branch
    %11 = sbr.rel (0) target = $region9
  $region8: #{decoder_forward.15} parent=0 // pred_region
    _
  $region9: #{decoder_forward.15} parent=0 // pred_fallthru
    _
  // Predicated region
  $region10: #{decoder_forward.15} parent=0 // pred_check
    _
  $region11: #{decoder_forward.15} parent=0 // pred_check_branch
    %13 = sbr.rel (0) target = $region13
  $region12: #{decoder_forward.15} parent=0 // pred_region
    _
  $region13: #{decoder_forward.15} parent=0 // pred_fallthru
    _
  %v14 = vld [vmem:[%s0] sm:$0xff]
  %v15 = vld [vmem:[%s0 + $0x8] sm:$0xff]
  %v16 = vld [vmem:[%s0 + $0x10] sm:$0xf]
  %v17 = vld [vmem:[%s1] sm:$0xff]
  %v18 = vld [vmem:[%s1 + $0x8] sm:$0xff]
  %v19 = vld [vmem:[%s1 + $0x10] sm:$0xff]
  %v20 = vld [vmem:[%s1 + $0x18] sm:$0xff]
  %v21 = vld [vmem:[%s2] sm:$0x1]
  %v23 = vlaneseq
  %v24 = vshrl.u32 %v23, 7
  %v25 = vsub.s32 0, %v24
  %v26 = vrot.slane %v21, %v25
  %vm28 = vcmask 261120
  %v30 = vsel %vm28, %v14, 0
  %v33 = vsel %vm28, %v15, 0
  %v36 = vsel %vm28, %v16, 0
  %38 = vmatprep.subr.mxu0 0.0
  %39 = vmatpush1.msra.mxu0 %v17
  %40 = vmatprep.subr.mxu0 0.0
  %41 = vmatpush1.msra.mxu0 %v18
  %42 = vmatprep.subr.mxu0 0.0
  %43 = vmatpush1.msra.mxu0 %v19
  %44 = vmatprep.subr.mxu0 0.0
  %45 = vmatpush1.msra.mxu0 %v20
  %46 = vmatprep.subr.mxu0 0.0
  %47 = vmatpush1.msra.mxu0 0.0
  %48 = vmatprep.subr.mxu0 0.0
  %49 = vmatpush1.msra.mxu0 0.0
  %50 = vmatprep.subr.mxu0 0.0
  %51 = vmatpush1.msra.mxu0 0.0
  %52 = vmatprep.subr.mxu0 0.0
  %53 = vmatpush1.msra.mxu0 0.0
  %54 = vmatprep.subr.mxu0 0.0
  %55 = vmatpush1.msra.mxu0 0.0
  %56 = vmatprep.subr.mxu0 0.0
  %57 = vmatpush1.msra.mxu0 0.0
  %58 = vmatprep.subr.mxu0 0.0
  %59 = vmatpush1.msra.mxu0 0.0
  %60 = vmatprep.subr.mxu0 0.0
  %61 = vmatpush1.msra.mxu0 0.0
  %62 = vmatprep.subr.mxu0 0.0
  %63 = vmatpush1.msra.mxu0 0.0
  %64 = vmatprep.subr.mxu0 0.0
  %65 = vmatpush1.msra.mxu0 0.0
  %66 = vmatprep.subr.mxu0 0.0
  %67 = vmatpush1.msra.mxu0 0.0
  %68 = vmatprep.subr.mxu0 0.0
  %69 = vmatpush1.msra.mxu0 0.0
  %70 = vmatprep.subr.mxu0 0.0
  %71 = vmatpush1.msra.mxu0 0.0
  %72 = vmatprep.subr.mxu0 0.0
  %73 = vmatpush1.msra.mxu0 0.0
  %74 = vmatprep.subr.mxu0 0.0
  %75 = vmatpush1.msra.mxu0 0.0
  %76 = vmatprep.subr.mxu0 0.0
  %77 = vmatpush1.msra.mxu0 0.0
  %78 = vmatprep.subr.mxu0 0.0
  %79 = vmatpush1.msra.mxu0 0.0
  %80 = vmatprep.subr.mxu0 0.0
  %81 = vmatpush1.msra.mxu0 0.0
  %82 = vmatprep.subr.mxu0 0.0
  %83 = vmatpush1.msra.mxu0 0.0
  %84 = vmatprep.subr.mxu0 0.0
  %85 = vmatpush1.msra.mxu0 0.0
  %86 = vmatprep.subr.mxu0 0.0
  %87 = vmatpush1.msra.mxu0 0.0
  %88 = vmatprep.subr.mxu0 0.0
  %89 = vmatpush1.msra.mxu0 0.0
  %90 = vmatprep.subr.mxu0 0.0
  %91 = vmatpush1.msra.mxu0 0.0
  %92 = vmatprep.subr.mxu0 0.0
  %93 = vmatpush1.msra.mxu0 0.0
  %94 = vmatprep.subr.mxu0 0.0
  %95 = vmatpush1.msra.mxu0 0.0
  %96 = vmatprep.subr.mxu0 0.0
  %97 = vmatpush1.msra.mxu0 0.0
  %98 = vmatprep.subr.mxu0 0.0
  %99 = vmatpush1.msra.mxu0 0.0
  %100 = vmatprep.subr.mxu0 0.0
  %101 = vmatpush1.msra.mxu0 0.0
  %102 = vmatprep.mubr.f32.mxu0 0.0
  %103 = vmatmul.mubr.f32.gmra.mrb[0].mxu0 %v30
  %v104 = vpop.f32.mrb[0].mxu0
  %v105 = vadd.f32 %v26, %v104
  %v106 = vpop.f32.mrb[0].mxu0
  %107 = vmatprep.mubr.f32.mxu0 0.0
  %108 = vmatmul.mubr.f32.gmra.mrb[0].mxu0 %v33
  %v109 = vpop.f32.mrb[0].mxu0
  %v110 = vadd.f32 %v26, %v109
  %v111 = vpop.f32.mrb[0].mxu0
  %112 = vmatprep.mubr.f32.mxu0 0.0
  %113 = vmatmul.mubr.f32.gmra.mrb[0].mxu0 %v36
  %v114 = vpop.f32.mrb[0].mxu0
  %v115 = vadd.f32 %v26, %v114
  %v116 = vpop.f32.mrb[0].mxu0
  %117 = vdwg.mxu0
  %vm118 = vcmask 523264
  %119 = vst.msk [vmem:[%s3] sm:$0xff] %vm118, %v105
  %120 = vst.msk [vmem:[%s3 + $0x8] sm:$0xff] %vm118, %v110
  %vm121 = vcmask 519168
  %122 = vst.msk [vmem:[%s3 + $0x10] sm:$0xf] %vm121, %v115
  // Predicated region
  $region14: #{decoder_forward.15} parent=0 // pred_check
    _
  $region15: #{decoder_forward.15} parent=0 // pred_check_branch
    %124 = sbr.rel (0) target = $region17
  $region16: #{decoder_forward.15} parent=0 // pred_region
    _
  $region17: #{decoder_forward.15} parent=0 // pred_fallthru
    _
  // Predicated region
  $region18: #{decoder_forward.15} parent=0 // pred_check
    _
  $region19: #{decoder_forward.15} parent=0 // pred_check_branch
    %126 = sbr.rel (0) target = $region21
  $region20: #{decoder_forward.15} parent=0 // pred_region
    _
  $region21: #{decoder_forward.15} parent=0 // pred_fallthru
    _

// kernel: decoder_forward.14
$region0: #{decoder_forward.14}
  #allocation0 [shape = 'u32[]', space=smem, size = 0x4, offset = 0x4, fixed_abs, tag = 'smem constant byte address 0x4 - core index']
  #allocation1 [shape = 'u32[144,128]{1,0:T(1,128)}', space=vmem, size = 0x12000, scoped, tag = 'internal scratch']
  %s0 = inlined_call_operand.vmem [shape: f32[16,32], index: 0, kind: input, shape index: {}]
  %s1 = inlined_call_operand.vmem [shape: f32[32,32], index: 1, kind: input, shape index: {}]
  %s2 = inlined_call_operand.vmem [shape: f32[1,32], index: 2, kind: input, shape index: {}]
  %s3 = inlined_call_operand.vmem [shape: f32[16,32], index: 3, kind: output, shape index: {}]
  %s4 = sld [smem:[#allocation0]]
  $region22: #{decoder_forward.14} parent=0
    _
  %s6 = ssub.s32 1, %s4
  %s7 = scalar_select 0, %s6, %s4
  // Predicated region
  $region2: #{decoder_forward.14} parent=0 // pred_check
    _
  $region3: #{decoder_forward.14} parent=0 // pred_check_branch
    %9 = sbr.rel (0) target = $region5
  $region4: #{decoder_forward.14} parent=0 // pred_region
    _
  $region5: #{decoder_forward.14} parent=0 // pred_fallthru
    _
  // Predicated region
  $region6: #{decoder_forward.14} parent=0 // pred_check
    _
  $region7: #{decoder_forward.14} parent=0 // pred_check_branch
    %11 = sbr.rel (0) target = $region9
  $region8: #{decoder_forward.14} parent=0 // pred_region
    _
  $region9: #{decoder_forward.14} parent=0 // pred_fallthru
    _
  // Predicated region
  $region10: #{decoder_forward.14} parent=0 // pred_check
    _
  $region11: #{decoder_forward.14} parent=0 // pred_check_branch
    %13 = sbr.rel (0) target = $region13
  $region12: #{decoder_forward.14} parent=0 // pred_region
    _
  $region13: #{decoder_forward.14} parent=0 // pred_fallthru
    _
  %v14 = vld [vmem:[%s0] sm:$0xff]
  %v15 = vld [vmem:[%s0 + $0x8] sm:$0xff]
  %v16 = vld [vmem:[%s1] sm:$0xff]
  %v17 = vld [vmem:[%s1 + $0x8] sm:$0xff]
  %v18 = vld [vmem:[%s1 + $0x10] sm:$0xff]
  %v19 = vld [vmem:[%s1 + $0x18] sm:$0xff]
  %v20 = vld [vmem:[%s2] sm:$0x1]
  %v22 = vlaneseq
  %v23 = vshrl.u32 %v22, 7
  %v24 = vsub.s32 0, %v23
  %v25 = vrot.slane %v20, %v24
  %vm27 = vcmask 261120
  %v29 = vsel %vm27, %v14, 0
  %v32 = vsel %vm27, %v15, 0
  %34 = vmatprep.subr.mxu0 0.0
  %35 = vmatpush1.msra.mxu0 %v16
  %36 = vmatprep.subr.mxu0 0.0
  %37 = vmatpush1.msra.mxu0 %v17
  %38 = vmatprep.subr.mxu0 0.0
  %39 = vmatpush1.msra.mxu0 %v18
  %40 = vmatprep.subr.mxu0 0.0
  %41 = vmatpush1.msra.mxu0 %v19
  %42 = vmatprep.subr.mxu0 0.0
  %43 = vmatpush1.msra.mxu0 0.0
  %44 = vmatprep.subr.mxu0 0.0
  %45 = vmatpush1.msra.mxu0 0.0
  %46 = vmatprep.subr.mxu0 0.0
  %47 = vmatpush1.msra.mxu0 0.0
  %48 = vmatprep.subr.mxu0 0.0
  %49 = vmatpush1.msra.mxu0 0.0
  %50 = vmatprep.subr.mxu0 0.0
  %51 = vmatpush1.msra.mxu0 0.0
  %52 = vmatprep.subr.mxu0 0.0
  %53 = vmatpush1.msra.mxu0 0.0
  %54 = vmatprep.subr.mxu0 0.0
  %55 = vmatpush1.msra.mxu0 0.0
  %56 = vmatprep.subr.mxu0 0.0
  %57 = vmatpush1.msra.mxu0 0.0
  %58 = vmatprep.subr.mxu0 0.0
  %59 = vmatpush1.msra.mxu0 0.0
  %60 = vmatprep.subr.mxu0 0.0
  %61 = vmatpush1.msra.mxu0 0.0
  %62 = vmatprep.subr.mxu0 0.0
  %63 = vmatpush1.msra.mxu0 0.0
  %64 = vmatprep.subr.mxu0 0.0
  %65 = vmatpush1.msra.mxu0 0.0
  %66 = vmatprep.subr.mxu0 0.0
  %67 = vmatpush1.msra.mxu0 0.0
  %68 = vmatprep.subr.mxu0 0.0
  %69 = vmatpush1.msra.mxu0 0.0
  %70 = vmatprep.subr.mxu0 0.0
  %71 = vmatpush1.msra.mxu0 0.0
  %72 = vmatprep.subr.mxu0 0.0
  %73 = vmatpush1.msra.mxu0 0.0
  %74 = vmatprep.subr.mxu0 0.0
  %75 = vmatpush1.msra.mxu0 0.0
  %76 = vmatprep.subr.mxu0 0.0
  %77 = vmatpush1.msra.mxu0 0.0
  %78 = vmatprep.subr.mxu0 0.0
  %79 = vmatpush1.msra.mxu0 0.0
  %80 = vmatprep.subr.mxu0 0.0
  %81 = vmatpush1.msra.mxu0 0.0
  %82 = vmatprep.subr.mxu0 0.0
  %83 = vmatpush1.msra.mxu0 0.0
  %84 = vmatprep.subr.mxu0 0.0
  %85 = vmatpush1.msra.mxu0 0.0
  %86 = vmatprep.subr.mxu0 0.0
  %87 = vmatpush1.msra.mxu0 0.0
  %88 = vmatprep.subr.mxu0 0.0
  %89 = vmatpush1.msra.mxu0 0.0
  %90 = vmatprep.subr.mxu0 0.0
  %91 = vmatpush1.msra.mxu0 0.0
  %92 = vmatprep.subr.mxu0 0.0
  %93 = vmatpush1.msra.mxu0 0.0
  %94 = vmatprep.subr.mxu0 0.0
  %95 = vmatpush1.msra.mxu0 0.0
  %96 = vmatprep.subr.mxu0 0.0
  %97 = vmatpush1.msra.mxu0 0.0
  %98 = vmatprep.mubr.f32.mxu0 0.0
  %99 = vmatmul.mubr.f32.gmra.mrb[0].mxu0 %v29
  %v100 = vpop.f32.mrb[0].mxu0
  %v101 = vadd.f32 %v25, %v100
  %v102 = vpop.f32.mrb[0].mxu0
  %103 = vmatprep.mubr.f32.mxu0 0.0
  %104 = vmatmul.mubr.f32.gmra.mrb[0].mxu0 %v32
  %v105 = vpop.f32.mrb[0].mxu0
  %v106 = vadd.f32 %v25, %v105
  %v107 = vpop.f32.mrb[0].mxu0
  %108 = vdwg.mxu0
  %109 = vst.msk [vmem:[%s3] sm:$0xff] %vm27, %v101
  %110 = vst.msk [vmem:[%s3 + $0x8] sm:$0xff] %vm27, %v106
  // Predicated region
  $region14: #{decoder_forward.14} parent=0 // pred_check
    _
  $region15: #{decoder_forward.14} parent=0 // pred_check_branch
    %112 = sbr.rel (0) target = $region17
  $region16: #{decoder_forward.14} parent=0 // pred_region
    _
  $region17: #{decoder_forward.14} parent=0 // pred_fallthru
    _
  // Predicated region
  $region18: #{decoder_forward.14} parent=0 // pred_check
    _
  $region19: #{decoder_forward.14} parent=0 // pred_check_branch
    %114 = sbr.rel (0) target = $region21
  $region20: #{decoder_forward.14} parent=0 // pred_region
    _
  $region21: #{decoder_forward.14} parent=0 // pred_fallthru
    _

// kernel: decoder_forward.12
$region0: #{decoder_forward.12}
  #allocation0 [shape = 'u32[]', space=smem, size = 0x4, offset = 0x4, fixed_abs, tag = 'smem constant byte address 0x4 - core index']
  #allocation1 [shape = 'u32[144,128]{1,0:T(1,128)}', space=vmem, size = 0x12000, scoped, tag = 'internal scratch']
  %s0 = inlined_call_operand.vmem [shape: f32[16,32], index: 0, kind: input, shape index: {}]
  %s1 = inlined_call_operand.vmem [shape: f32[32,96], index: 1, kind: input, shape index: {}]
  %s2 = inlined_call_operand.vmem [shape: f32[1,96], index: 2, kind: input, shape index: {}]
  %s3 = inlined_call_operand.vmem [shape: f32[16,96], index: 3, kind: output, shape index: {}]
  %s4 = sld [smem:[#allocation0]]
  $region22: #{decoder_forward.12} parent=0
    _
  %s6 = ssub.s32 1, %s4
  %s7 = scalar_select 0, %s6, %s4
  // Predicated region
  $region2: #{decoder_forward.12} parent=0 // pred_check
    _
  $region3: #{decoder_forward.12} parent=0 // pred_check_branch
    %9 = sbr.rel (0) target = $region5
  $region4: #{decoder_forward.12} parent=0 // pred_region
    _
  $region5: #{decoder_forward.12} parent=0 // pred_fallthru
    _
  // Predicated region
  $region6: #{decoder_forward.12} parent=0 // pred_check
    _
  $region7: #{decoder_forward.12} parent=0 // pred_check_branch
    %11 = sbr.rel (0) target = $region9
  $region8: #{decoder_forward.12} parent=0 // pred_region
    _
  $region9: #{decoder_forward.12} parent=0 // pred_fallthru
    _
  // Predicated region
  $region10: #{decoder_forward.12} parent=0 // pred_check
    _
  $region11: #{decoder_forward.12} parent=0 // pred_check_branch
    %13 = sbr.rel (0) target = $region13
  $region12: #{decoder_forward.12} parent=0 // pred_region
    _
  $region13: #{decoder_forward.12} parent=0 // pred_fallthru
    _
  %v14 = vld [vmem:[%s0] sm:$0xff]
  %v15 = vld [vmem:[%s0 + $0x8] sm:$0xff]
  %v16 = vld [vmem:[%s1] sm:$0xff]
  %v17 = vld [vmem:[%s1 + $0x8] sm:$0xff]
  %v18 = vld [vmem:[%s1 + $0x10] sm:$0xff]
  %v19 = vld [vmem:[%s1 + $0x18] sm:$0xff]
  %v20 = vld [vmem:[%s2] sm:$0x1]
  %v22 = vlaneseq
  %v23 = vshrl.u32 %v22, 7
  %v24 = vsub.s32 0, %v23
  %v25 = vrot.slane %v20, %v24
  %vm27 = vcmask 261120
  %v29 = vsel %vm27, %v14, 0
  %v32 = vsel %vm27, %v15, 0
  %34 = vmatprep.subr.mxu0 0.0
  %35 = vmatpush1.msra.mxu0 %v16
  %36 = vmatprep.subr.mxu0 0.0
  %37 = vmatpush1.msra.mxu0 %v17
  %38 = vmatprep.subr.mxu0 0.0
  %39 = vmatpush1.msra.mxu0 %v18
  %40 = vmatprep.subr.mxu0 0.0
  %41 = vmatpush1.msra.mxu0 %v19
  %42 = vmatprep.subr.mxu0 0.0
  %43 = vmatpush1.msra.mxu0 0.0
  %44 = vmatprep.subr.mxu0 0.0
  %45 = vmatpush1.msra.mxu0 0.0
  %46 = vmatprep.subr.mxu0 0.0
  %47 = vmatpush1.msra.mxu0 0.0
  %48 = vmatprep.subr.mxu0 0.0
  %49 = vmatpush1.msra.mxu0 0.0
  %50 = vmatprep.subr.mxu0 0.0
  %51 = vmatpush1.msra.mxu0 0.0
  %52 = vmatprep.subr.mxu0 0.0
  %53 = vmatpush1.msra.mxu0 0.0
  %54 = vmatprep.subr.mxu0 0.0
  %55 = vmatpush1.msra.mxu0 0.0
  %56 = vmatprep.subr.mxu0 0.0
  %57 = vmatpush1.msra.mxu0 0.0
  %58 = vmatprep.subr.mxu0 0.0
  %59 = vmatpush1.msra.mxu0 0.0
  %60 = vmatprep.subr.mxu0 0.0
  %61 = vmatpush1.msra.mxu0 0.0
  %62 = vmatprep.subr.mxu0 0.0
  %63 = vmatpush1.msra.mxu0 0.0
  %64 = vmatprep.subr.mxu0 0.0
  %65 = vmatpush1.msra.mxu0 0.0
  %66 = vmatprep.subr.mxu0 0.0
  %67 = vmatpush1.msra.mxu0 0.0
  %68 = vmatprep.subr.mxu0 0.0
  %69 = vmatpush1.msra.mxu0 0.0
  %70 = vmatprep.subr.mxu0 0.0
  %71 = vmatpush1.msra.mxu0 0.0
  %72 = vmatprep.subr.mxu0 0.0
  %73 = vmatpush1.msra.mxu0 0.0
  %74 = vmatprep.subr.mxu0 0.0
  %75 = vmatpush1.msra.mxu0 0.0
  %76 = vmatprep.subr.mxu0 0.0
  %77 = vmatpush1.msra.mxu0 0.0
  %78 = vmatprep.subr.mxu0 0.0
  %79 = vmatpush1.msra.mxu0 0.0
  %80 = vmatprep.subr.mxu0 0.0
  %81 = vmatpush1.msra.mxu0 0.0
  %82 = vmatprep.subr.mxu0 0.0
  %83 = vmatpush1.msra.mxu0 0.0
  %84 = vmatprep.subr.mxu0 0.0
  %85 = vmatpush1.msra.mxu0 0.0
  %86 = vmatprep.subr.mxu0 0.0
  %87 = vmatpush1.msra.mxu0 0.0
  %88 = vmatprep.subr.mxu0 0.0
  %89 = vmatpush1.msra.mxu0 0.0
  %90 = vmatprep.subr.mxu0 0.0
  %91 = vmatpush1.msra.mxu0 0.0
  %92 = vmatprep.subr.mxu0 0.0
  %93 = vmatpush1.msra.mxu0 0.0
  %94 = vmatprep.subr.mxu0 0.0
  %95 = vmatpush1.msra.mxu0 0.0
  %96 = vmatprep.subr.mxu0 0.0
  %97 = vmatpush1.msra.mxu0 0.0
  %98 = vmatprep.mubr.f32.mxu0 0.0
  %99 = vmatmul.mubr.f32.gmra.mrb[0].mxu0 %v29
  %v100 = vpop.f32.mrb[0].mxu0
  %v101 = vadd.f32 %v25, %v100
  %v102 = vpop.f32.mrb[0].mxu0
  %103 = vmatprep.mubr.f32.mxu0 0.0
  %104 = vmatmul.mubr.f32.gmra.mrb[0].mxu0 %v32
  %v105 = vpop.f32.mrb[0].mxu0
  %v106 = vadd.f32 %v25, %v105
  %v107 = vpop.f32.mrb[0].mxu0
  %108 = vdwg.mxu0
  %vm109 = vcmask 785408
  %110 = vst.msk [vmem:[%s3] sm:$0xff] %vm109, %v101
  %111 = vst.msk [vmem:[%s3 + $0x8] sm:$0xff] %vm109, %v106
  // Predicated region
  $region14: #{decoder_forward.12} parent=0 // pred_check
    _
  $region15: #{decoder_forward.12} parent=0 // pred_check_branch
    %113 = sbr.rel (0) target = $region17
  $region16: #{decoder_forward.12} parent=0 // pred_region
    _
  $region17: #{decoder_forward.12} parent=0 // pred_fallthru
    _
  // Predicated region
  $region18: #{decoder_forward.12} parent=0 // pred_check
    _
  $region19: #{decoder_forward.12} parent=0 // pred_check_branch
    %115 = sbr.rel (0) target = $region21
  $region20: #{decoder_forward.12} parent=0 // pred_region
    _
  $region21: #{decoder_forward.12} parent=0 // pred_fallthru
    _

// kernel: decoder_forward.13
$region0: #{decoder_forward.13}
  #allocation0 [shape = 'u32[]', space=smem, size = 0x4, offset = 0x4, fixed_abs, tag = 'smem constant byte address 0x4 - core index']
  #allocation1 [shape = 'u32[144,128]{1,0:T(1,128)}', space=vmem, size = 0x12000, scoped, tag = 'internal scratch']
  #allocation2 [shape = 'f32[8,32]{1,0:T(8,128)}', space=vmem, size = 0x1000, scoped, tag = 'scratch operand']
  %s0 = inlined_call_operand.vmem [shape: f32[2,8,96], index: 0, kind: input, shape index: {}, may-alias: {0,1}]
  %s1 = inlined_call_operand.vmem [shape: f32[2,8,96], index: 1, kind: input, shape index: {}, may-alias: {0,1}]
  %s2 = inlined_call_operand.vmem [shape: f32[2,1,8], index: 2, kind: input, shape index: {}]
  %s3 = inlined_call_operand.vmem [shape: f32[2,8,32], index: 3, kind: input, shape index: {}]
  %s4 = inlined_call_operand.vmem [shape: f32[2,8,1], index: 4, kind: input, shape index: {}]
  %s5 = inlined_call_operand.vmem [shape: f32[32,32], index: 5, kind: input, shape index: {}]
  %s6 = inlined_call_operand.vmem [shape: f32[1,32], index: 6, kind: input, shape index: {}]
  %s7 = inlined_call_operand.vmem [shape: f32[1,32], index: 7, kind: input, shape index: {}]
  %s8 = inlined_call_operand.vmem [shape: f32[1,32], index: 8, kind: input, shape index: {}]
  %s9 = inlined_call_operand.vmem [shape: f32[2,8,32], index: 9, kind: output, shape index: {}]
  %s10 = sld [smem:[#allocation0]]
  $region69: #{decoder_forward.13} parent=0
    _
  %s12 = ssub.s32 1, %s10
  %s13 = scalar_select 0, %s12, %s10
  loop: start=0, step=1, limit=4
  $region2: #{decoder_forward.13} parent=0 // loop_pre_header
    _
  $region3: #{decoder_forward.13} parent=0 // loop_header
    %s15 = sphi 0, %s19
    %p16 = scmp.ge.s32.totalorder %s15, 4
    %s22 = sphi 0, %s34
    %s23 = sphi 0, %s30
    %s24 = sphi 0, %s22
    %s25 = sphi 0, %s23
    %s26 = sphi 0, %s24
    %s27 = sphi 0, %s25
    %s39 = sphi 0, %s41
    %s42 = sphi 0, %s39
    %s43 = sphi 0, %s42
    %s59 = sphi 0, %s43
    %s65 = sphi 0, %s67
    %s68 = sphi 0, %s65
    %s69 = sphi 0, %s68
    %s85 = sphi 0, %s69
    %s91 = sphi 0, %s93
    %s94 = sphi 0, %s91
    %s95 = sphi 0, %s94
    %s111 = sphi 0, %s95
    %s119 = sphi 0, %s121
    %s122 = sphi 0, %s119
    %s123 = sphi 0, %s122
    %s139 = sphi 0, %s123
    %s147 = sphi 0, %s149
    %s150 = sphi 0, %s147
    %s151 = sphi 0, %s150
    %s167 = sphi 0, %s151
    %s171 = sphi 0, %s171
    %s173 = sphi 0, %s171
    %s174 = sphi 0, %s173
    %s188 = sphi 0, %s174
    %s192 = sphi 0, %s192
    %s194 = sphi 0, %s192
    %s195 = sphi 0, %s194
    %s209 = sphi 0, %s195
    %s213 = sphi 0, %s213
    %s215 = sphi 0, %s213
    %s216 = sphi 0, %s215
    %s230 = sphi 0, %s216
    %s234 = sphi 0, %s234
    %s236 = sphi 0, %s234
    %s237 = sphi 0, %s236
    %s251 = sphi 0, %s237
    %s259 = sphi 0, %s261
    %s262 = sphi 0, %s259
    %s263 = sphi 0, %s262
    %s279 = sphi 0, %s263
  $region4: #{decoder_forward.13} parent=0 // loop_header_branch
    %18 = sbr.rel (%p16) target = $region8
  $region5: #{decoder_forward.13} parent=0 // loop_body
    %s20 = ssub.s32 %s15, 1
    %s21 = ssub.s32 %s15, 2
    %s28 = sadd.s32 1, %s23
    %p29 = scmp.ge.s32.totalorder %s28, 1
    %s30 = scalar_select %p29, 0, %s28
    %s31 = sadd.s32 1, %s22
    %s32 = scalar_select %p29, %s31, %s22
    %p33 = scmp.ge.s32.totalorder %s32, 2
    %s34 = scalar_select %p33, 0, %s32
    %s35 = ssub.s32 %s22, %s34
    %s36 = ssub.s32 %s23, %s30
    %s37 = sor.u32 %s35, %s36
    %p38 = scmp.eq.s32.totalorder %s37, 0
    %s40 = sadd.s32 %s39, 1
    %s41 = scalar_select %p38, %s39, %s40
    %p44 = pneg %p38
    %p45 = scmp.eq.s32.totalorder %s15, 1
    %p46 = por %p44, %p45
    %p47 = scmp.ne.s32.totalorder %s39, %s42
    %p48 = scmp.eq.s32.totalorder %s15, 0
    %p49 = por %p47, %p48
    %p50 = scmp.ne.s32.totalorder %s39, %s42
    %p51 = scmp.eq.s32.totalorder %s20, 1
    %p52 = por %p50, %p51
    %p53 = scmp.ne.s32.totalorder %s42, %s43
    %p54 = scmp.eq.s32.totalorder %s20, 0
    %p55 = por %p53, %p54
    %p56 = scmp.ne.s32.totalorder %s42, %s43
    %p57 = scmp.eq.s32.totalorder %s21, 1
    %p58 = por %p56, %p57
    %p60 = scmp.ne.s32.totalorder %s43, %s59
    %p61 = scmp.eq.s32.totalorder %s21, 0
    %p62 = por %p60, %p61
    %s63 = ssub.s32 %s22, %s34
    %p64 = scmp.eq.s32.totalorder %s63, 0
    %s66 = sadd.s32 %s65, 1
    %s67 = scalar_select %p64, %s65, %s66
    %p70 = pneg %p64
    %p71 = scmp.eq.s32.totalorder %s15, 1
    %p72 = por %p70, %p71
    %p73 = scmp.ne.s32.totalorder %s65, %s68
    %p74 = scmp.eq.s32.totalorder %s15, 0
    %p75 = por %p73, %p74
    %p76 = scmp.ne.s32.totalorder %s65, %s68
    %p77 = scmp.eq.s32.totalorder %s20, 1
    %p78 = por %p76, %p77
    %p79 = scmp.ne.s32.totalorder %s68, %s69
    %p80 = scmp.eq.s32.totalorder %s20, 0
    %p81 = por %p79, %p80
    %p82 = scmp.ne.s32.totalorder %s68, %s69
    %p83 = scmp.eq.s32.totalorder %s21, 1
    %p84 = por %p82, %p83
    %p86 = scmp.ne.s32.totalorder %s69, %s85
    %p87 = scmp.eq.s32.totalorder %s21, 0
    %p88 = por %p86, %p87
    %s89 = ssub.s32 %s22, %s34
    %p90 = scmp.eq.s32.totalorder %s89, 0
    %s92 = sadd.s32 %s91, 1
    %s93 = scalar_select %p90, %s91, %s92
    %p96 = pneg %p90
    %p97 = scmp.eq.s32.totalorder %s15, 1
    %p98 = por %p96, %p97
    %p99 = scmp.ne.s32.totalorder %s91, %s94
    %p100 = scmp.eq.s32.totalorder %s15, 0
    %p101 = por %p99, %p100
    %p102 = scmp.ne.s32.totalorder %s91, %s94
    %p103 = scmp.eq.s32.totalorder %s20, 1
    %p104 = por %p102, %p103
    %p105 = scmp.ne.s32.totalorder %s94, %s95
    %p106 = scmp.eq.s32.totalorder %s20, 0
    %p107 = por %p105, %p106
    %p108 = scmp.ne.s32.totalorder %s94, %s95
    %p109 = scmp.eq.s32.totalorder %s21, 1
    %p110 = por %p108, %p109
    %p112 = scmp.ne.s32.totalorder %s95, %s111
    %p113 = scmp.eq.s32.totalorder %s21, 0
    %p114 = por %p112, %p113
    %s115 = ssub.s32 %s22, %s34
    %s116 = ssub.s32 %s23, %s30
    %s117 = sor.u32 %s115, %s116
    %p118 = scmp.eq.s32.totalorder %s117, 0
    %s120 = sadd.s32 %s119, 1
    %s121 = scalar_select %p118, %s119, %s120
    %p124 = pneg %p118
    %p125 = scmp.eq.s32.totalorder %s15, 1
    %p126 = por %p124, %p125
    %p127 = scmp.ne.s32.totalorder %s119, %s122
    %p128 = scmp.eq.s32.totalorder %s15, 0
    %p129 = por %p127, %p128
    %p130 = scmp.ne.s32.totalorder %s119, %s122
    %p131 = scmp.eq.s32.totalorder %s20, 1
    %p132 = por %p130, %p131
    %p133 = scmp.ne.s32.totalorder %s122, %s123
    %p134 = scmp.eq.s32.totalorder %s20, 0
    %p135 = por %p133, %p134
    %p136 = scmp.ne.s32.totalorder %s122, %s123
    %p137 = scmp.eq.s32.totalorder %s21, 1
    %p138 = por %p136, %p137
    %p140 = scmp.ne.s32.totalorder %s123, %s139
    %p141 = scmp.eq.s32.totalorder %s21, 0
    %p142 = por %p140, %p141
    %s143 = ssub.s32 %s22, %s34
    %s144 = ssub.s32 %s23, %s30
    %s145 = sor.u32 %s143, %s144
    %p146 = scmp.eq.s32.totalorder %s145, 0
    %s148 = sadd.s32 %s147, 1
    %s149 = scalar_select %p146, %s147, %s148
    %p152 = pneg %p146
    %p153 = scmp.eq.s32.totalorder %s15, 1
    %p154 = por %p152, %p153
    %p155 = scmp.ne.s32.totalorder %s147, %s150
    %p156 = scmp.eq.s32.totalorder %s15, 0
    %p157 = por %p155, %p156
    %p158 = scmp.ne.s32.totalorder %s147, %s150
    %p159 = scmp.eq.s32.totalorder %s20, 1
    %p160 = por %p158, %p159
    %p161 = scmp.ne.s32.totalorder %s150, %s151
    %p162 = scmp.eq.s32.totalorder %s20, 0
    %p163 = por %p161, %p162
    %p164 = scmp.ne.s32.totalorder %s150, %s151
    %p165 = scmp.eq.s32.totalorder %s21, 1
    %p166 = por %p164, %p165
    %p168 = scmp.ne.s32.totalorder %s151, %s167
    %p169 = scmp.eq.s32.totalorder %s21, 0
    %p170 = por %p168, %p169
    %s172 = sadd.s32 %s171, 1
    %p175 = scmp.eq.s32.totalorder %s15, 1
    %p176 = scmp.ne.s32.totalorder %s171, %s173
    %p177 = scmp.eq.s32.totalorder %s15, 0
    %p178 = por %p176, %p177
    %p179 = scmp.ne.s32.totalorder %s171, %s173
    %p180 = scmp.eq.s32.totalorder %s20, 1
    %p181 = por %p179, %p180
    %p182 = scmp.ne.s32.totalorder %s173, %s174
    %p183 = scmp.eq.s32.totalorder %s20, 0
    %p184 = por %p182, %p183
    %p185 = scmp.ne.s32.totalorder %s173, %s174
    %p186 = scmp.eq.s32.totalorder %s21, 1
    %p187 = por %p185, %p186
    %p189 = scmp.ne.s32.totalorder %s174, %s188
    %p190 = scmp.eq.s32.totalorder %s21, 0
    %p191 = por %p189, %p190
    %s193 = sadd.s32 %s192, 1
    %p196 = scmp.eq.s32.totalorder %s15, 1
    %p197 = scmp.ne.s32.totalorder %s192, %s194
    %p198 = scmp.eq.s32.totalorder %s15, 0
    %p199 = por %p197, %p198
    %p200 = scmp.ne.s32.totalorder %s192, %s194
    %p201 = scmp.eq.s32.totalorder %s20, 1
    %p202 = por %p200, %p201
    %p203 = scmp.ne.s32.totalorder %s194, %s195
    %p204 = scmp.eq.s32.totalorder %s20, 0
    %p205 = por %p203, %p204
    %p206 = scmp.ne.s32.totalorder %s194, %s195
    %p207 = scmp.eq.s32.totalorder %s21, 1
    %p208 = por %p206, %p207
    %p210 = scmp.ne.s32.totalorder %s195, %s209
    %p211 = scmp.eq.s32.totalorder %s21, 0
    %p212 = por %p210, %p211
    %s214 = sadd.s32 %s213, 1
    %p217 = scmp.eq.s32.totalorder %s15, 1
    %p218 = scmp.ne.s32.totalorder %s213, %s215
    %p219 = scmp.eq.s32.totalorder %s15, 0
    %p220 = por %p218, %p219
    %p221 = scmp.ne.s32.totalorder %s213, %s215
    %p222 = scmp.eq.s32.totalorder %s20, 1
    %p223 = por %p221, %p222
    %p224 = scmp.ne.s32.totalorder %s215, %s216
    %p225 = scmp.eq.s32.totalorder %s20, 0
    %p226 = por %p224, %p225
    %p227 = scmp.ne.s32.totalorder %s215, %s216
    %p228 = scmp.eq.s32.totalorder %s21, 1
    %p229 = por %p227, %p228
    %p231 = scmp.ne.s32.totalorder %s216, %s230
    %p232 = scmp.eq.s32.totalorder %s21, 0
    %p233 = por %p231, %p232
    %s235 = sadd.s32 %s234, 1
    %p238 = scmp.eq.s32.totalorder %s15, 1
    %p239 = scmp.ne.s32.totalorder %s234, %s236
    %p240 = scmp.eq.s32.totalorder %s15, 0
    %p241 = por %p239, %p240
    %p242 = scmp.ne.s32.totalorder %s234, %s236
    %p243 = scmp.eq.s32.totalorder %s20, 1
    %p244 = por %p242, %p243
    %p245 = scmp.ne.s32.totalorder %s236, %s237
    %p246 = scmp.eq.s32.totalorder %s20, 0
    %p247 = por %p245, %p246
    %p248 = scmp.ne.s32.totalorder %s236, %s237
    %p249 = scmp.eq.s32.totalorder %s21, 1
    %p250 = por %p248, %p249
    %p252 = scmp.ne.s32.totalorder %s237, %s251
    %p253 = scmp.eq.s32.totalorder %s21, 0
    %p254 = por %p252, %p253
    %s255 = ssub.s32 %s22, %s34
    %s256 = ssub.s32 %s23, %s30
    %s257 = sor.u32 %s255, %s256
    %p258 = scmp.eq.s32.totalorder %s257, 0
    %s260 = sadd.s32 %s259, 1
    %s261 = scalar_select %p258, %s259, %s260
    %p264 = pneg %p258
    %p265 = scmp.eq.s32.totalorder %s15, 1
    %p266 = por %p264, %p265
    %p267 = scmp.ne.s32.totalorder %s259, %s262
    %p268 = scmp.eq.s32.totalorder %s15, 0
    %p269 = por %p267, %p268
    %p270 = scmp.ne.s32.totalorder %s259, %s262
    %p271 = scmp.eq.s32.totalorder %s20, 1
    %p272 = por %p270, %p271
    %p273 = scmp.ne.s32.totalorder %s262, %s263
    %p274 = scmp.eq.s32.totalorder %s20, 0
    %p275 = por %p273, %p274
    %p276 = scmp.ne.s32.totalorder %s262, %s263
    %p277 = scmp.eq.s32.totalorder %s21, 1
    %p278 = por %p276, %p277
    %p280 = scmp.ne.s32.totalorder %s263, %s279
    %p281 = scmp.eq.s32.totalorder %s21, 0
    %p282 = por %p280, %p281
    %p283 = scmp.le.s32.totalorder 1, %s15
    %p284 = scmp.lt.s32.totalorder %s15, 3
    %p285 = pnand %p283, %p284
    %p286 = pneg %p285
    // Predicated region
    $region9: #{decoder_forward.13} parent=5 // pred_check
      _
    $region10: #{decoder_forward.13} parent=5 // pred_check_branch
      %288 = sbr.rel (%p285) target = $region12
    $region11: #{decoder_forward.13} parent=5 // pred_region
      %s289 = ssub.s32 %s15, 1
      // Predicated region
      $region13: #{decoder_forward.13} parent=11 // pred_check
        %p290 = pneg %p184
      $region14: #{decoder_forward.13} parent=11 // pred_check_branch
        %292 = sbr.rel (%p290) target = $region16
      $region15: #{decoder_forward.13} parent=11 // pred_region
        _
      $region16: #{decoder_forward.13} parent=11 // pred_fallthru
        _
      // Predicated region
      $region17: #{decoder_forward.13} parent=11 // pred_check
        %p293 = pneg %p205
      $region18: #{decoder_forward.13} parent=11 // pred_check_branch
        %295 = sbr.rel (%p293) target = $region20
      $region19: #{decoder_forward.13} parent=11 // pred_region
        _
      $region20: #{decoder_forward.13} parent=11 // pred_fallthru
        _
      // Predicated region
      $region21: #{decoder_forward.13} parent=11 // pred_check
        %p296 = pneg %p226
      $region22: #{decoder_forward.13} parent=11 // pred_check_branch
        %298 = sbr.rel (%p296) target = $region24
      $region23: #{decoder_forward.13} parent=11 // pred_region
        _
      $region24: #{decoder_forward.13} parent=11 // pred_fallthru
        _
      // Predicated region
      $region25: #{decoder_forward.13} parent=11 // pred_check
        %p299 = pneg %p247
      $region26: #{decoder_forward.13} parent=11 // pred_check_branch
        %301 = sbr.rel (%p299) target = $region28
      $region27: #{decoder_forward.13} parent=11 // pred_region
        _
      $region28: #{decoder_forward.13} parent=11 // pred_fallthru
        _
    $region12: #{decoder_forward.13} parent=5 // pred_fallthru
      _
    %p302 = scmp.lt.s32.totalorder %s15, 2
    // Predicated region
    $region29: #{decoder_forward.13} parent=5 // pred_check
      %p303 = pneg %p302
    $region30: #{decoder_forward.13} parent=5 // pred_check_branch
      %305 = sbr.rel (%p303) target = $region32
    $region31: #{decoder_forward.13} parent=5 // pred_region
      // Predicated region
      $region33: #{decoder_forward.13} parent=31 // pred_check
        %p306 = pneg %p49
      $region34: #{decoder_forward.13} parent=31 // pred_check_branch
        %308 = sbr.rel (%p306) target = $region36
      $region35: #{decoder_forward.13} parent=31 // pred_region
        %p309 = scmp.lt.s32.totalorder %s22, 1
        %s310 = scalar_select %p309, %s22, 1
        %p311 = scmp.lt.s32.totalorder %s23, 0
        %s312 = scalar_select %p311, %s23, 0
        %s313 = sadd.s32 %s312, %s310
        %s314 = smul.addr %s313, 8
        %s315 = scalar_lea.vmem %s0, %s314
      $region36: #{decoder_forward.13} parent=31 // pred_fallthru
        _
      // Predicated region
      $region37: #{decoder_forward.13} parent=31 // pred_check
        %p316 = pneg %p75
      $region38: #{decoder_forward.13} parent=31 // pred_check_branch
        %318 = sbr.rel (%p316) target = $region40
      $region39: #{decoder_forward.13} parent=31 // pred_region
        %p319 = scmp.lt.s32.totalorder %s22, 1
        %s320 = scalar_select %p319, %s22, 1
        %s321 = smul.addr %s320, 8
        %s322 = scalar_lea.vmem %s1, %s321
      $region40: #{decoder_forward.13} parent=31 // pred_fallthru
        _
      // Predicated region
      $region41: #{decoder_forward.13} parent=31 // pred_check
        %p323 = pneg %p101
      $region42: #{decoder_forward.13} parent=31 // pred_check_branch
        %325 = sbr.rel (%p323) target = $region44
      $region43: #{decoder_forward.13} parent=31 // pred_region
        %p326 = scmp.lt.s32.totalorder %s22, 1
        %s327 = scalar_select %p326, %s22, 1
        %s328 = scalar_lea.vmem %s2, %s327
      $region44: #{decoder_forward.13} parent=31 // pred_fallthru
        _
      // Predicated region
      $region45: #{decoder_forward.13} parent=31 // pred_check
        %p329 = pneg %p129
      $region46: #{decoder_forward.13} parent=31 // pred_check_branch
        %331 = sbr.rel (%p329) target = $region48
      $region47: #{decoder_forward.13} parent=31 // pred_region
        %p332 = scmp.lt.s32.totalorder %s22, 1
        %s333 = scalar_select %p332, %s22, 1
        %p334 = scmp.lt.s32.totalorder %s23, 0
        %s335 = scalar_select %p334, %s23, 0
        %s336 = sadd.s32 %s335, %s333
        %s337 = smul.addr %s336, 8
        %s338 = scalar_lea.vmem %s3, %s337
      $region48: #{decoder_forward.13} parent=31 // pred_fallthru
        _
      // Predicated region
      $region49: #{decoder_forward.13} parent=31 // pred_check
        %p339 = pneg %p157
      $region50: #{decoder_forward.13} parent=31 // pred_check_branch
        %341 = sbr.rel (%p339) target = $region52
      $region51: #{decoder_forward.13} parent=31 // pred_region
        %p342 = scmp.lt.s32.totalorder %s22, 1
        %s343 = scalar_select %p342, %s22, 1
        %p344 = scmp.lt.s32.totalorder %s23, 0
        %s345 = scalar_select %p344, %s23, 0
        %s346 = sadd.s32 %s345, %s343
        %s347 = smul.addr %s346, 8
        %s348 = scalar_lea.vmem %s4, %s347
      $region52: #{decoder_forward.13} parent=31 // pred_fallthru
        _
    $region32: #{decoder_forward.13} parent=5 // pred_fallthru
      _
    %p349 = scmp.le.s32.totalorder 1, %s15
    %p350 = scmp.lt.s32.totalorder %s15, 3
    %p351 = pnand %p349, %p350
    %p352 = pneg %p351
    // Predicated region
    $region53: #{decoder_forward.13} parent=5 // pred_check
      _
    $region54: #{decoder_forward.13} parent=5 // pred_check_branch
      %354 = sbr.rel (%p351) target = $region56
    $region55: #{decoder_forward.13} parent=5 // pred_region
      %s355 = ssub.s32 %s15, 1
      %p356 = scmp.lt.s32.totalorder %s24, 1
      %s357 = scalar_select %p356, %s24, 1
      %p358 = scmp.lt.s32.totalorder %s25, 0
      %s359 = scalar_select %p358, %s25, 0
      %s360 = sadd.s32 %s359, %s357
      %s361 = smul.addr %s360, 8
      %s362 = scalar_lea.vmem %s0, %s361
      %p363 = pneg %p55
      %p364 = pneg %p52
      %p365 = scmp.lt.s32.totalorder %s24, 1
      %s366 = scalar_select %p365, %s24, 1
      %s367 = smul.addr %s366, 8
      %s368 = scalar_lea.vmem %s1, %s367
      %p369 = pneg %p81
      %p370 = pneg %p78
      %p371 = scmp.lt.s32.totalorder %s24, 1
      %s372 = scalar_select %p371, %s24, 1
      %s373 = scalar_lea.vmem %s2, %s372
      %p374 = pneg %p107
      %p375 = pneg %p104
      %p376 = scmp.lt.s32.totalorder %s24, 1
      %s377 = scalar_select %p376, %s24, 1
      %p378 = scmp.lt.s32.totalorder %s25, 0
      %s379 = scalar_select %p378, %s25, 0
      %s380 = sadd.s32 %s379, %s377
      %s381 = smul.addr %s380, 8
      %s382 = scalar_lea.vmem %s3, %s381
      %p383 = pneg %p135
      %p384 = pneg %p132
      %p385 = scmp.lt.s32.totalorder %s24, 1
      %s386 = scalar_select %p385, %s24, 1
      %p387 = scmp.lt.s32.totalorder %s25, 0
      %s388 = scalar_select %p387, %s25, 0
      %s389 = sadd.s32 %s388, %s386
      %s390 = smul.addr %s389, 8
      %s391 = scalar_lea.vmem %s4, %s390
      %p392 = pneg %p163
      %p393 = pneg %p160
      %p394 = pneg %p184
      %p395 = pneg %p181
      %p396 = pneg %p205
      %p397 = pneg %p202
      %p398 = pneg %p226
      %p399 = pneg %p223
      %p400 = pneg %p247
      %p401 = pneg %p244
      %p402 = pneg %p275
      %p403 = pneg %p272
      %p404 = scmp.lt.s32.totalorder %s24, 1
      %s405 = scalar_select %p404, %s24, 1
      %p406 = scmp.lt.s32.totalorder %s25, 0
      %s407 = scalar_select %p406, %s25, 0
      %s408 = sadd.s32 %s407, %s405
      %s409 = smul.addr %s408, 8
      %s410 = scalar_lea.vmem %s9, %s409
      %p411 = scmp.lt.s32.totalorder %s24, 1
      %s412 = scalar_select %p411, %s24, 1
      %p413 = scmp.lt.s32.totalorder %s25, 0
      %s414 = scalar_select %p413, %s25, 0
      %s415 = sadd.s32 %s414, %s412
      %s416 = smul.addr %s415, 8
      %s417 = scalar_lea.vmem %s0, %s416
      %p418 = scmp.lt.s32.totalorder %s24, 1
      %s419 = scalar_select %p418, %s24, 1
      %s420 = smul.addr %s419, 8
      %s421 = scalar_lea.vmem %s1, %s420
      %p422 = scmp.lt.s32.totalorder %s24, 1
      %s423 = scalar_select %p422, %s24, 1
      %s424 = scalar_lea.vmem %s2, %s423
      %p425 = scmp.lt.s32.totalorder %s24, 1
      %s426 = scalar_select %p425, %s24, 1
      %p427 = scmp.lt.s32.totalorder %s25, 0
      %s428 = scalar_select %p427, %s25, 0
      %s429 = sadd.s32 %s428, %s426
      %s430 = smul.addr %s429, 8
      %s431 = scalar_lea.vmem %s3, %s430
      %p432 = scmp.lt.s32.totalorder %s24, 1
      %s433 = scalar_select %p432, %s24, 1
      %p434 = scmp.lt.s32.totalorder %s25, 0
      %s435 = scalar_select %p434, %s25, 0
      %s436 = sadd.s32 %s435, %s433
      %s437 = smul.addr %s436, 8
      %s438 = scalar_lea.vmem %s4, %s437
      %p439 = scmp.lt.s32.totalorder %s24, 1
      %s440 = scalar_select %p439, %s24, 1
      %p441 = scmp.lt.s32.totalorder %s25, 0
      %s442 = scalar_select %p441, %s25, 0
      %s443 = sadd.s32 %s442, %s440
      %s444 = smul.addr %s443, 8
      %s445 = scalar_lea.vmem %s9, %s444
      %v446 = vld [vmem:[%s424] sm:$0x1]
      %v447 = vld [vmem:[%s417] sm:$0xff]
      %v448 = vld [vmem:[%s421] sm:$0xff]
      %450 = vrot.lane.b32.xlu0 %v448, 96
      %v451 = vpop.permute.xlu0 %450
      %vm452 = vcmask 130048
      %v454 = vsel %vm452, %v447, 0
      %v456 = vsel %vm452, %v451, 0
      %458 = vmatprep.subr.mxu0 0.0
      %459 = vmatpush1.xpose.msra.mxu0 %v456
      %460 = vmatprep.subr.mxu0 0.0
      %461 = vmatpush1.xpose.msra.mxu0 0.0
      %462 = vmatprep.subr.mxu0 0.0
      %463 = vmatpush1.xpose.msra.mxu0 0.0
      %464 = vmatprep.subr.mxu0 0.0
      %465 = vmatpush1.xpose.msra.mxu0 0.0
      %466 = vmatprep.subr.mxu0 0.0
      %467 = vmatpush1.xpose.msra.mxu0 0.0
      %468 = vmatprep.subr.mxu0 0.0
      %469 = vmatpush1.xpose.msra.mxu0 0.0
      %470 = vmatprep.subr.mxu0 0.0
      %471 = vmatpush1.xpose.msra.mxu0 0.0
      %472 = vmatprep.subr.mxu0 0.0
      %473 = vmatpush1.xpose.msra.mxu0 0.0
      %474 = vmatprep.subr.mxu0 0.0
      %475 = vmatpush1.xpose.msra.mxu0 0.0
      %476 = vmatprep.subr.mxu0 0.0
      %477 = vmatpush1.xpose.msra.mxu0 0.0
      %478 = vmatprep.subr.mxu0 0.0
      %479 = vmatpush1.xpose.msra.mxu0 0.0
      %480 = vmatprep.subr.mxu0 0.0
      %481 = vmatpush1.xpose.msra.mxu0 0.0
      %482 = vmatprep.subr.mxu0 0.0
      %483 = vmatpush1.xpose.msra.mxu0 0.0
      %484 = vmatprep.subr.mxu0 0.0
      %485 = vmatpush1.xpose.msra.mxu0 0.0
      %486 = vmatprep.subr.mxu0 0.0
      %487 = vmatpush1.xpose.msra.mxu0 0.0
      %488 = vmatprep.subr.mxu0 0.0
      %489 = vmatpush1.xpose.msra.mxu0 0.0
      %490 = vmatprep.subr.mxu0 0.0
      %491 = vmatpush1.xpose.msra.mxu0 0.0
      %492 = vmatprep.subr.mxu0 0.0
      %493 = vmatpush1.xpose.msra.mxu0 0.0
      %494 = vmatprep.subr.mxu0 0.0
      %495 = vmatpush1.xpose.msra.mxu0 0.0
      %496 = vmatprep.subr.mxu0 0.0
      %497 = vmatpush1.xpose.msra.mxu0 0.0
      %498 = vmatprep.subr.mxu0 0.0
      %499 = vmatpush1.xpose.msra.mxu0 0.0
      %500 = vmatprep.subr.mxu0 0.0
      %501 = vmatpush1.xpose.msra.mxu0 0.0
      %502 = vmatprep.subr.mxu0 0.0
      %503 = vmatpush1.xpose.msra.mxu0 0.0
      %504 = vmatprep.subr.mxu0 0.0
      %505 = vmatpush1.xpose.msra.mxu0 0.0
      %506 = vmatprep.subr.mxu0 0.0
      %507 = vmatpush1.xpose.msra.mxu0 0.0
      %508 = vmatprep.subr.mxu0 0.0
      %509 = vmatpush1.xpose.msra.mxu0 0.0
      %510 = vmatprep.subr.mxu0 0.0
      %511 = vmatpush1.xpose.msra.mxu0 0.0
      %512 = vmatprep.subr.mxu0 0.0
      %513 = vmatpush1.xpose.msra.mxu0 0.0
      %514 = vmatprep.subr.mxu0 0.0
      %515 = vmatpush1.xpose.msra.mxu0 0.0
      %516 = vmatprep.subr.mxu0 0.0
      %517 = vmatpush1.xpose.msra.mxu0 0.0
      %518 = vmatprep.subr.mxu0 0.0
      %519 = vmatpush1.xpose.msra.mxu0 0.0
      %520 = vmatprep.subr.mxu0 0.0
      %521 = vmatpush1.xpose.msra.mxu0 0.0
      %522 = vmatprep.mubr.f32.mxu0 0.0
      %523 = vmatmul.mubr.f32.gmra.mrb[0].mxu0 %v454
      %v524 = vpop.f32.mrb[0].mxu0
      %v525 = vadd.f32 0.0, %v524
      %v526 = vpop.f32.mrb[0].mxu0
      %527 = vdwg.mxu0
      %vm528 = vcmp.gt.f32.partialorder %v446, 0.0
      %v529 = vsel %vm528, 1, 0
      %v530 = vlaneseq
      %v531 = vshrl.u32 %v530, 7
      %v532 = vsub.s32 0, %v531
      %v533 = vrot.slane %v529, %v532
      %vm534 = vcmp.eq.s32.totalorder %v533, 1
      %v535 = vsel %vm534, -1e+30, %v525
      %vm536 = vcmask 64512
      %v537 = vsel %vm536, %v535, -inf
      %538 = vmax.xlane.f32.xlu0 %v537
      %v539 = vpop.xlane.xlu0 %538
      %v540 = vsub.f32 %v535, %v539
      %v541 = vmul.f32 %v540, 1.442695
      %v542 = vpow.pop %v541
      %v543 = vsel %vm536, %v542, 0.0
      %544 = vadd.xlane.f32.xlu0 %v543
      %v545 = vpop.xlane.xlu0 %544
      %v546 = vrcp.pop %v545
      %v547 = vmul.f32 %v545, %v546
      %v548 = vsub.f32 2.0, %v547
      %v549 = vmul.f32 %v546, %v548
      %v550 = vmul.f32 %v542, %v549
      %551 = vrot.lane.b32.xlu0 %v448, 64
      %v552 = vpop.permute.xlu0 %551
      %v555 = vsel %vm536, %v550, 0
      %557 = vmatprep.subr.mxu0 0.0
      %558 = vmatpush1.msra.mxu0 %v552
      %559 = vmatprep.subr.mxu0 0.0
      %560 = vmatpush1.msra.mxu0 0.0
      %561 = vmatprep.subr.mxu0 0.0
      %562 = vmatpush1.msra.mxu0 0.0
      %563 = vmatprep.subr.mxu0 0.0
      %564 = vmatpush1.msra.mxu0 0.0
      %565 = vmatprep.subr.mxu0 0.0
      %566 = vmatpush1.msra.mxu0 0.0
      %567 = vmatprep.subr.mxu0 0.0
      %568 = vmatpush1.msra.mxu0 0.0
      %569 = vmatprep.subr.mxu0 0.0
      %570 = vmatpush1.msra.mxu0 0.0
      %571 = vmatprep.subr.mxu0 0.0
      %572 = vmatpush1.msra.mxu0 0.0
      %573 = vmatprep.subr.mxu0 0.0
      %574 = vmatpush1.msra.mxu0 0.0
      %575 = vmatprep.subr.mxu0 0.0
      %576 = vmatpush1.msra.mxu0 0.0
      %577 = vmatprep.subr.mxu0 0.0
      %578 = vmatpush1.msra.mxu0 0.0
      %579 = vmatprep.subr.mxu0 0.0
      %580 = vmatpush1.msra.mxu0 0.0
      %581 = vmatprep.subr.mxu0 0.0
      %582 = vmatpush1.msra.mxu0 0.0
      %583 = vmatprep.subr.mxu0 0.0
      %584 = vmatpush1.msra.mxu0 0.0
      %585 = vmatprep.subr.mxu0 0.0
      %586 = vmatpush1.msra.mxu0 0.0
      %587 = vmatprep.subr.mxu0 0.0
      %588 = vmatpush1.msra.mxu0 0.0
      %589 = vmatprep.subr.mxu0 0.0
      %590 = vmatpush1.msra.mxu0 0.0
      %591 = vmatprep.subr.mxu0 0.0
      %592 = vmatpush1.msra.mxu0 0.0
      %593 = vmatprep.subr.mxu0 0.0
      %594 = vmatpush1.msra.mxu0 0.0
      %595 = vmatprep.subr.mxu0 0.0
      %596 = vmatpush1.msra.mxu0 0.0
      %597 = vmatprep.subr.mxu0 0.0
      %598 = vmatpush1.msra.mxu0 0.0
      %599 = vmatprep.subr.mxu0 0.0
      %600 = vmatpush1.msra.mxu0 0.0
      %601 = vmatprep.subr.mxu0 0.0
      %602 = vmatpush1.msra.mxu0 0.0
      %603 = vmatprep.subr.mxu0 0.0
      %604 = vmatpush1.msra.mxu0 0.0
      %605 = vmatprep.subr.mxu0 0.0
      %606 = vmatpush1.msra.mxu0 0.0
      %607 = vmatprep.subr.mxu0 0.0
      %608 = vmatpush1.msra.mxu0 0.0
      %609 = vmatprep.subr.mxu0 0.0
      %610 = vmatpush1.msra.mxu0 0.0
      %611 = vmatprep.subr.mxu0 0.0
      %612 = vmatpush1.msra.mxu0 0.0
      %613 = vmatprep.subr.mxu0 0.0
      %614 = vmatpush1.msra.mxu0 0.0
      %615 = vmatprep.subr.mxu0 0.0
      %616 = vmatpush1.msra.mxu0 0.0
      %617 = vmatprep.subr.mxu0 0.0
      %618 = vmatpush1.msra.mxu0 0.0
      %619 = vmatprep.subr.mxu0 0.0
      %620 = vmatpush1.msra.mxu0 0.0
      %621 = vmatprep.mubr.f32.mxu0 0.0
      %622 = vmatmul.mubr.f32.gmra.mrb[0].mxu0 %v555
      %v623 = vpop.f32.mrb[0].mxu0
      %v624 = vadd.f32 0.0, %v623
      %v625 = vpop.f32.mrb[0].mxu0
      %626 = vdwg.mxu0
      %627 = vst.msk [vmem:[#allocation2] sm:$0xff] %vm452, %v624
      %v628 = vld [vmem:[%s417] sm:$0xff]
      %v629 = vld [vmem:[%s421] sm:$0xff]
      %631 = vrot.lane.b32.xlu0 %v628, 112
      %v632 = vpop.permute.xlu0 %631
      %634 = vrot.lane.b32.xlu0 %v629, 80
      %v635 = vpop.permute.xlu0 %634
      %v636 = vsel %vm452, %v632, 0
      %v638 = vsel %vm452, %v635, 0
      %640 = vmatprep.subr.mxu0 0.0
      %641 = vmatpush1.xpose.msra.mxu0 %v638
      %642 = vmatprep.subr.mxu0 0.0
      %643 = vmatpush1.xpose.msra.mxu0 0.0
      %644 = vmatprep.subr.mxu0 0.0
      %645 = vmatpush1.xpose.msra.mxu0 0.0
      %646 = vmatprep.subr.mxu0 0.0
      %647 = vmatpush1.xpose.msra.mxu0 0.0
      %648 = vmatprep.subr.mxu0 0.0
      %649 = vmatpush1.xpose.msra.mxu0 0.0
      %650 = vmatprep.subr.mxu0 0.0
      %651 = vmatpush1.xpose.msra.mxu0 0.0
      %652 = vmatprep.subr.mxu0 0.0
      %653 = vmatpush1.xpose.msra.mxu0 0.0
      %654 = vmatprep.subr.mxu0 0.0
      %655 = vmatpush1.xpose.msra.mxu0 0.0
      %656 = vmatprep.subr.mxu0 0.0
      %657 = vmatpush1.xpose.msra.mxu0 0.0
      %658 = vmatprep.subr.mxu0 0.0
      %659 = vmatpush1.xpose.msra.mxu0 0.0
      %660 = vmatprep.subr.mxu0 0.0
      %661 = vmatpush1.xpose.msra.mxu0 0.0
      %662 = vmatprep.subr.mxu0 0.0
      %663 = vmatpush1.xpose.msra.mxu0 0.0
      %664 = vmatprep.subr.mxu0 0.0
      %665 = vmatpush1.xpose.msra.mxu0 0.0
      %666 = vmatprep.subr.mxu0 0.0
      %667 = vmatpush1.xpose.msra.mxu0 0.0
      %668 = vmatprep.subr.mxu0 0.0
      %669 = vmatpush1.xpose.msra.mxu0 0.0
      %670 = vmatprep.subr.mxu0 0.0
      %671 = vmatpush1.xpose.msra.mxu0 0.0
      %672 = vmatprep.subr.mxu0 0.0
      %673 = vmatpush1.xpose.msra.mxu0 0.0
      %674 = vmatprep.subr.mxu0 0.0
      %675 = vmatpush1.xpose.msra.mxu0 0.0
      %676 = vmatprep.subr.mxu0 0.0
      %677 = vmatpush1.xpose.msra.mxu0 0.0
      %678 = vmatprep.subr.mxu0 0.0
      %679 = vmatpush1.xpose.msra.mxu0 0.0
      %680 = vmatprep.subr.mxu0 0.0
      %681 = vmatpush1.xpose.msra.mxu0 0.0
      %682 = vmatprep.subr.mxu0 0.0
      %683 = vmatpush1.xpose.msra.mxu0 0.0
      %684 = vmatprep.subr.mxu0 0.0
      %685 = vmatpush1.xpose.msra.mxu0 0.0
      %686 = vmatprep.subr.mxu0 0.0
      %687 = vmatpush1.xpose.msra.mxu0 0.0
      %688 = vmatprep.subr.mxu0 0.0
      %689 = vmatpush1.xpose.msra.mxu0 0.0
      %690 = vmatprep.subr.mxu0 0.0
      %691 = vmatpush1.xpose.msra.mxu0 0.0
      %692 = vmatprep.subr.mxu0 0.0
      %693 = vmatpush1.xpose.msra.mxu0 0.0
      %694 = vmatprep.subr.mxu0 0.0
      %695 = vmatpush1.xpose.msra.mxu0 0.0
      %696 = vmatprep.subr.mxu0 0.0
      %697 = vmatpush1.xpose.msra.mxu0 0.0
      %698 = vmatprep.subr.mxu0 0.0
      %699 = vmatpush1.xpose.msra.mxu0 0.0
      %700 = vmatprep.subr.mxu0 0.0
      %701 = vmatpush1.xpose.msra.mxu0 0.0
      %702 = vmatprep.subr.mxu0 0.0
      %703 = vmatpush1.xpose.msra.mxu0 0.0
      %704 = vmatprep.mubr.f32.mxu0 0.0
      %705 = vmatmul.mubr.f32.gmra.mrb[0].mxu0 %v636
      %v706 = vpop.f32.mrb[0].mxu0
      %v707 = vadd.f32 0.0, %v706
      %v708 = vpop.f32.mrb[0].mxu0
      %709 = vdwg.mxu0
      %v710 = vsel %vm534, -1e+30, %v707
      %v711 = vsel %vm536, %v710, -inf
      %712 = vmax.xlane.f32.xlu0 %v711
      %v713 = vpop.xlane.xlu0 %712
      %v714 = vsub.f32 %v710, %v713
      %v715 = vmul.f32 %v714, 1.442695
      %v716 = vpow.pop %v715
      %v717 = vsel %vm536, %v716, 0.0
      %718 = vadd.xlane.f32.xlu0 %v717
      %v719 = vpop.xlane.xlu0 %718
      %v720 = vrcp.pop %v719
      %v721 = vmul.f32 %v719, %v720
      %v722 = vsub.f32 2.0, %v721
      %v723 = vmul.f32 %v720, %v722
      %v724 = vmul.f32 %v716, %v723
      %725 = vrot.lane.b32.xlu0 %v629, 48
      %v726 = vpop.permute.xlu0 %725
      %v729 = vsel %vm536, %v724, 0
      %731 = vmatprep.subr.mxu0 0.0
      %732 = vmatpush1.msra.mxu0 %v726
      %733 = vmatprep.subr.mxu0 0.0
      %734 = vmatpush1.msra.mxu0 0.0
      %735 = vmatprep.subr.mxu0 0.0
      %736 = vmatpush1.msra.mxu0 0.0
      %737 = vmatprep.subr.mxu0 0.0
      %738 = vmatpush1.msra.mxu0 0.0
      %739 = vmatprep.subr.mxu0 0.0
      %740 = vmatpush1.msra.mxu0 0.0
      %741 = vmatprep.subr.mxu0 0.0
      %742 = vmatpush1.msra.mxu0 0.0
      %743 = vmatprep.subr.mxu0 0.0
      %744 = vmatpush1.msra.mxu0 0.0
      %745 = vmatprep.subr.mxu0 0.0
      %746 = vmatpush1.msra.mxu0 0.0
      %747 = vmatprep.subr.mxu0 0.0
      %748 = vmatpush1.msra.mxu0 0.0
      %749 = vmatprep.subr.mxu0 0.0
      %750 = vmatpush1.msra.mxu0 0.0
      %751 = vmatprep.subr.mxu0 0.0
      %752 = vmatpush1.msra.mxu0 0.0
      %753 = vmatprep.subr.mxu0 0.0
      %754 = vmatpush1.msra.mxu0 0.0
      %755 = vmatprep.subr.mxu0 0.0
      %756 = vmatpush1.msra.mxu0 0.0
      %757 = vmatprep.subr.mxu0 0.0
      %758 = vmatpush1.msra.mxu0 0.0
      %759 = vmatprep.subr.mxu0 0.0
      %760 = vmatpush1.msra.mxu0 0.0
      %761 = vmatprep.subr.mxu0 0.0
      %762 = vmatpush1.msra.mxu0 0.0
      %763 = vmatprep.subr.mxu0 0.0
      %764 = vmatpush1.msra.mxu0 0.0
      %765 = vmatprep.subr.mxu0 0.0
      %766 = vmatpush1.msra.mxu0 0.0
      %767 = vmatprep.subr.mxu0 0.0
      %768 = vmatpush1.msra.mxu0 0.0
      %769 = vmatprep.subr.mxu0 0.0
      %770 = vmatpush1.msra.mxu0 0.0
      %771 = vmatprep.subr.mxu0 0.0
      %772 = vmatpush1.msra.mxu0 0.0
      %773 = vmatprep.subr.mxu0 0.0
      %774 = vmatpush1.msra.mxu0 0.0
      %775 = vmatprep.subr.mxu0 0.0
      %776 = vmatpush1.msra.mxu0 0.0
      %777 = vmatprep.subr.mxu0 0.0
      %778 = vmatpush1.msra.mxu0 0.0
      %779 = vmatprep.subr.mxu0 0.0
      %780 = vmatpush1.msra.mxu0 0.0
      %781 = vmatprep.subr.mxu0 0.0
      %782 = vmatpush1.msra.mxu0 0.0
      %783 = vmatprep.subr.mxu0 0.0
      %784 = vmatpush1.msra.mxu0 0.0
      %785 = vmatprep.subr.mxu0 0.0
      %786 = vmatpush1.msra.mxu0 0.0
      %787 = vmatprep.subr.mxu0 0.0
      %788 = vmatpush1.msra.mxu0 0.0
      %789 = vmatprep.subr.mxu0 0.0
      %790 = vmatpush1.msra.mxu0 0.0
      %791 = vmatprep.subr.mxu0 0.0
      %792 = vmatpush1.msra.mxu0 0.0
      %793 = vmatprep.subr.mxu0 0.0
      %794 = vmatpush1.msra.mxu0 0.0
      %795 = vmatprep.mubr.f32.mxu0 0.0
      %796 = vmatmul.mubr.f32.gmra.mrb[0].mxu0 %v729
      %v797 = vpop.f32.mrb[0].mxu0
      %v798 = vadd.f32 0.0, %v797
      %v799 = vpop.f32.mrb[0].mxu0
      %800 = vdwg.mxu0
      %802 = vrot.lane.b32.xlu0 %v798, 16
      %v803 = vpop.permute.xlu0 %802
      %vm805 = vcmask 261248
      %806 = vst.msk [vmem:[#allocation2] sm:$0xff] %vm805, %v803
      %v807 = vld [vmem:[#allocation2] sm:$0xff]
      %v808 = vld [vmem:[%s5] sm:$0xff]
      %v809 = vld [vmem:[%s5 + $0x8] sm:$0xff]
      %v810 = vld [vmem:[%s5 + $0x10] sm:$0xff]
      %v811 = vld [vmem:[%s5 + $0x18] sm:$0xff]
      %v812 = vld [vmem:[%s6] sm:$0x1]
      %v814 = vlaneseq
      %v815 = vshrl.u32 %v814, 7
      %v816 = vsub.s32 0, %v815
      %v817 = vrot.slane %v812, %v816
      %vm819 = vcmask 261120
      %v821 = vsel %vm819, %v807, 0
      %823 = vmatprep.subr.mxu0 0.0
      %824 = vmatpush1.msra.mxu0 %v808
      %825 = vmatprep.subr.mxu0 0.0
      %826 = vmatpush1.msra.mxu0 %v809
      %827 = vmatprep.subr.mxu0 0.0
      %828 = vmatpush1.msra.mxu0 %v810
      %829 = vmatprep.subr.mxu0 0.0
      %830 = vmatpush1.msra.mxu0 %v811
      %831 = vmatprep.subr.mxu0 0.0
      %832 = vmatpush1.msra.mxu0 0.0
      %833 = vmatprep.subr.mxu0 0.0
      %834 = vmatpush1.msra.mxu0 0.0
      %835 = vmatprep.subr.mxu0 0.0
      %836 = vmatpush1.msra.mxu0 0.0
      %837 = vmatprep.subr.mxu0 0.0
      %838 = vmatpush1.msra.mxu0 0.0
      %839 = vmatprep.subr.mxu0 0.0
      %840 = vmatpush1.msra.mxu0 0.0
      %841 = vmatprep.subr.mxu0 0.0
      %842 = vmatpush1.msra.mxu0 0.0
      %843 = vmatprep.subr.mxu0 0.0
      %844 = vmatpush1.msra.mxu0 0.0
      %845 = vmatprep.subr.mxu0 0.0
      %846 = vmatpush1.msra.mxu0 0.0
      %847 = vmatprep.subr.mxu0 0.0
      %848 = vmatpush1.msra.mxu0 0.0
      %849 = vmatprep.subr.mxu0 0.0
      %850 = vmatpush1.msra.mxu0 0.0
      %851 = vmatprep.subr.mxu0 0.0
      %852 = vmatpush1.msra.mxu0 0.0
      %853 = vmatprep.subr.mxu0 0.0
      %854 = vmatpush1.msra.mxu0 0.0
      %855 = vmatprep.subr.mxu0 0.0
      %856 = vmatpush1.msra.mxu0 0.0
      %857 = vmatprep.subr.mxu0 0.0
      %858 = vmatpush1.msra.mxu0 0.0
      %859 = vmatprep.subr.mxu0 0.0
      %860 = vmatpush1.msra.mxu0 0.0
      %861 = vmatprep.subr.mxu0 0.0
      %862 = vmatpush1.msra.mxu0 0.0
      %863 = vmatprep.subr.mxu0 0.0
      %864 = vmatpush1.msra.mxu0 0.0
      %865 = vmatprep.subr.mxu0 0.0
      %866 = vmatpush1.msra.mxu0 0.0
      %867 = vmatprep.subr.mxu0 0.0
      %868 = vmatpush1.msra.mxu0 0.0
      %869 = vmatprep.subr.mxu0 0.0
      %870 = vmatpush1.msra.mxu0 0.0
      %871 = vmatprep.subr.mxu0 0.0
      %872 = vmatpush1.msra.mxu0 0.0
      %873 = vmatprep.subr.mxu0 0.0
      %874 = vmatpush1.msra.mxu0 0.0
      %875 = vmatprep.subr.mxu0 0.0
      %876 = vmatpush1.msra.mxu0 0.0
      %877 = vmatprep.subr.mxu0 0.0
      %878 = vmatpush1.msra.mxu0 0.0
      %879 = vmatprep.subr.mxu0 0.0
      %880 = vmatpush1.msra.mxu0 0.0
      %881 = vmatprep.subr.mxu0 0.0
      %882 = vmatpush1.msra.mxu0 0.0
      %883 = vmatprep.subr.mxu0 0.0
      %884 = vmatpush1.msra.mxu0 0.0
      %885 = vmatprep.subr.mxu0 0.0
      %886 = vmatpush1.msra.mxu0 0.0
      %887 = vmatprep.mubr.f32.mxu0 0.0
      %888 = vmatmul.mubr.f32.gmra.mrb[0].mxu0 %v821
      %v889 = vpop.f32.mrb[0].mxu0
      %v890 = vadd.f32 %v817, %v889
      %v891 = vpop.f32.mrb[0].mxu0
      %892 = vdwg.mxu0
      %v893 = vld [vmem:[%s431] sm:$0xff]
      %v894 = vadd.f32 %v890, %v893
      %v895 = vsel %vm819, %v894, 0.0
      %896 = vadd.xlane.f32.xlu0 %v895
      %v897 = vpop.xlane.xlu0 %896
      %v898 = vrcp.pop 32.0
      %v899 = vmul.f32 %v897, %v898
      %v900 = vsub.f32 %v894, %v899
      %v901 = vmul.f32 %v900, %v900
      %v902 = vsel %vm819, %v901, 0.0
      %903 = vadd.xlane.f32.xlu0 %v902
      %v904 = vpop.xlane.xlu0 %903
      %v905 = vmul.f32 %v904, %v898
      %v906 = vadd.f32 %v905, 1e-05
      %v907 = vrsqrt.pop %v906
      %v908 = vmul.f32 %v900, %v907
      %v909 = vld [vmem:[%s7] sm:$0x1]
      %v911 = vlaneseq
      %v912 = vshrl.u32 %v911, 7
      %v913 = vsub.s32 0, %v912
      %v914 = vrot.slane %v909, %v913
      %v916 = vmul.f32 %v908, %v914
      %v917 = vld [vmem:[%s8] sm:$0x1]
      %v919 = vlaneseq
      %v920 = vshrl.u32 %v919, 7
      %v921 = vsub.s32 0, %v920
      %v922 = vrot.slane %v917, %v921
      %v924 = vadd.f32 %v916, %v922
      %v925 = vld [vmem:[%s438] sm:$0xff]
      %927 = vset.pattern.permute.xlu0 0
      %928 = vperm.xlu0 %927, %v925
      %v929 = vpop.permute.xlu0 %928
      %v931 = vmul.f32 %v924, %v929
      %932 = vst.msk [vmem:[%s445] sm:$0xff] %vm819, %v931
      %p933 = scmp.lt.s32.totalorder %s24, 1
      %s934 = scalar_select %p933, %s24, 1
      %p935 = scmp.lt.s32.totalorder %s25, 0
      %s936 = scalar_select %p935, %s25, 0
      %s937 = sadd.s32 %s936, %s934
      %s938 = smul.addr %s937, 8
      %s939 = scalar_lea.vmem %s9, %s938
      // Predicated region
      $region57: #{decoder_forward.13} parent=55 // pred_check
        %p940 = pneg %p272
      $region58: #{decoder_forward.13} parent=55 // pred_check_branch
        %942 = sbr.rel (%p940) target = $region60
      $region59: #{decoder_forward.13} parent=55 // pred_region
        _
      $region60: #{decoder_forward.13} parent=55 // pred_fallthru
        _
    $region56: #{decoder_forward.13} parent=5 // pred_fallthru
      _
    %p943 = scmp.le.s32.totalorder 2, %s15
    // Predicated region
    $region61: #{decoder_forward.13} parent=5 // pred_check
      %p944 = pneg %p943
    $region62: #{decoder_forward.13} parent=5 // pred_check_branch
      %946 = sbr.rel (%p944) target = $region64
    $region63: #{decoder_forward.13} parent=5 // pred_region
      %s947 = ssub.s32 %s15, 2
      // Predicated region
      $region65: #{decoder_forward.13} parent=63 // pred_check
        %p948 = pneg %p278
      $region66: #{decoder_forward.13} parent=63 // pred_check_branch
        %950 = sbr.rel (%p948) target = $region68
      $region67: #{decoder_forward.13} parent=63 // pred_region
        %p951 = scmp.lt.s32.totalorder %s26, 1
        %s952 = scalar_select %p951, %s26, 1
        %p953 = scmp.lt.s32.totalorder %s27, 0
        %s954 = scalar_select %p953, %s27, 0
        %s955 = sadd.s32 %s954, %s952
        %s956 = smul.addr %s955, 8
        %s957 = scalar_lea.vmem %s9, %s956
      $region68: #{decoder_forward.13} parent=63 // pred_fallthru
        _
    $region64: #{decoder_forward.13} parent=5 // pred_fallthru
      _
  $region6: #{decoder_forward.13} parent=0 // loop_footer
    %s19 = sadd.s32 1, %s15
  $region7: #{decoder_forward.13} parent=0 // loop_footer_branch
    %14 = sbr.rel target = $region3
  $region8: #{decoder_forward.13} parent=0 // loop_exit
    _

// kernel: decoder_forward.17
$region0: #{decoder_forward.17}
  #allocation0 [shape = 'u32[]', space=smem, size = 0x4, offset = 0x4, fixed_abs, tag = 'smem constant byte address 0x4 - core index']
  #allocation1 [shape = 'u32[144,128]{1,0:T(1,128)}', space=vmem, size = 0x12000, scoped, tag = 'internal scratch']
  %s0 = inlined_call_operand.vmem [shape: f32[16,32], index: 0, kind: input, shape index: {}]
  %s1 = inlined_call_operand.vmem [shape: f32[16,1], index: 1, kind: input, shape index: {}]
  %s2 = inlined_call_operand.vmem [shape: f32[32,128], index: 2, kind: input, shape index: {}]
  %s3 = inlined_call_operand.vmem [shape: f32[1,128], index: 3, kind: input, shape index: {}]
  %s4 = inlined_call_operand.vmem [shape: f32[128,32], index: 4, kind: input, shape index: {}]
  %s5 = inlined_call_operand.vmem [shape: f32[1,32], index: 5, kind: input, shape index: {}]
  %s6 = inlined_call_operand.vmem [shape: f32[1,32], index: 6, kind: input, shape index: {}]
  %s7 = inlined_call_operand.vmem [shape: f32[1,32], index: 7, kind: input, shape index: {}]
  %s8 = inlined_call_operand.vmem [shape: f32[16,32], index: 8, kind: output, shape index: {}]
  %s9 = sld [smem:[#allocation0]]
  $region42: #{decoder_forward.17} parent=0
    _
  %s11 = ssub.s32 1, %s9
  %s12 = scalar_select 0, %s11, %s9
  // Predicated region
  $region2: #{decoder_forward.17} parent=0 // pred_check
    _
  $region3: #{decoder_forward.17} parent=0 // pred_check_branch
    %14 = sbr.rel (0) target = $region5
  $region4: #{decoder_forward.17} parent=0 // pred_region
    _
  $region5: #{decoder_forward.17} parent=0 // pred_fallthru
    _
  // Predicated region
  $region6: #{decoder_forward.17} parent=0 // pred_check
    _
  $region7: #{decoder_forward.17} parent=0 // pred_check_branch
    %16 = sbr.rel (0) target = $region9
  $region8: #{decoder_forward.17} parent=0 // pred_region
    _
  $region9: #{decoder_forward.17} parent=0 // pred_fallthru
    _
  // Predicated region
  $region10: #{decoder_forward.17} parent=0 // pred_check
    _
  $region11: #{decoder_forward.17} parent=0 // pred_check_branch
    %18 = sbr.rel (0) target = $region13
  $region12: #{decoder_forward.17} parent=0 // pred_region
    _
  $region13: #{decoder_forward.17} parent=0 // pred_fallthru
    _
  // Predicated region
  $region14: #{decoder_forward.17} parent=0 // pred_check
    _
  $region15: #{decoder_forward.17} parent=0 // pred_check_branch
    %20 = sbr.rel (0) target = $region17
  $region16: #{decoder_forward.17} parent=0 // pred_region
    _
  $region17: #{decoder_forward.17} parent=0 // pred_fallthru
    _
  // Predicated region
  $region18: #{decoder_forward.17} parent=0 // pred_check
    _
  $region19: #{decoder_forward.17} parent=0 // pred_check_branch
    %22 = sbr.rel (0) target = $region21
  $region20: #{decoder_forward.17} parent=0 // pred_region
    _
  $region21: #{decoder_forward.17} parent=0 // pred_fallthru
    _
  // Predicated region
  $region22: #{decoder_forward.17} parent=0 // pred_check
    _
  $region23: #{decoder_forward.17} parent=0 // pred_check_branch
    %24 = sbr.rel (0) target = $region25
  $region24: #{decoder_forward.17} parent=0 // pred_region
    _
  $region25: #{decoder_forward.17} parent=0 // pred_fallthru
    _
  // Predicated region
  $region26: #{decoder_forward.17} parent=0 // pred_check
    _
  $region27: #{decoder_forward.17} parent=0 // pred_check_branch
    %26 = sbr.rel (0) target = $region29
  $region28: #{decoder_forward.17} parent=0 // pred_region
    _
  $region29: #{decoder_forward.17} parent=0 // pred_fallthru
    _
  // Predicated region
  $region30: #{decoder_forward.17} parent=0 // pred_check
    _
  $region31: #{decoder_forward.17} parent=0 // pred_check_branch
    %28 = sbr.rel (0) target = $region33
  $region32: #{decoder_forward.17} parent=0 // pred_region
    _
  $region33: #{decoder_forward.17} parent=0 // pred_fallthru
    _
  %v29 = vld [vmem:[%s0] sm:$0xff]
  %v30 = vld [vmem:[%s0 + $0x8] sm:$0xff]
  %v31 = vld [vmem:[%s2] sm:$0xff]
  %v32 = vld [vmem:[%s2 + $0x8] sm:$0xff]
  %v33 = vld [vmem:[%s2 + $0x10] sm:$0xff]
  %v34 = vld [vmem:[%s2 + $0x18] sm:$0xff]
  %v35 = vld [vmem:[%s3] sm:$0x1]
  %v37 = vlaneseq
  %v38 = vshrl.u32 %v37, 7
  %v39 = vsub.s32 0, %v38
  %v40 = vrot.slane %v35, %v39
  %vm42 = vcmask 261120
  %v44 = vsel %vm42, %v29, 0
  %v47 = vsel %vm42, %v30, 0
  %49 = vmatprep.subr.mxu0 0.0
  %50 = vmatpush1.msra.mxu0 %v31
  %51 = vmatprep.subr.mxu0 0.0
  %52 = vmatpush1.msra.mxu0 %v32
  %53 = vmatprep.subr.mxu0 0.0
  %54 = vmatpush1.msra.mxu0 %v33
  %55 = vmatprep.subr.mxu0 0.0
  %56 = vmatpush1.msra.mxu0 %v34
  %57 = vmatprep.subr.mxu0 0.0
  %58 = vmatpush1.msra.mxu0 0.0
  %59 = vmatprep.subr.mxu0 0.0
  %60 = vmatpush1.msra.mxu0 0.0
  %61 = vmatprep.subr.mxu0 0.0
  %62 = vmatpush1.msra.mxu0 0.0
  %63 = vmatprep.subr.mxu0 0.0
  %64 = vmatpush1.msra.mxu0 0.0
  %65 = vmatprep.subr.mxu0 0.0
  %66 = vmatpush1.msra.mxu0 0.0
  %67 = vmatprep.subr.mxu0 0.0
  %68 = vmatpush1.msra.mxu0 0.0
  %69 = vmatprep.subr.mxu0 0.0
  %70 = vmatpush1.msra.mxu0 0.0
  %71 = vmatprep.subr.mxu0 0.0
  %72 = vmatpush1.msra.mxu0 0.0
  %73 = vmatprep.subr.mxu0 0.0
  %74 = vmatpush1.msra.mxu0 0.0
  %75 = vmatprep.subr.mxu0 0.0
  %76 = vmatpush1.msra.mxu0 0.0
  %77 = vmatprep.subr.mxu0 0.0
  %78 = vmatpush1.msra.mxu0 0.0
  %79 = vmatprep.subr.mxu0 0.0
  %80 = vmatpush1.msra.mxu0 0.0
  %81 = vmatprep.subr.mxu0 0.0
  %82 = vmatpush1.msra.mxu0 0.0
  %83 = vmatprep.subr.mxu0 0.0
  %84 = vmatpush1.msra.mxu0 0.0
  %85 = vmatprep.subr.mxu0 0.0
  %86 = vmatpush1.msra.mxu0 0.0
  %87 = vmatprep.subr.mxu0 0.0
  %88 = vmatpush1.msra.mxu0 0.0
  %89 = vmatprep.subr.mxu0 0.0
  %90 = vmatpush1.msra.mxu0 0.0
  %91 = vmatprep.subr.mxu0 0.0
  %92 = vmatpush1.msra.mxu0 0.0
  %93 = vmatprep.subr.mxu0 0.0
  %94 = vmatpush1.msra.mxu0 0.0
  %95 = vmatprep.subr.mxu0 0.0
  %96 = vmatpush1.msra.mxu0 0.0
  %97 = vmatprep.subr.mxu0 0.0
  %98 = vmatpush1.msra.mxu0 0.0
  %99 = vmatprep.subr.mxu0 0.0
  %100 = vmatpush1.msra.mxu0 0.0
  %101 = vmatprep.subr.mxu0 0.0
  %102 = vmatpush1.msra.mxu0 0.0
  %103 = vmatprep.subr.mxu0 0.0
  %104 = vmatpush1.msra.mxu0 0.0
  %105 = vmatprep.subr.mxu0 0.0
  %106 = vmatpush1.msra.mxu0 0.0
  %107 = vmatprep.subr.mxu0 0.0
  %108 = vmatpush1.msra.mxu0 0.0
  %109 = vmatprep.subr.mxu0 0.0
  %110 = vmatpush1.msra.mxu0 0.0
  %111 = vmatprep.subr.mxu0 0.0
  %112 = vmatpush1.msra.mxu0 0.0
  %113 = vmatprep.mubr.f32.mxu0 0.0
  %114 = vmatmul.mubr.f32.gmra.mrb[0].mxu0 %v44
  %v115 = vpop.f32.mrb[0].mxu0
  %v116 = vadd.f32 %v40, %v115
  %v117 = vpop.f32.mrb[0].mxu0
  %118 = vmatprep.mubr.f32.mxu0 0.0
  %119 = vmatmul.mubr.f32.gmra.mrb[0].mxu0 %v47
  %v120 = vpop.f32.mrb[0].mxu0
  %v121 = vadd.f32 %v40, %v120
  %v122 = vpop.f32.mrb[0].mxu0
  %123 = vdwg.mxu0
  %v124 = vmax.f32 %v116, 0.0
  %v125 = vmax.f32 %v121, 0.0
  %v126 = vld [vmem:[%s4] sm:$0xff]
  %v127 = vld [vmem:[%s4 + $0x8] sm:$0xff]
  %v128 = vld [vmem:[%s4 + $0x10] sm:$0xff]
  %v129 = vld [vmem:[%s4 + $0x18] sm:$0xff]
  %v130 = vld [vmem:[%s4 + $0x20] sm:$0xff]
  %v131 = vld [vmem:[%s4 + $0x28] sm:$0xff]
  %v132 = vld [vmem:[%s4 + $0x30] sm:$0xff]
  %v133 = vld [vmem:[%s4 + $0x38] sm:$0xff]
  %v134 = vld [vmem:[%s4 + $0x40] sm:$0xff]
  %v135 = vld [vmem:[%s4 + $0x48] sm:$0xff]
  %v136 = vld [vmem:[%s4 + $0x50] sm:$0xff]
  %v137 = vld [vmem:[%s4 + $0x58] sm:$0xff]
  %v138 = vld [vmem:[%s4 + $0x60] sm:$0xff]
  %v139 = vld [vmem:[%s4 + $0x68] sm:$0xff]
  %v140 = vld [vmem:[%s4 + $0x70] sm:$0xff]
  %v141 = vld [vmem:[%s4 + $0x78] sm:$0xff]
  %v142 = vld [vmem:[%s5] sm:$0x1]
  %v144 = vlaneseq
  %v145 = vshrl.u32 %v144, 7
  %v146 = vsub.s32 0, %v145
  %v147 = vrot.slane %v142, %v146
  %149 = vmatprep.subr.mxu0 0.0
  %150 = vmatpush1.msra.mxu0 %v126
  %151 = vmatprep.subr.mxu0 0.0
  %152 = vmatpush1.msra.mxu0 %v127
  %153 = vmatprep.subr.mxu0 0.0
  %154 = vmatpush1.msra.mxu0 %v128
  %155 = vmatprep.subr.mxu0 0.0
  %156 = vmatpush1.msra.mxu0 %v129
  %157 = vmatprep.subr.mxu0 0.0
  %158 = vmatpush1.msra.mxu0 %v130
  %159 = vmatprep.subr.mxu0 0.0
  %160 = vmatpush1.msra.mxu0 %v131
  %161 = vmatprep.subr.mxu0 0.0
  %162 = vmatpush1.msra.mxu0 %v132
  %163 = vmatprep.subr.mxu0 0.0
  %164 = vmatpush1.msra.mxu0 %v133
  %165 = vmatprep.subr.mxu0 0.0
  %166 = vmatpush1.msra.mxu0 %v134
  %167 = vmatprep.subr.mxu0 0.0
  %168 = vmatpush1.msra.mxu0 %v135
  %169 = vmatprep.subr.mxu0 0.0
  %170 = vmatpush1.msra.mxu0 %v136
  %171 = vmatprep.subr.mxu0 0.0
  %172 = vmatpush1.msra.mxu0 %v137
  %173 = vmatprep.subr.mxu0 0.0
  %174 = vmatpush1.msra.mxu0 %v138
  %175 = vmatprep.subr.mxu0 0.0
  %176 = vmatpush1.msra.mxu0 %v139
  %177 = vmatprep.subr.mxu0 0.0
  %178 = vmatpush1.msra.mxu0 %v140
  %179 = vmatprep.subr.mxu0 0.0
  %180 = vmatpush1.msra.mxu0 %v141
  %181 = vmatprep.subr.mxu0 0.0
  %182 = vmatpush1.msra.mxu0 0.0
  %183 = vmatprep.subr.mxu0 0.0
  %184 = vmatpush1.msra.mxu0 0.0
  %185 = vmatprep.subr.mxu0 0.0
  %186 = vmatpush1.msra.mxu0 0.0
  %187 = vmatprep.subr.mxu0 0.0
  %188 = vmatpush1.msra.mxu0 0.0
  %189 = vmatprep.subr.mxu0 0.0
  %190 = vmatpush1.msra.mxu0 0.0
  %191 = vmatprep.subr.mxu0 0.0
  %192 = vmatpush1.msra.mxu0 0.0
  %193 = vmatprep.subr.mxu0 0.0
  %194 = vmatpush1.msra.mxu0 0.0
  %195 = vmatprep.subr.mxu0 0.0
  %196 = vmatpush1.msra.mxu0 0.0
  %197 = vmatprep.subr.mxu0 0.0
  %198 = vmatpush1.msra.mxu0 0.0
  %199 = vmatprep.subr.mxu0 0.0
  %200 = vmatpush1.msra.mxu0 0.0
  %201 = vmatprep.subr.mxu0 0.0
  %202 = vmatpush1.msra.mxu0 0.0
  %203 = vmatprep.subr.mxu0 0.0
  %204 = vmatpush1.msra.mxu0 0.0
  %205 = vmatprep.subr.mxu0 0.0
  %206 = vmatpush1.msra.mxu0 0.0
  %207 = vmatprep.subr.mxu0 0.0
  %208 = vmatpush1.msra.mxu0 0.0
  %209 = vmatprep.subr.mxu0 0.0
  %210 = vmatpush1.msra.mxu0 0.0
  %211 = vmatprep.subr.mxu0 0.0
  %212 = vmatpush1.msra.mxu0 0.0
  %213 = vmatprep.mubr.f32.mxu0 0.0
  %214 = vmatmul.mubr.f32.gmra.mrb[0].mxu0 %v124
  %v215 = vpop.f32.mrb[0].mxu0
  %v216 = vadd.f32 %v147, %v215
  %v217 = vpop.f32.mrb[0].mxu0
  %218 = vmatprep.mubr.f32.mxu0 0.0
  %219 = vmatmul.mubr.f32.gmra.mrb[0].mxu0 %v125
  %v220 = vpop.f32.mrb[0].mxu0
  %v221 = vadd.f32 %v147, %v220
  %v222 = vpop.f32.mrb[0].mxu0
  %223 = vdwg.mxu0
  %v224 = vadd.f32 %v216, %v29
  %v225 = vadd.f32 %v221, %v30
  %v226 = vsel %vm42, %v224, 0.0
  %227 = vadd.xlane.f32.xlu0 %v226
  %v228 = vpop.xlane.xlu0 %227
  %v229 = vsel %vm42, %v225, 0.0
  %230 = vadd.xlane.f32.xlu0 %v229
  %v231 = vpop.xlane.xlu0 %230
  %v232 = vrcp.pop 32.0
  %v233 = vmul.f32 %v228, %v232
  %v234 = vmul.f32 %v231, %v232
  %v235 = vsub.f32 %v224, %v233
  %v236 = vsub.f32 %v225, %v234
  %v237 = vmul.f32 %v235, %v235
  %v238 = vmul.f32 %v236, %v236
  %v239 = vsel %vm42, %v237, 0.0
  %240 = vadd.xlane.f32.xlu0 %v239
  %v241 = vpop.xlane.xlu0 %240
  %v242 = vsel %vm42, %v238, 0.0
  %243 = vadd.xlane.f32.xlu0 %v242
  %v244 = vpop.xlane.xlu0 %243
  %v245 = vmul.f32 %v241, %v232
  %v246 = vmul.f32 %v244, %v232
  %v247 = vadd.f32 %v245, 1e-05
  %v248 = vadd.f32 %v246, 1e-05
  %v249 = vrsqrt.pop %v247
  %v250 = vrsqrt.pop %v248
  %v251 = vmul.f32 %v235, %v249
  %v252 = vmul.f32 %v236, %v250
  %v253 = vld [vmem:[%s6] sm:$0x1]
  %v255 = vlaneseq
  %v256 = vshrl.u32 %v255, 7
  %v257 = vsub.s32 0, %v256
  %v258 = vrot.slane %v253, %v257
  %v260 = vmul.f32 %v251, %v258
  %v261 = vmul.f32 %v252, %v258
  %v262 = vld [vmem:[%s7] sm:$0x1]
  %v264 = vlaneseq
  %v265 = vshrl.u32 %v264, 7
  %v266 = vsub.s32 0, %v265
  %v267 = vrot.slane %v262, %v266
  %v269 = vadd.f32 %v260, %v267
  %v270 = vadd.f32 %v261, %v267
  %v271 = vld [vmem:[%s1] sm:$0xff]
  %v272 = vld [vmem:[%s1 + $0x8] sm:$0xff]
  %274 = vset.pattern.permute.xlu0 0
  %275 = vperm.xlu0 %274, %v271
  %v276 = vpop.permute.xlu0 %275
  %279 = vset.pattern.permute.xlu0 0
  %280 = vperm.xlu0 %279, %v272
  %v281 = vpop.permute.xlu0 %280
  %v283 = vmul.f32 %v269, %v276
  %v284 = vmul.f32 %v270, %v281
  %285 = vst.msk [vmem:[%s8] sm:$0xff] %vm42, %v283
  %286 = vst.msk [vmem:[%s8 + $0x8] sm:$0xff] %vm42, %v284
  // Predicated region
  $region34: #{decoder_forward.17} parent=0 // pred_check
    _
  $region35: #{decoder_forward.17} parent=0 // pred_check_branch
    %288 = sbr.rel (0) target = $region37
  $region36: #{decoder_forward.17} parent=0 // pred_region
    _
  $region37: #{decoder_forward.17} parent=0 // pred_fallthru
    _
  // Predicated region
  $region38: #{decoder_forward.17} parent=0 // pred_check
    _
  $region39: #{decoder_forward.17} parent=0 // pred_check_branch
    %290 = sbr.rel (0) target = $region41
  $region40: #{decoder_forward.17} parent=0 // pred_region
    _
  $region41: #{decoder_forward.17} parent=0 // pred_fallthru
    _

// kernel: decoder_forward.16
$region0: #{decoder_forward.16}
  #allocation0 [shape = 'u32[]', space=smem, size = 0x4, offset = 0x4, fixed_abs, tag = 'smem constant byte address 0x4 - core index']
  #allocation1 [shape = 'u32[144,128]{1,0:T(1,128)}', space=vmem, size = 0x12000, scoped, tag = 'internal scratch']
  #allocation2 [shape = 'f32[8,32]{1,0:T(8,128)}', space=vmem, size = 0x1000, scoped, tag = 'scratch operand']
  %s0 = inlined_call_operand.vmem [shape: f32[2,8,32], index: 0, kind: input, shape index: {}]
  %s1 = inlined_call_operand.vmem [shape: f32[2,10,64], index: 1, kind: input, shape index: {}]
  %s2 = inlined_call_operand.vmem [shape: f32[2,1,10], index: 2, kind: input, shape index: {}]
  %s3 = inlined_call_operand.vmem [shape: f32[2,8,32], index: 3, kind: input, shape index: {}]
  %s4 = inlined_call_operand.vmem [shape: f32[2,8,1], index: 4, kind: input, shape index: {}]
  %s5 = inlined_call_operand.vmem [shape: f32[32,32], index: 5, kind: input, shape index: {}]
  %s6 = inlined_call_operand.vmem [shape: f32[1,32], index: 6, kind: input, shape index: {}]
  %s7 = inlined_call_operand.vmem [shape: f32[1,32], index: 7, kind: input, shape index: {}]
  %s8 = inlined_call_operand.vmem [shape: f32[1,32], index: 8, kind: input, shape index: {}]
  %s9 = inlined_call_operand.vmem [shape: f32[2,8,32], index: 9, kind: output, shape index: {}]
  %s10 = sld [smem:[#allocation0]]
  $region69: #{decoder_forward.16} parent=0
    _
  %s12 = ssub.s32 1, %s10
  %s13 = scalar_select 0, %s12, %s10
  loop: start=0, step=1, limit=4
  $region2: #{decoder_forward.16} parent=0 // loop_pre_header
    _
  $region3: #{decoder_forward.16} parent=0 // loop_header
    %s15 = sphi 0, %s19
    %p16 = scmp.ge.s32.totalorder %s15, 4
    %s22 = sphi 0, %s34
    %s23 = sphi 0, %s30
    %s24 = sphi 0, %s22
    %s25 = sphi 0, %s23
    %s26 = sphi 0, %s24
    %s27 = sphi 0, %s25
    %s39 = sphi 0, %s41
    %s42 = sphi 0, %s39
    %s43 = sphi 0, %s42
    %s59 = sphi 0, %s43
    %s65 = sphi 0, %s67
    %s68 = sphi 0, %s65
    %s69 = sphi 0, %s68
    %s85 = sphi 0, %s69
    %s91 = sphi 0, %s93
    %s94 = sphi 0, %s91
    %s95 = sphi 0, %s94
    %s111 = sphi 0, %s95
    %s119 = sphi 0, %s121
    %s122 = sphi 0, %s119
    %s123 = sphi 0, %s122
    %s139 = sphi 0, %s123
    %s147 = sphi 0, %s149
    %s150 = sphi 0, %s147
    %s151 = sphi 0, %s150
    %s167 = sphi 0, %s151
    %s171 = sphi 0, %s171
    %s173 = sphi 0, %s171
    %s174 = sphi 0, %s173
    %s188 = sphi 0, %s174
    %s192 = sphi 0, %s192
    %s194 = sphi 0, %s192
    %s195 = sphi 0, %s194
    %s209 = sphi 0, %s195
    %s213 = sphi 0, %s213
    %s215 = sphi 0, %s213
    %s216 = sphi 0, %s215
    %s230 = sphi 0, %s216
    %s234 = sphi 0, %s234
    %s236 = sphi 0, %s234
    %s237 = sphi 0, %s236
    %s251 = sphi 0, %s237
    %s259 = sphi 0, %s261
    %s262 = sphi 0, %s259
    %s263 = sphi 0, %s262
    %s279 = sphi 0, %s263
  $region4: #{decoder_forward.16} parent=0 // loop_header_branch
    %18 = sbr.rel (%p16) target = $region8
  $region5: #{decoder_forward.16} parent=0 // loop_body
    %s20 = ssub.s32 %s15, 1
    %s21 = ssub.s32 %s15, 2
    %s28 = sadd.s32 1, %s23
    %p29 = scmp.ge.s32.totalorder %s28, 1
    %s30 = scalar_select %p29, 0, %s28
    %s31 = sadd.s32 1, %s22
    %s32 = scalar_select %p29, %s31, %s22
    %p33 = scmp.ge.s32.totalorder %s32, 2
    %s34 = scalar_select %p33, 0, %s32
    %s35 = ssub.s32 %s22, %s34
    %s36 = ssub.s32 %s23, %s30
    %s37 = sor.u32 %s35, %s36
    %p38 = scmp.eq.s32.totalorder %s37, 0
    %s40 = sadd.s32 %s39, 1
    %s41 = scalar_select %p38, %s39, %s40
    %p44 = pneg %p38
    %p45 = scmp.eq.s32.totalorder %s15, 1
    %p46 = por %p44, %p45
    %p47 = scmp.ne.s32.totalorder %s39, %s42
    %p48 = scmp.eq.s32.totalorder %s15, 0
    %p49 = por %p47, %p48
    %p50 = scmp.ne.s32.totalorder %s39, %s42
    %p51 = scmp.eq.s32.totalorder %s20, 1
    %p52 = por %p50, %p51
    %p53 = scmp.ne.s32.totalorder %s42, %s43
    %p54 = scmp.eq.s32.totalorder %s20, 0
    %p55 = por %p53, %p54
    %p56 = scmp.ne.s32.totalorder %s42, %s43
    %p57 = scmp.eq.s32.totalorder %s21, 1
    %p58 = por %p56, %p57
    %p60 = scmp.ne.s32.totalorder %s43, %s59
    %p61 = scmp.eq.s32.totalorder %s21, 0
    %p62 = por %p60, %p61
    %s63 = ssub.s32 %s22, %s34
    %p64 = scmp.eq.s32.totalorder %s63, 0
    %s66 = sadd.s32 %s65, 1
    %s67 = scalar_select %p64, %s65, %s66
    %p70 = pneg %p64
    %p71 = scmp.eq.s32.totalorder %s15, 1
    %p72 = por %p70, %p71
    %p73 = scmp.ne.s32.totalorder %s65, %s68
    %p74 = scmp.eq.s32.totalorder %s15, 0
    %p75 = por %p73, %p74
    %p76 = scmp.ne.s32.totalorder %s65, %s68
    %p77 = scmp.eq.s32.totalorder %s20, 1
    %p78 = por %p76, %p77
    %p79 = scmp.ne.s32.totalorder %s68, %s69
    %p80 = scmp.eq.s32.totalorder %s20, 0
    %p81 = por %p79, %p80
    %p82 = scmp.ne.s32.totalorder %s68, %s69
    %p83 = scmp.eq.s32.totalorder %s21, 1
    %p84 = por %p82, %p83
    %p86 = scmp.ne.s32.totalorder %s69, %s85
    %p87 = scmp.eq.s32.totalorder %s21, 0
    %p88 = por %p86, %p87
    %s89 = ssub.s32 %s22, %s34
    %p90 = scmp.eq.s32.totalorder %s89, 0
    %s92 = sadd.s32 %s91, 1
    %s93 = scalar_select %p90, %s91, %s92
    %p96 = pneg %p90
    %p97 = scmp.eq.s32.totalorder %s15, 1
    %p98 = por %p96, %p97
    %p99 = scmp.ne.s32.totalorder %s91, %s94
    %p100 = scmp.eq.s32.totalorder %s15, 0
    %p101 = por %p99, %p100
    %p102 = scmp.ne.s32.totalorder %s91, %s94
    %p103 = scmp.eq.s32.totalorder %s20, 1
    %p104 = por %p102, %p103
    %p105 = scmp.ne.s32.totalorder %s94, %s95
    %p106 = scmp.eq.s32.totalorder %s20, 0
    %p107 = por %p105, %p106
    %p108 = scmp.ne.s32.totalorder %s94, %s95
    %p109 = scmp.eq.s32.totalorder %s21, 1
    %p110 = por %p108, %p109
    %p112 = scmp.ne.s32.totalorder %s95, %s111
    %p113 = scmp.eq.s32.totalorder %s21, 0
    %p114 = por %p112, %p113
    %s115 = ssub.s32 %s22, %s34
    %s116 = ssub.s32 %s23, %s30
    %s117 = sor.u32 %s115, %s116
    %p118 = scmp.eq.s32.totalorder %s117, 0
    %s120 = sadd.s32 %s119, 1
    %s121 = scalar_select %p118, %s119, %s120
    %p124 = pneg %p118
    %p125 = scmp.eq.s32.totalorder %s15, 1
    %p126 = por %p124, %p125
    %p127 = scmp.ne.s32.totalorder %s119, %s122
    %p128 = scmp.eq.s32.totalorder %s15, 0
    %p129 = por %p127, %p128
    %p130 = scmp.ne.s32.totalorder %s119, %s122
    %p131 = scmp.eq.s32.totalorder %s20, 1
    %p132 = por %p130, %p131
    %p133 = scmp.ne.s32.totalorder %s122, %s123
    %p134 = scmp.eq.s32.totalorder %s20, 0
    %p135 = por %p133, %p134
    %p136 = scmp.ne.s32.totalorder %s122, %s123
    %p137 = scmp.eq.s32.totalorder %s21, 1
    %p138 = por %p136, %p137
    %p140 = scmp.ne.s32.totalorder %s123, %s139
    %p141 = scmp.eq.s32.totalorder %s21, 0
    %p142 = por %p140, %p141
    %s143 = ssub.s32 %s22, %s34
    %s144 = ssub.s32 %s23, %s30
    %s145 = sor.u32 %s143, %s144
    %p146 = scmp.eq.s32.totalorder %s145, 0
    %s148 = sadd.s32 %s147, 1
    %s149 = scalar_select %p146, %s147, %s148
    %p152 = pneg %p146
    %p153 = scmp.eq.s32.totalorder %s15, 1
    %p154 = por %p152, %p153
    %p155 = scmp.ne.s32.totalorder %s147, %s150
    %p156 = scmp.eq.s32.totalorder %s15, 0
    %p157 = por %p155, %p156
    %p158 = scmp.ne.s32.totalorder %s147, %s150
    %p159 = scmp.eq.s32.totalorder %s20, 1
    %p160 = por %p158, %p159
    %p161 = scmp.ne.s32.totalorder %s150, %s151
    %p162 = scmp.eq.s32.totalorder %s20, 0
    %p163 = por %p161, %p162
    %p164 = scmp.ne.s32.totalorder %s150, %s151
    %p165 = scmp.eq.s32.totalorder %s21, 1
    %p166 = por %p164, %p165
    %p168 = scmp.ne.s32.totalorder %s151, %s167
    %p169 = scmp.eq.s32.totalorder %s21, 0
    %p170 = por %p168, %p169
    %s172 = sadd.s32 %s171, 1
    %p175 = scmp.eq.s32.totalorder %s15, 1
    %p176 = scmp.ne.s32.totalorder %s171, %s173
    %p177 = scmp.eq.s32.totalorder %s15, 0
    %p178 = por %p176, %p177
    %p179 = scmp.ne.s32.totalorder %s171, %s173
    %p180 = scmp.eq.s32.totalorder %s20, 1
    %p181 = por %p179, %p180
    %p182 = scmp.ne.s32.totalorder %s173, %s174
    %p183 = scmp.eq.s32.totalorder %s20, 0
    %p184 = por %p182, %p183
    %p185 = scmp.ne.s32.totalorder %s173, %s174
    %p186 = scmp.eq.s32.totalorder %s21, 1
    %p187 = por %p185, %p186
    %p189 = scmp.ne.s32.totalorder %s174, %s188
    %p190 = scmp.eq.s32.totalorder %s21, 0
    %p191 = por %p189, %p190
    %s193 = sadd.s32 %s192, 1
    %p196 = scmp.eq.s32.totalorder %s15, 1
    %p197 = scmp.ne.s32.totalorder %s192, %s194
    %p198 = scmp.eq.s32.totalorder %s15, 0
    %p199 = por %p197, %p198
    %p200 = scmp.ne.s32.totalorder %s192, %s194
    %p201 = scmp.eq.s32.totalorder %s20, 1
    %p202 = por %p200, %p201
    %p203 = scmp.ne.s32.totalorder %s194, %s195
    %p204 = scmp.eq.s32.totalorder %s20, 0
    %p205 = por %p203, %p204
    %p206 = scmp.ne.s32.totalorder %s194, %s195
    %p207 = scmp.eq.s32.totalorder %s21, 1
    %p208 = por %p206, %p207
    %p210 = scmp.ne.s32.totalorder %s195, %s209
    %p211 = scmp.eq.s32.totalorder %s21, 0
    %p212 = por %p210, %p211
    %s214 = sadd.s32 %s213, 1
    %p217 = scmp.eq.s32.totalorder %s15, 1
    %p218 = scmp.ne.s32.totalorder %s213, %s215
    %p219 = scmp.eq.s32.totalorder %s15, 0
    %p220 = por %p218, %p219
    %p221 = scmp.ne.s32.totalorder %s213, %s215
    %p222 = scmp.eq.s32.totalorder %s20, 1
    %p223 = por %p221, %p222
    %p224 = scmp.ne.s32.totalorder %s215, %s216
    %p225 = scmp.eq.s32.totalorder %s20, 0
    %p226 = por %p224, %p225
    %p227 = scmp.ne.s32.totalorder %s215, %s216
    %p228 = scmp.eq.s32.totalorder %s21, 1
    %p229 = por %p227, %p228
    %p231 = scmp.ne.s32.totalorder %s216, %s230
    %p232 = scmp.eq.s32.totalorder %s21, 0
    %p233 = por %p231, %p232
    %s235 = sadd.s32 %s234, 1
    %p238 = scmp.eq.s32.totalorder %s15, 1
    %p239 = scmp.ne.s32.totalorder %s234, %s236
    %p240 = scmp.eq.s32.totalorder %s15, 0
    %p241 = por %p239, %p240
    %p242 = scmp.ne.s32.totalorder %s234, %s236
    %p243 = scmp.eq.s32.totalorder %s20, 1
    %p244 = por %p242, %p243
    %p245 = scmp.ne.s32.totalorder %s236, %s237
    %p246 = scmp.eq.s32.totalorder %s20, 0
    %p247 = por %p245, %p246
    %p248 = scmp.ne.s32.totalorder %s236, %s237
    %p249 = scmp.eq.s32.totalorder %s21, 1
    %p250 = por %p248, %p249
    %p252 = scmp.ne.s32.totalorder %s237, %s251
    %p253 = scmp.eq.s32.totalorder %s21, 0
    %p254 = por %p252, %p253
    %s255 = ssub.s32 %s22, %s34
    %s256 = ssub.s32 %s23, %s30
    %s257 = sor.u32 %s255, %s256
    %p258 = scmp.eq.s32.totalorder %s257, 0
    %s260 = sadd.s32 %s259, 1
    %s261 = scalar_select %p258, %s259, %s260
    %p264 = pneg %p258
    %p265 = scmp.eq.s32.totalorder %s15, 1
    %p266 = por %p264, %p265
    %p267 = scmp.ne.s32.totalorder %s259, %s262
    %p268 = scmp.eq.s32.totalorder %s15, 0
    %p269 = por %p267, %p268
    %p270 = scmp.ne.s32.totalorder %s259, %s262
    %p271 = scmp.eq.s32.totalorder %s20, 1
    %p272 = por %p270, %p271
    %p273 = scmp.ne.s32.totalorder %s262, %s263
    %p274 = scmp.eq.s32.totalorder %s20, 0
    %p275 = por %p273, %p274
    %p276 = scmp.ne.s32.totalorder %s262, %s263
    %p277 = scmp.eq.s32.totalorder %s21, 1
    %p278 = por %p276, %p277
    %p280 = scmp.ne.s32.totalorder %s263, %s279
    %p281 = scmp.eq.s32.totalorder %s21, 0
    %p282 = por %p280, %p281
    %p283 = scmp.le.s32.totalorder 1, %s15
    %p284 = scmp.lt.s32.totalorder %s15, 3
    %p285 = pnand %p283, %p284
    %p286 = pneg %p285
    // Predicated region
    $region9: #{decoder_forward.16} parent=5 // pred_check
      _
    $region10: #{decoder_forward.16} parent=5 // pred_check_branch
      %288 = sbr.rel (%p285) target = $region12
    $region11: #{decoder_forward.16} parent=5 // pred_region
      %s289 = ssub.s32 %s15, 1
      // Predicated region
      $region13: #{decoder_forward.16} parent=11 // pred_check
        %p290 = pneg %p184
      $region14: #{decoder_forward.16} parent=11 // pred_check_branch
        %292 = sbr.rel (%p290) target = $region16
      $region15: #{decoder_forward.16} parent=11 // pred_region
        _
      $region16: #{decoder_forward.16} parent=11 // pred_fallthru
        _
      // Predicated region
      $region17: #{decoder_forward.16} parent=11 // pred_check
        %p293 = pneg %p205
      $region18: #{decoder_forward.16} parent=11 // pred_check_branch
        %295 = sbr.rel (%p293) target = $region20
      $region19: #{decoder_forward.16} parent=11 // pred_region
        _
      $region20: #{decoder_forward.16} parent=11 // pred_fallthru
        _
      // Predicated region
      $region21: #{decoder_forward.16} parent=11 // pred_check
        %p296 = pneg %p226
      $region22: #{decoder_forward.16} parent=11 // pred_check_branch
        %298 = sbr.rel (%p296) target = $region24
      $region23: #{decoder_forward.16} parent=11 // pred_region
        _
      $region24: #{decoder_forward.16} parent=11 // pred_fallthru
        _
      // Predicated region
      $region25: #{decoder_forward.16} parent=11 // pred_check
        %p299 = pneg %p247
      $region26: #{decoder_forward.16} parent=11 // pred_check_branch
        %301 = sbr.rel (%p299) target = $region28
      $region27: #{decoder_forward.16} parent=11 // pred_region
        _
      $region28: #{decoder_forward.16} parent=11 // pred_fallthru
        _
    $region12: #{decoder_forward.16} parent=5 // pred_fallthru
      _
    %p302 = scmp.lt.s32.totalorder %s15, 2
    // Predicated region
    $region29: #{decoder_forward.16} parent=5 // pred_check
      %p303 = pneg %p302
    $region30: #{decoder_forward.16} parent=5 // pred_check_branch
      %305 = sbr.rel (%p303) target = $region32
    $region31: #{decoder_forward.16} parent=5 // pred_region
      // Predicated region
      $region33: #{decoder_forward.16} parent=31 // pred_check
        %p306 = pneg %p49
      $region34: #{decoder_forward.16} parent=31 // pred_check_branch
        %308 = sbr.rel (%p306) target = $region36
      $region35: #{decoder_forward.16} parent=31 // pred_region
        %p309 = scmp.lt.s32.totalorder %s22, 1
        %s310 = scalar_select %p309, %s22, 1
        %p311 = scmp.lt.s32.totalorder %s23, 0
        %s312 = scalar_select %p311, %s23, 0
        %s313 = sadd.s32 %s312, %s310
        %s314 = smul.addr %s313, 8
        %s315 = scalar_lea.vmem %s0, %s314
      $region36: #{decoder_forward.16} parent=31 // pred_fallthru
        _
      // Predicated region
      $region37: #{decoder_forward.16} parent=31 // pred_check
        %p316 = pneg %p75
      $region38: #{decoder_forward.16} parent=31 // pred_check_branch
        %318 = sbr.rel (%p316) target = $region40
      $region39: #{decoder_forward.16} parent=31 // pred_region
        %p319 = scmp.lt.s32.totalorder %s22, 1
        %s320 = scalar_select %p319, %s22, 1
        %s321 = smul.addr %s320, 2
        %s322 = smul.addr %s321, 8
        %s323 = scalar_lea.vmem %s1, %s322
      $region40: #{decoder_forward.16} parent=31 // pred_fallthru
        _
      // Predicated region
      $region41: #{decoder_forward.16} parent=31 // pred_check
        %p324 = pneg %p101
      $region42: #{decoder_forward.16} parent=31 // pred_check_branch
        %326 = sbr.rel (%p324) target = $region44
      $region43: #{decoder_forward.16} parent=31 // pred_region
        %p327 = scmp.lt.s32.totalorder %s22, 1
        %s328 = scalar_select %p327, %s22, 1
        %s329 = scalar_lea.vmem %s2, %s328
      $region44: #{decoder_forward.16} parent=31 // pred_fallthru
        _
      // Predicated region
      $region45: #{decoder_forward.16} parent=31 // pred_check
        %p330 = pneg %p129
      $region46: #{decoder_forward.16} parent=31 // pred_check_branch
        %332 = sbr.rel (%p330) target = $region48
      $region47: #{decoder_forward.16} parent=31 // pred_region
        %p333 = scmp.lt.s32.totalorder %s22, 1
        %s334 = scalar_select %p333, %s22, 1
        %p335 = scmp.lt.s32.totalorder %s23, 0
        %s336 = scalar_select %p335, %s23, 0
        %s337 = sadd.s32 %s336, %s334
        %s338 = smul.addr %s337, 8
        %s339 = scalar_lea.vmem %s3, %s338
      $region48: #{decoder_forward.16} parent=31 // pred_fallthru
        _
      // Predicated region
      $region49: #{decoder_forward.16} parent=31 // pred_check
        %p340 = pneg %p157
      $region50: #{decoder_forward.16} parent=31 // pred_check_branch
        %342 = sbr.rel (%p340) target = $region52
      $region51: #{decoder_forward.16} parent=31 // pred_region
        %p343 = scmp.lt.s32.totalorder %s22, 1
        %s344 = scalar_select %p343, %s22, 1
        %p345 = scmp.lt.s32.totalorder %s23, 0
        %s346 = scalar_select %p345, %s23, 0
        %s347 = sadd.s32 %s346, %s344
        %s348 = smul.addr %s347, 8
        %s349 = scalar_lea.vmem %s4, %s348
      $region52: #{decoder_forward.16} parent=31 // pred_fallthru
        _
    $region32: #{decoder_forward.16} parent=5 // pred_fallthru
      _
    %p350 = scmp.le.s32.totalorder 1, %s15
    %p351 = scmp.lt.s32.totalorder %s15, 3
    %p352 = pnand %p350, %p351
    %p353 = pneg %p352
    // Predicated region
    $region53: #{decoder_forward.16} parent=5 // pred_check
      _
    $region54: #{decoder_forward.16} parent=5 // pred_check_branch
      %355 = sbr.rel (%p352) target = $region56
    $region55: #{decoder_forward.16} parent=5 // pred_region
      %s356 = ssub.s32 %s15, 1
      %p357 = scmp.lt.s32.totalorder %s24, 1
      %s358 = scalar_select %p357, %s24, 1
      %p359 = scmp.lt.s32.totalorder %s25, 0
      %s360 = scalar_select %p359, %s25, 0
      %s361 = sadd.s32 %s360, %s358
      %s362 = smul.addr %s361, 8
      %s363 = scalar_lea.vmem %s0, %s362
      %p364 = pneg %p55
      %p365 = pneg %p52
      %p366 = scmp.lt.s32.totalorder %s24, 1
      %s367 = scalar_select %p366, %s24, 1
      %s368 = smul.addr %s367, 2
      %s369 = smul.addr %s368, 8
      %s370 = scalar_lea.vmem %s1, %s369
      %p371 = pneg %p81
      %p372 = pneg %p78
      %p373 = scmp.lt.s32.totalorder %s24, 1
      %s374 = scalar_select %p373, %s24, 1
      %s375 = scalar_lea.vmem %s2, %s374
      %p376 = pneg %p107
      %p377 = pneg %p104
      %p378 = scmp.lt.s32.totalorder %s24, 1
      %s379 = scalar_select %p378, %s24, 1
      %p380 = scmp.lt.s32.totalorder %s25, 0
      %s381 = scalar_select %p380, %s25, 0
      %s382 = sadd.s32 %s381, %s379
      %s383 = smul.addr %s382, 8
      %s384 = scalar_lea.vmem %s3, %s383
      %p385 = pneg %p135
      %p386 = pneg %p132
      %p387 = scmp.lt.s32.totalorder %s24, 1
      %s388 = scalar_select %p387, %s24, 1
      %p389 = scmp.lt.s32.totalorder %s25, 0
      %s390 = scalar_select %p389, %s25, 0
      %s391 = sadd.s32 %s390, %s388
      %s392 = smul.addr %s391, 8
      %s393 = scalar_lea.vmem %s4, %s392
      %p394 = pneg %p163
      %p395 = pneg %p160
      %p396 = pneg %p184
      %p397 = pneg %p181
      %p398 = pneg %p205
      %p399 = pneg %p202
      %p400 = pneg %p226
      %p401 = pneg %p223
      %p402 = pneg %p247
      %p403 = pneg %p244
      %p404 = pneg %p275
      %p405 = pneg %p272
      %p406 = scmp.lt.s32.totalorder %s24, 1
      %s407 = scalar_select %p406, %s24, 1
      %p408 = scmp.lt.s32.totalorder %s25, 0
      %s409 = scalar_select %p408, %s25, 0
      %s410 = sadd.s32 %s409, %s407
      %s411 = smul.addr %s410, 8
      %s412 = scalar_lea.vmem %s9, %s411
      %p413 = scmp.lt.s32.totalorder %s24, 1
      %s414 = scalar_select %p413, %s24, 1
      %p415 = scmp.lt.s32.totalorder %s25, 0
      %s416 = scalar_select %p415, %s25, 0
      %s417 = sadd.s32 %s416, %s414
      %s418 = smul.addr %s417, 8
      %s419 = scalar_lea.vmem %s0, %s418
      %p420 = scmp.lt.s32.totalorder %s24, 1
      %s421 = scalar_select %p420, %s24, 1
      %s422 = smul.addr %s421, 2
      %s423 = smul.addr %s422, 8
      %s424 = scalar_lea.vmem %s1, %s423
      %p425 = scmp.lt.s32.totalorder %s24, 1
      %s426 = scalar_select %p425, %s24, 1
      %s427 = scalar_lea.vmem %s2, %s426
      %p428 = scmp.lt.s32.totalorder %s24, 1
      %s429 = scalar_select %p428, %s24, 1
      %p430 = scmp.lt.s32.totalorder %s25, 0
      %s431 = scalar_select %p430, %s25, 0
      %s432 = sadd.s32 %s431, %s429
      %s433 = smul.addr %s432, 8
      %s434 = scalar_lea.vmem %s3, %s433
      %p435 = scmp.lt.s32.totalorder %s24, 1
      %s436 = scalar_select %p435, %s24, 1
      %p437 = scmp.lt.s32.totalorder %s25, 0
      %s438 = scalar_select %p437, %s25, 0
      %s439 = sadd.s32 %s438, %s436
      %s440 = smul.addr %s439, 8
      %s441 = scalar_lea.vmem %s4, %s440
      %p442 = scmp.lt.s32.totalorder %s24, 1
      %s443 = scalar_select %p442, %s24, 1
      %p444 = scmp.lt.s32.totalorder %s25, 0
      %s445 = scalar_select %p444, %s25, 0
      %s446 = sadd.s32 %s445, %s443
      %s447 = smul.addr %s446, 8
      %s448 = scalar_lea.vmem %s9, %s447
      %v449 = vld [vmem:[%s427] sm:$0x1]
      %v450 = vld [vmem:[%s419] sm:$0xff]
      %v451 = vld [vmem:[%s424] sm:$0xff]
      %v452 = vld [vmem:[%s424 + $0x8] sm:$0x3]
      %vm453 = vcmask 130048
      %v455 = vsel %vm453, %v450, 0
      %v458 = vsel %vm453, %v451, 0
      %v461 = vsel %vm453, %v452, 0
      %463 = vmatprep.subr.mxu0 0.0
      %464 = vmatpush1.xpose.msra.mxu0 %v458
      %465 = vmatprep.subr.mxu0 0.0
      %466 = vmatpush1.xpose.msra.mxu0 %v461
      %467 = vmatprep.subr.mxu0 0.0
      %468 = vmatpush1.xpose.msra.mxu0 0.0
      %469 = vmatprep.subr.mxu0 0.0
      %470 = vmatpush1.xpose.msra.mxu0 0.0
      %471 = vmatprep.subr.mxu0 0.0
      %472 = vmatpush1.xpose.msra.mxu0 0.0
      %473 = vmatprep.subr.mxu0 0.0
      %474 = vmatpush1.xpose.msra.mxu0 0.0
      %475 = vmatprep.subr.mxu0 0.0
      %476 = vmatpush1.xpose.msra.mxu0 0.0
      %477 = vmatprep.subr.mxu0 0.0
      %478 = vmatpush1.xpose.msra.mxu0 0.0
      %479 = vmatprep.subr.mxu0 0.0
      %480 = vmatpush1.xpose.msra.mxu0 0.0
      %481 = vmatprep.subr.mxu0 0.0
      %482 = vmatpush1.xpose.msra.mxu0 0.0
      %483 = vmatprep.subr.mxu0 0.0
      %484 = vmatpush1.xpose.msra.mxu0 0.0
      %485 = vmatprep.subr.mxu0 0.0
      %486 = vmatpush1.xpose.msra.mxu0 0.0
      %487 = vmatprep.subr.mxu0 0.0
      %488 = vmatpush1.xpose.msra.mxu0 0.0
      %489 = vmatprep.subr.mxu0 0.0
      %490 = vmatpush1.xpose.msra.mxu0 0.0
      %491 = vmatprep.subr.mxu0 0.0
      %492 = vmatpush1.xpose.msra.mxu0 0.0
      %493 = vmatprep.subr.mxu0 0.0
      %494 = vmatpush1.xpose.msra.mxu0 0.0
      %495 = vmatprep.subr.mxu0 0.0
      %496 = vmatpush1.xpose.msra.mxu0 0.0
      %497 = vmatprep.subr.mxu0 0.0
      %498 = vmatpush1.xpose.msra.mxu0 0.0
      %499 = vmatprep.subr.mxu0 0.0
      %500 = vmatpush1.xpose.msra.mxu0 0.0
      %501 = vmatprep.subr.mxu0 0.0
      %502 = vmatpush1.xpose.msra.mxu0 0.0
      %503 = vmatprep.subr.mxu0 0.0
      %504 = vmatpush1.xpose.msra.mxu0 0.0
      %505 = vmatprep.subr.mxu0 0.0
      %506 = vmatpush1.xpose.msra.mxu0 0.0
      %507 = vmatprep.subr.mxu0 0.0
      %508 = vmatpush1.xpose.msra.mxu0 0.0
      %509 = vmatprep.subr.mxu0 0.0
      %510 = vmatpush1.xpose.msra.mxu0 0.0
      %511 = vmatprep.subr.mxu0 0.0
      %512 = vmatpush1.xpose.msra.mxu0 0.0
      %513 = vmatprep.subr.mxu0 0.0
      %514 = vmatpush1.xpose.msra.mxu0 0.0
      %515 = vmatprep.subr.mxu0 0.0
      %516 = vmatpush1.xpose.msra.mxu0 0.0
      %517 = vmatprep.subr.mxu0 0.0
      %518 = vmatpush1.xpose.msra.mxu0 0.0
      %519 = vmatprep.subr.mxu0 0.0
      %520 = vmatpush1.xpose.msra.mxu0 0.0
      %521 = vmatprep.subr.mxu0 0.0
      %522 = vmatpush1.xpose.msra.mxu0 0.0
      %523 = vmatprep.subr.mxu0 0.0
      %524 = vmatpush1.xpose.msra.mxu0 0.0
      %525 = vmatprep.subr.mxu0 0.0
      %526 = vmatpush1.xpose.msra.mxu0 0.0
      %527 = vmatprep.mubr.f32.mxu0 0.0
      %528 = vmatmul.mubr.f32.gmra.mrb[0].mxu0 %v455
      %v529 = vpop.f32.mrb[0].mxu0
      %v530 = vadd.f32 0.0, %v529
      %v531 = vpop.f32.mrb[0].mxu0
      %532 = vdwg.mxu0
      %vm533 = vcmp.gt.f32.partialorder %v449, 0.0
      %v534 = vsel %vm533, 1, 0
      %v535 = vlaneseq
      %v536 = vshrl.u32 %v535, 7
      %v537 = vsub.s32 0, %v536
      %v538 = vrot.slane %v534, %v537
      %vm539 = vcmp.eq.s32.totalorder %v538, 1
      %v540 = vsel %vm539, -1e+30, %v530
      %vm541 = vcmask 80896
      %v542 = vsel %vm541, %v540, -inf
      %543 = vmax.xlane.f32.xlu0 %v542
      %v544 = vpop.xlane.xlu0 %543
      %v545 = vsub.f32 %v540, %v544
      %v546 = vmul.f32 %v545, 1.442695
      %v547 = vpow.pop %v546
      %v548 = vsel %vm541, %v547, 0.0
      %549 = vadd.xlane.f32.xlu0 %v548
      %v550 = vpop.xlane.xlu0 %549
      %v551 = vrcp.pop %v550
      %v552 = vmul.f32 %v550, %v551
      %v553 = vsub.f32 2.0, %v552
      %v554 = vmul.f32 %v551, %v553
      %v555 = vmul.f32 %v547, %v554
      %556 = vrot.lane.b32.xlu0 %v451, 96
      %v557 = vpop.permute.xlu0 %556
      %558 = vrot.lane.b32.xlu0 %v452, 96
      %v559 = vpop.permute.xlu0 %558
      %v562 = vsel %vm541, %v555, 0
      %vm564 = vcmask 1041408
      %v565 = vsel %vm564, %v559, 0
      %567 = vmatprep.subr.mxu0 0.0
      %568 = vmatpush1.msra.mxu0 %v557
      %569 = vmatprep.subr.mxu0 0.0
      %570 = vmatpush1.msra.mxu0 %v565
      %571 = vmatprep.subr.mxu0 0.0
      %572 = vmatpush1.msra.mxu0 0.0
      %573 = vmatprep.subr.mxu0 0.0
      %574 = vmatpush1.msra.mxu0 0.0
      %575 = vmatprep.subr.mxu0 0.0
      %576 = vmatpush1.msra.mxu0 0.0
      %577 = vmatprep.subr.mxu0 0.0
      %578 = vmatpush1.msra.mxu0 0.0
      %579 = vmatprep.subr.mxu0 0.0
      %580 = vmatpush1.msra.mxu0 0.0
      %581 = vmatprep.subr.mxu0 0.0
      %582 = vmatpush1.msra.mxu0 0.0
      %583 = vmatprep.subr.mxu0 0.0
      %584 = vmatpush1.msra.mxu0 0.0
      %585 = vmatprep.subr.mxu0 0.0
      %586 = vmatpush1.msra.mxu0 0.0
      %587 = vmatprep.subr.mxu0 0.0
      %588 = vmatpush1.msra.mxu0 0.0
      %589 = vmatprep.subr.mxu0 0.0
      %590 = vmatpush1.msra.mxu0 0.0
      %591 = vmatprep.subr.mxu0 0.0
      %592 = vmatpush1.msra.mxu0 0.0
      %593 = vmatprep.subr.mxu0 0.0
      %594 = vmatpush1.msra.mxu0 0.0
      %595 = vmatprep.subr.mxu0 0.0
      %596 = vmatpush1.msra.mxu0 0.0
      %597 = vmatprep.subr.mxu0 0.0
      %598 = vmatpush1.msra.mxu0 0.0
      %599 = vmatprep.subr.mxu0 0.0
      %600 = vmatpush1.msra.mxu0 0.0
      %601 = vmatprep.subr.mxu0 0.0
      %602 = vmatpush1.msra.mxu0 0.0
      %603 = vmatprep.subr.mxu0 0.0
      %604 = vmatpush1.msra.mxu0 0.0
      %605 = vmatprep.subr.mxu0 0.0
      %606 = vmatpush1.msra.mxu0 0.0
      %607 = vmatprep.subr.mxu0 0.0
      %608 = vmatpush1.msra.mxu0 0.0
      %609 = vmatprep.subr.mxu0 0.0
      %610 = vmatpush1.msra.mxu0 0.0
      %611 = vmatprep.subr.mxu0 0.0
      %612 = vmatpush1.msra.mxu0 0.0
      %613 = vmatprep.subr.mxu0 0.0
      %614 = vmatpush1.msra.mxu0 0.0
      %615 = vmatprep.subr.mxu0 0.0
      %616 = vmatpush1.msra.mxu0 0.0
      %617 = vmatprep.subr.mxu0 0.0
      %618 = vmatpush1.msra.mxu0 0.0
      %619 = vmatprep.subr.mxu0 0.0
      %620 = vmatpush1.msra.mxu0 0.0
      %621 = vmatprep.subr.mxu0 0.0
      %622 = vmatpush1.msra.mxu0 0.0
      %623 = vmatprep.subr.mxu0 0.0
      %624 = vmatpush1.msra.mxu0 0.0
      %625 = vmatprep.subr.mxu0 0.0
      %626 = vmatpush1.msra.mxu0 0.0
      %627 = vmatprep.subr.mxu0 0.0
      %628 = vmatpush1.msra.mxu0 0.0
      %629 = vmatprep.subr.mxu0 0.0
      %630 = vmatpush1.msra.mxu0 0.0
      %631 = vmatprep.mubr.f32.mxu0 0.0
      %632 = vmatmul.mubr.f32.gmra.mrb[0].mxu0 %v562
      %v633 = vpop.f32.mrb[0].mxu0
      %v634 = vadd.f32 0.0, %v633
      %v635 = vpop.f32.mrb[0].mxu0
      %636 = vdwg.mxu0
      %637 = vst.msk [vmem:[#allocation2] sm:$0xff] %vm453, %v634
      %v638 = vld [vmem:[%s419] sm:$0xff]
      %v639 = vld [vmem:[%s424] sm:$0xff]
      %v640 = vld [vmem:[%s424 + $0x8] sm:$0x3]
      %642 = vrot.lane.b32.xlu0 %v638, 112
      %v643 = vpop.permute.xlu0 %642
      %646 = vrot.lane.b32.xlu0 %v639, 112
      %v647 = vpop.permute.xlu0 %646
      %648 = vrot.lane.b32.xlu0 %v640, 112
      %v649 = vpop.permute.xlu0 %648
      %v650 = vsel %vm453, %v643, 0
      %v652 = vsel %vm453, %v647, 0
      %v654 = vsel %vm453, %v649, 0
      %656 = vmatprep.subr.mxu0 0.0
      %657 = vmatpush1.xpose.msra.mxu0 %v652
      %658 = vmatprep.subr.mxu0 0.0
      %659 = vmatpush1.xpose.msra.mxu0 %v654
      %660 = vmatprep.subr.mxu0 0.0
      %661 = vmatpush1.xpose.msra.mxu0 0.0
      %662 = vmatprep.subr.mxu0 0.0
      %663 = vmatpush1.xpose.msra.mxu0 0.0
      %664 = vmatprep.subr.mxu0 0.0
      %665 = vmatpush1.xpose.msra.mxu0 0.0
      %666 = vmatprep.subr.mxu0 0.0
      %667 = vmatpush1.xpose.msra.mxu0 0.0
      %668 = vmatprep.subr.mxu0 0.0
      %669 = vmatpush1.xpose.msra.mxu0 0.0
      %670 = vmatprep.subr.mxu0 0.0
      %671 = vmatpush1.xpose.msra.mxu0 0.0
      %672 = vmatprep.subr.mxu0 0.0
      %673 = vmatpush1.xpose.msra.mxu0 0.0
      %674 = vmatprep.subr.mxu0 0.0
      %675 = vmatpush1.xpose.msra.mxu0 0.0
      %676 = vmatprep.subr.mxu0 0.0
      %677 = vmatpush1.xpose.msra.mxu0 0.0
      %678 = vmatprep.subr.mxu0 0.0
      %679 = vmatpush1.xpose.msra.mxu0 0.0
      %680 = vmatprep.subr.mxu0 0.0
      %681 = vmatpush1.xpose.msra.mxu0 0.0
      %682 = vmatprep.subr.mxu0 0.0
      %683 = vmatpush1.xpose.msra.mxu0 0.0
      %684 = vmatprep.subr.mxu0 0.0
      %685 = vmatpush1.xpose.msra.mxu0 0.0
      %686 = vmatprep.subr.mxu0 0.0
      %687 = vmatpush1.xpose.msra.mxu0 0.0
      %688 = vmatprep.subr.mxu0 0.0
      %689 = vmatpush1.xpose.msra.mxu0 0.0
      %690 = vmatprep.subr.mxu0 0.0
      %691 = vmatpush1.xpose.msra.mxu0 0.0
      %692 = vmatprep.subr.mxu0 0.0
      %693 = vmatpush1.xpose.msra.mxu0 0.0
      %694 = vmatprep.subr.mxu0 0.0
      %695 = vmatpush1.xpose.msra.mxu0 0.0
      %696 = vmatprep.subr.mxu0 0.0
      %697 = vmatpush1.xpose.msra.mxu0 0.0
      %698 = vmatprep.subr.mxu0 0.0
      %699 = vmatpush1.xpose.msra.mxu0 0.0
      %700 = vmatprep.subr.mxu0 0.0
      %701 = vmatpush1.xpose.msra.mxu0 0.0
      %702 = vmatprep.subr.mxu0 0.0
      %703 = vmatpush1.xpose.msra.mxu0 0.0
      %704 = vmatprep.subr.mxu0 0.0
      %705 = vmatpush1.xpose.msra.mxu0 0.0
      %706 = vmatprep.subr.mxu0 0.0
      %707 = vmatpush1.xpose.msra.mxu0 0.0
      %708 = vmatprep.subr.mxu0 0.0
      %709 = vmatpush1.xpose.msra.mxu0 0.0
      %710 = vmatprep.subr.mxu0 0.0
      %711 = vmatpush1.xpose.msra.mxu0 0.0
      %712 = vmatprep.subr.mxu0 0.0
      %713 = vmatpush1.xpose.msra.mxu0 0.0
      %714 = vmatprep.subr.mxu0 0.0
      %715 = vmatpush1.xpose.msra.mxu0 0.0
      %716 = vmatprep.subr.mxu0 0.0
      %717 = vmatpush1.xpose.msra.mxu0 0.0
      %718 = vmatprep.subr.mxu0 0.0
      %719 = vmatpush1.xpose.msra.mxu0 0.0
      %720 = vmatprep.mubr.f32.mxu0 0.0
      %721 = vmatmul.mubr.f32.gmra.mrb[0].mxu0 %v650
      %v722 = vpop.f32.mrb[0].mxu0
      %v723 = vadd.f32 0.0, %v722
      %v724 = vpop.f32.mrb[0].mxu0
      %725 = vdwg.mxu0
      %v726 = vsel %vm539, -1e+30, %v723
      %v727 = vsel %vm541, %v726, -inf
      %728 = vmax.xlane.f32.xlu0 %v727
      %v729 = vpop.xlane.xlu0 %728
      %v730 = vsub.f32 %v726, %v729
      %v731 = vmul.f32 %v730, 1.442695
      %v732 = vpow.pop %v731
      %v733 = vsel %vm541, %v732, 0.0
      %734 = vadd.xlane.f32.xlu0 %v733
      %v735 = vpop.xlane.xlu0 %734
      %v736 = vrcp.pop %v735
      %v737 = vmul.f32 %v735, %v736
      %v738 = vsub.f32 2.0, %v737
      %v739 = vmul.f32 %v736, %v738
      %v740 = vmul.f32 %v732, %v739
      %741 = vrot.lane.b32.xlu0 %v639, 80
      %v742 = vpop.permute.xlu0 %741
      %743 = vrot.lane.b32.xlu0 %v640, 80
      %v744 = vpop.permute.xlu0 %743
      %v747 = vsel %vm541, %v740, 0
      %v749 = vsel %vm564, %v744, 0
      %751 = vmatprep.subr.mxu0 0.0
      %752 = vmatpush1.msra.mxu0 %v742
      %753 = vmatprep.subr.mxu0 0.0
      %754 = vmatpush1.msra.mxu0 %v749
      %755 = vmatprep.subr.mxu0 0.0
      %756 = vmatpush1.msra.mxu0 0.0
      %757 = vmatprep.subr.mxu0 0.0
      %758 = vmatpush1.msra.mxu0 0.0
      %759 = vmatprep.subr.mxu0 0.0
      %760 = vmatpush1.msra.mxu0 0.0
      %761 = vmatprep.subr.mxu0 0.0
      %762 = vmatpush1.msra.mxu0 0.0
      %763 = vmatprep.subr.mxu0 0.0
      %764 = vmatpush1.msra.mxu0 0.0
      %765 = vmatprep.subr.mxu0 0.0
      %766 = vmatpush1.msra.mxu0 0.0
      %767 = vmatprep.subr.mxu0 0.0
      %768 = vmatpush1.msra.mxu0 0.0
      %769 = vmatprep.subr.mxu0 0.0
      %770 = vmatpush1.msra.mxu0 0.0
      %771 = vmatprep.subr.mxu0 0.0
      %772 = vmatpush1.msra.mxu0 0.0
      %773 = vmatprep.subr.mxu0 0.0
      %774 = vmatpush1.msra.mxu0 0.0
      %775 = vmatprep.subr.mxu0 0.0
      %776 = vmatpush1.msra.mxu0 0.0
      %777 = vmatprep.subr.mxu0 0.0
      %778 = vmatpush1.msra.mxu0 0.0
      %779 = vmatprep.subr.mxu0 0.0
      %780 = vmatpush1.msra.mxu0 0.0
      %781 = vmatprep.subr.mxu0 0.0
      %782 = vmatpush1.msra.mxu0 0.0
      %783 = vmatprep.subr.mxu0 0.0
      %784 = vmatpush1.msra.mxu0 0.0
      %785 = vmatprep.subr.mxu0 0.0
      %786 = vmatpush1.msra.mxu0 0.0
      %787 = vmatprep.subr.mxu0 0.0
      %788 = vmatpush1.msra.mxu0 0.0
      %789 = vmatprep.subr.mxu0 0.0
      %790 = vmatpush1.msra.mxu0 0.0
      %791 = vmatprep.subr.mxu0 0.0
      %792 = vmatpush1.msra.mxu0 0.0
      %793 = vmatprep.subr.mxu0 0.0
      %794 = vmatpush1.msra.mxu0 0.0
      %795 = vmatprep.subr.mxu0 0.0
      %796 = vmatpush1.msra.mxu0 0.0
      %797 = vmatprep.subr.mxu0 0.0
      %798 = vmatpush1.msra.mxu0 0.0
      %799 = vmatprep.subr.mxu0 0.0
      %800 = vmatpush1.msra.mxu0 0.0
      %801 = vmatprep.subr.mxu0 0.0
      %802 = vmatpush1.msra.mxu0 0.0
      %803 = vmatprep.subr.mxu0 0.0
      %804 = vmatpush1.msra.mxu0 0.0
      %805 = vmatprep.subr.mxu0 0.0
      %806 = vmatpush1.msra.mxu0 0.0
      %807 = vmatprep.subr.mxu0 0.0
      %808 = vmatpush1.msra.mxu0 0.0
      %809 = vmatprep.subr.mxu0 0.0
      %810 = vmatpush1.msra.mxu0 0.0
      %811 = vmatprep.subr.mxu0 0.0
      %812 = vmatpush1.msra.mxu0 0.0
      %813 = vmatprep.subr.mxu0 0.0
      %814 = vmatpush1.msra.mxu0 0.0
      %815 = vmatprep.mubr.f32.mxu0 0.0
      %816 = vmatmul.mubr.f32.gmra.mrb[0].mxu0 %v747
      %v817 = vpop.f32.mrb[0].mxu0
      %v818 = vadd.f32 0.0, %v817
      %v819 = vpop.f32.mrb[0].mxu0
      %820 = vdwg.mxu0
      %822 = vrot.lane.b32.xlu0 %v818, 16
      %v823 = vpop.permute.xlu0 %822
      %vm825 = vcmask 261248
      %826 = vst.msk [vmem:[#allocation2] sm:$0xff] %vm825, %v823
      %v827 = vld [vmem:[#allocation2] sm:$0xff]
      %v828 = vld [vmem:[%s5] sm:$0xff]
      %v829 = vld [vmem:[%s5 + $0x8] sm:$0xff]
      %v830 = vld [vmem:[%s5 + $0x10] sm:$0xff]
      %v831 = vld [vmem:[%s5 + $0x18] sm:$0xff]
      %v832 = vld [vmem:[%s6] sm:$0x1]
      %v834 = vlaneseq
      %v835 = vshrl.u32 %v834, 7
      %v836 = vsub.s32 0, %v835
      %v837 = vrot.slane %v832, %v836
      %vm839 = vcmask 261120
      %v841 = vsel %vm839, %v827, 0
      %843 = vmatprep.subr.mxu0 0.0
      %844 = vmatpush1.msra.mxu0 %v828
      %845 = vmatprep.subr.mxu0 0.0
      %846 = vmatpush1.msra.mxu0 %v829
      %847 = vmatprep.subr.mxu0 0.0
      %848 = vmatpush1.msra.mxu0 %v830
      %849 = vmatprep.subr.mxu0 0.0
      %850 = vmatpush1.msra.mxu0 %v831
      %851 = vmatprep.subr.mxu0 0.0
      %852 = vmatpush1.msra.mxu0 0.0
      %853 = vmatprep.subr.mxu0 0.0
      %854 = vmatpush1.msra.mxu0 0.0
      %855 = vmatprep.subr.mxu0 0.0
      %856 = vmatpush1.msra.mxu0 0.0
      %857 = vmatprep.subr.mxu0 0.0
      %858 = vmatpush1.msra.mxu0 0.0
      %859 = vmatprep.subr.mxu0 0.0
      %860 = vmatpush1.msra.mxu0 0.0
      %861 = vmatprep.subr.mxu0 0.0
      %862 = vmatpush1.msra.mxu0 0.0
      %863 = vmatprep.subr.mxu0 0.0
      %864 = vmatpush1.msra.mxu0 0.0
      %865 = vmatprep.subr.mxu0 0.0
      %866 = vmatpush1.msra.mxu0 0.0
      %867 = vmatprep.subr.mxu0 0.0
      %868 = vmatpush1.msra.mxu0 0.0
      %869 = vmatprep.subr.mxu0 0.0
      %870 = vmatpush1.msra.mxu0 0.0
      %871 = vmatprep.subr.mxu0 0.0
      %872 = vmatpush1.msra.mxu0 0.0
      %873 = vmatprep.subr.mxu0 0.0
      %874 = vmatpush1.msra.mxu0 0.0
      %875 = vmatprep.subr.mxu0 0.0
      %876 = vmatpush1.msra.mxu0 0.0
      %877 = vmatprep.subr.mxu0 0.0
      %878 = vmatpush1.msra.mxu0 0.0
      %879 = vmatprep.subr.mxu0 0.0
      %880 = vmatpush1.msra.mxu0 0.0
      %881 = vmatprep.subr.mxu0 0.0
      %882 = vmatpush1.msra.mxu0 0.0
      %883 = vmatprep.subr.mxu0 0.0
      %884 = vmatpush1.msra.mxu0 0.0
      %885 = vmatprep.subr.mxu0 0.0
      %886 = vmatpush1.msra.mxu0 0.0
      %887 = vmatprep.subr.mxu0 0.0
      %888 = vmatpush1.msra.mxu0 0.0
      %889 = vmatprep.subr.mxu0 0.0
      %890 = vmatpush1.msra.mxu0 0.0
      %891 = vmatprep.subr.mxu0 0.0
      %892 = vmatpush1.msra.mxu0 0.0
      %893 = vmatprep.subr.mxu0 0.0
      %894 = vmatpush1.msra.mxu0 0.0
      %895 = vmatprep.subr.mxu0 0.0
      %896 = vmatpush1.msra.mxu0 0.0
      %897 = vmatprep.subr.mxu0 0.0
      %898 = vmatpush1.msra.mxu0 0.0
      %899 = vmatprep.subr.mxu0 0.0
      %900 = vmatpush1.msra.mxu0 0.0
      %901 = vmatprep.subr.mxu0 0.0
      %902 = vmatpush1.msra.mxu0 0.0
      %903 = vmatprep.subr.mxu0 0.0
      %904 = vmatpush1.msra.mxu0 0.0
      %905 = vmatprep.subr.mxu0 0.0
      %906 = vmatpush1.msra.mxu0 0.0
      %907 = vmatprep.mubr.f32.mxu0 0.0
      %908 = vmatmul.mubr.f32.gmra.mrb[0].mxu0 %v841
      %v909 = vpop.f32.mrb[0].mxu0
      %v910 = vadd.f32 %v837, %v909
      %v911 = vpop.f32.mrb[0].mxu0
      %912 = vdwg.mxu0
      %v913 = vld [vmem:[%s434] sm:$0xff]
      %v914 = vadd.f32 %v910, %v913
      %v915 = vsel %vm839, %v914, 0.0
      %916 = vadd.xlane.f32.xlu0 %v915
      %v917 = vpop.xlane.xlu0 %916
      %v918 = vrcp.pop 32.0
      %v919 = vmul.f32 %v917, %v918
      %v920 = vsub.f32 %v914, %v919
      %v921 = vmul.f32 %v920, %v920
      %v922 = vsel %vm839, %v921, 0.0
      %923 = vadd.xlane.f32.xlu0 %v922
      %v924 = vpop.xlane.xlu0 %923
      %v925 = vmul.f32 %v924, %v918
      %v926 = vadd.f32 %v925, 1e-05
      %v927 = vrsqrt.pop %v926
      %v928 = vmul.f32 %v920, %v927
      %v929 = vld [vmem:[%s7] sm:$0x1]
      %v931 = vlaneseq
      %v932 = vshrl.u32 %v931, 7
      %v933 = vsub.s32 0, %v932
      %v934 = vrot.slane %v929, %v933
      %v936 = vmul.f32 %v928, %v934
      %v937 = vld [vmem:[%s8] sm:$0x1]
      %v939 = vlaneseq
      %v940 = vshrl.u32 %v939, 7
      %v941 = vsub.s32 0, %v940
      %v942 = vrot.slane %v937, %v941
      %v944 = vadd.f32 %v936, %v942
      %v945 = vld [vmem:[%s441] sm:$0xff]
      %947 = vset.pattern.permute.xlu0 0
      %948 = vperm.xlu0 %947, %v945
      %v949 = vpop.permute.xlu0 %948
      %v951 = vmul.f32 %v944, %v949
      %952 = vst.msk [vmem:[%s448] sm:$0xff] %vm839, %v951
      %p953 = scmp.lt.s32.totalorder %s24, 1
      %s954 = scalar_select %p953, %s24, 1
      %p955 = scmp.lt.s32.totalorder %s25, 0
      %s956 = scalar_select %p955, %s25, 0
      %s957 = sadd.s32 %s956, %s954
      %s958 = smul.addr %s957, 8
      %s959 = scalar_lea.vmem %s9, %s958
      // Predicated region
      $region57: #{decoder_forward.16} parent=55 // pred_check
        %p960 = pneg %p272
      $region58: #{decoder_forward.16} parent=55 // pred_check_branch
        %962 = sbr.rel (%p960) target = $region60
      $region59: #{decoder_forward.16} parent=55 // pred_region
        _
      $region60: #{decoder_forward.16} parent=55 // pred_fallthru
        _
    $region56: #{decoder_forward.16} parent=5 // pred_fallthru
      _
    %p963 = scmp.le.s32.totalorder 2, %s15
    // Predicated region
    $region61: #{decoder_forward.16} parent=5 // pred_check
      %p964 = pneg %p963
    $region62: #{decoder_forward.16} parent=5 // pred_check_branch
      %966 = sbr.rel (%p964) target = $region64
    $region63: #{decoder_forward.16} parent=5 // pred_region
      %s967 = ssub.s32 %s15, 2
      // Predicated region
      $region65: #{decoder_forward.16} parent=63 // pred_check
        %p968 = pneg %p278
      $region66: #{decoder_forward.16} parent=63 // pred_check_branch
        %970 = sbr.rel (%p968) target = $region68
      $region67: #{decoder_forward.16} parent=63 // pred_region
        %p971 = scmp.lt.s32.totalorder %s26, 1
        %s972 = scalar_select %p971, %s26, 1
        %p973 = scmp.lt.s32.totalorder %s27, 0
        %s974 = scalar_select %p973, %s27, 0
        %s975 = sadd.s32 %s974, %s972
        %s976 = smul.addr %s975, 8
        %s977 = scalar_lea.vmem %s9, %s976
      $region68: #{decoder_forward.16} parent=63 // pred_fallthru
        _
    $region64: #{decoder_forward.16} parent=5 // pred_fallthru
      _
  $region6: #{decoder_forward.16} parent=0 // loop_footer
    %s19 = sadd.s32 1, %s15
  $region7: #{decoder_forward.16} parent=0 // loop_footer_branch
    %14 = sbr.rel target = $region3
  $region8: #{decoder_forward.16} parent=0 // loop_exit
    _

</llo_original>
